<compile_context>
chip_gen: v6e
topology: v6e:2x2x1
jax: 0.10.0
libtpu: 0.0.40
codegen_flags: <defaults>
</compile_context>

<pallas_src>
import jax
import jax.numpy as jnp
from jax import lax
from jax.experimental import pallas as pl
from jax.experimental.pallas import tpu as pltpu

REEIG_EPS = 1e-4  # ReEig rectification threshold used by spdnet's functional.ReEig


# ----------------------------------------------------------------------------
# Kernel 1: BiMap (channel-summed bilinear map) with BatchNormSPD(eval) folded
#           into the weights.  One grid step per `batch_block` batch elements.
# ----------------------------------------------------------------------------
def _bimap_bn_kernel(x_ref, w_ref, o_ref):
    # x_ref : (bb, C_in, ni, ni)  batch-block of SPD inputs (no block-diag inflation)
    # w_ref : (K, N)              BN-folded weights, K = C_in*ni, N = C_out*no
    #                             w_ref[ci*ni + i, co*no + j] = (W[co,ci] @ A^T)[i, j]
    # o_ref : (bb, no, N)         lane-packed output: o[b, i, co*no + j] = P_bn[b, co, i, j]
    bb, c_in, ni, _ = x_ref.shape
    no = o_ref.shape[1]
    n_tot = o_ref.shape[2]
    c_out = n_tot // no

    wf = w_ref[...]                                                 # (K, N), VMEM-resident
    # Hoisted lane-index mask material (JAX does not CSE broadcasts inside loops).
    lane = lax.broadcasted_iota(jnp.int32, (no, n_tot), 1)

    for b in range(bb):  # static unrolled (bb is 1 on multi-TC chips)
        xs = x_ref[b]                                               # (C_in, ni, ni)

        # P_all = Wall^T X_bd Wall  without materializing X_bd: accumulate per input
        # channel with sublane-aligned slices of Wall (offsets ci*ni are multiples of 8).
        p_all = jnp.zeros((n_tot, n_tot), jnp.float32)
        for ci in range(c_in):  # static unrolled, C_in = 4
            w_ci = wf[ci * ni:(ci + 1) * ni, :]                     # (ni, N) aligned slice
            t_ci = jnp.dot(xs[ci], w_ci,
                           preferred_element_type=jnp.float32)      # X[ci] @ W'_ci : (ni, N)
            p_all = p_all + lax.dot_general(
                w_ci, t_ci, (((0,), (0,)), ((), ())),
                preferred_element_type=jnp.float32)                 # W'_ci^T X W'_ci : (N, N)

        # Blended epilogue: diagonal (no, no) blocks of p_all -> ONE lane-packed store.
        # Source rows co*no..co*no+no are sublane-aligned; source/dest lane offsets match,
        # so the selection is pure VPU jnp.where (no cross-lane shuffles, no per-co stores).
        acc = jnp.zeros((no, n_tot), jnp.float32)
        for co in range(c_out):  # static unrolled
            rows = p_all[co * no:(co + 1) * no, :]                  # (no, N), aligned slice
            in_blk = (lane >= co * no) & (lane < (co + 1) * no)
            acc = jnp.where(in_blk, rows, acc)
        o_ref[b] = acc.astype(o_ref.dtype)


def bimap_bn(x, w, a_bn, *, batch_block=1):
    B, C_in, ni, _ = x.shape
    C_out, _, _, no = w.shape
    K = C_in * ni
    N = C_out * no
    assert B % batch_block == 0
    bb = batch_block

    # Fold the BN congruence into the weights: A (W^T X W) A^T = (W A^T)^T X (W A^T).
    w_f = jnp.einsum('ocij,kj->ocik', w, a_bn)             # (C_out, C_in, ni, no)
    wall = w_f.transpose(1, 2, 0, 3).reshape(K, N)         # Wall[ci*ni+i, co*no+j]

    packed = pl.pallas_call(
        _bimap_bn_kernel,
        out_shape=jax.ShapeDtypeStruct((B, no, N), jnp.float32),
        grid=(B // bb,),
        in_specs=[
            pl.BlockSpec((bb, C_in, ni, ni), lambda b: (b, 0, 0, 0)),
            pl.BlockSpec((K, N), lambda b: (0, 0)),        # ~8 KiB, VMEM-resident across steps
        ],
        out_specs=pl.BlockSpec((bb, no, N), lambda b: (b, 0, 0)),
        compiler_params=pltpu.CompilerParams(
            dimension_semantics=("parallel",)),            # v7x: one batch element per TC
    )(x, wall)

    # Unpack lane-packed slab (B, no, C_out*no) -> (B, C_out, no, no).  Pure layout plumbing
    # in the wrapper; keeps the kernel's store lane-dense and single-shot.
    return packed.reshape(B, no, C_out, no).transpose(0, 2, 1, 3)


# ----------------------------------------------------------------------------
# Kernel 2: ReEig rectification + reconstruction  U diag(max(S, eps)) U^T.
# One batched MXU contraction over channels; output emitted directly in the
# final (B, C, no, no) layout so no wrapper reshape/transpose is needed.
# ----------------------------------------------------------------------------
def _reeig_kernel(u_ref, s_ref, o_ref):
    # u_ref: (bb, C, no, no)  eigenvector columns;  s_ref: (bb, C, 1, no) eigenvalues
    # o_ref: (bb, C, no, no)
    bb = u_ref.shape[0]
    for b in range(bb):  # static unrolled
        u = u_ref[b]                                   # (C, no, no)
        s_cl = jnp.maximum(s_ref[b], REEIG_EPS)        # (C, 1, no)
        us = u * s_cl                                  # scale eigenvector columns (VPU)
        y = jnp.einsum('cik,cjk->cij', us, u,
                       preferred_element_type=jnp.float32)   # batched (U S) @ U^T
        o_ref[b] = y.astype(o_ref.dtype)


def reeig(u, s, *, batch_block=1):
    B, C, no, _ = u.shape
    assert B % batch_block == 0
    bb = batch_block
    s4 = s.reshape(B, C, 1, no)                        # free reshape
    return pl.pallas_call(
        _reeig_kernel,
        out_shape=jax.ShapeDtypeStruct((B, C, no, no), jnp.float32),
        grid=(B // bb,),
        in_specs=[
            pl.BlockSpec((bb, C, no, no), lambda b: (b, 0, 0, 0)),
            pl.BlockSpec((bb, C, 1, no), lambda b: (b, 0, 0, 0)),
        ],
        out_specs=pl.BlockSpec((bb, C, no, no), lambda b: (b, 0, 0, 0)),
        compiler_params=pltpu.CompilerParams(
            dimension_semantics=("parallel",)),
    )(u, s4)


# ----------------------------------------------------------------------------
# Full forward: BiMap -> BatchNormSPD(eval) -> ReEig
# On single-TC v5e/v6e, call with batch_block=B to collapse the 2-step grid.
# ----------------------------------------------------------------------------
def bimap_2_reduced_forward(x, w, a_bn, *, batch_block=1):
    y = bimap_bn(x, w, a_bn, batch_block=batch_block)  # Pallas: fused BiMap + BN congruence
    s, u = jnp.linalg.eigh(y)                          # JAX glue: symmetric eig (no Pallas equivalent)
    return reeig(u, s, batch_block=batch_block)        # Pallas: clamp + reconstruct


# ----------------------------------------------------------------------------
# Parameter setup (deterministic, matches the module's __init__ shapes)
# ----------------------------------------------------------------------------
def init_bimap_weight(key, c_out, c_in, ni, no):
    # Semi-orthogonal (Stiefel) init: first `no` columns of a random orthogonal matrix.
    a = jax.random.normal(key, (c_out, c_in, ni, ni), jnp.float32)
    q, _ = jnp.linalg.qr(a)
    return q[..., :no]


def _sym_sqrt(m):
    w, v = jnp.linalg.eigh(m)
    return (v * jnp.sqrt(w)[None, :]) @ v.T


def _sym_inv_sqrt(m):
    w, v = jnp.linalg.eigh(m)
    return (v / jnp.sqrt(w)[None, :]) @ v.T


# ----------------------------------------------------------------------------
# Pure-JAX references for correctness checking
# ----------------------------------------------------------------------------
def reference_bimap_bn(x, w, a_bn):
    p = jnp.einsum('ocik,bcij,ocjl->bokl', w, x, w)          # BiMap
    return jnp.einsum('mk,bokl,nl->bomn', a_bn, p, a_bn)     # BatchNormSPD (eval)


def reference_forward(x, w, a_bn):
    y = reference_bimap_bn(x, w, a_bn)
    s, u = jnp.linalg.eigh(y)
    s_cl = jnp.maximum(s, REEIG_EPS)
    return jnp.einsum('bokm,bom,bolm->bokl', u, s_cl, u)     # ReEig


if __name__ == "__main__":
    B, C_in, dim_in, dim_out = 2, 4, 16, 8
    key = jax.random.PRNGKey(0)
    kx, kw, kg = jax.random.split(key, 3)

    # Input: batch of SPD matrices, shape (B, C_in, dim_in, dim_in)
    a = jax.random.normal(kx, (B, C_in, dim_in, dim_in), jnp.float32)
    x = jnp.einsum('bcij,bckj->bcik', a, a) + 1e-2 * jnp.eye(dim_in, dtype=jnp.float32)

    # BiMap Stiefel weight (C_out=C_in, dim_in -> dim_out)
    w = init_bimap_weight(kw, C_in, C_in, dim_in, dim_out)

    # BatchNormSPD parameters at init: running_mean = I, weight = I  ->  A = G^{1/2} M^{-1/2}
    running_mean = jnp.eye(dim_out, dtype=jnp.float32)
    bn_weight = jnp.eye(dim_out, dtype=jnp.float32)
    a_bn = _sym_sqrt(bn_weight) @ _sym_inv_sqrt(running_mean)

    # Full forward (module-init BN parameters)
    fwd = jax.jit(bimap_2_reduced_forward)
    out = jax.block_until_ready(fwd(x, w, a_bn))
    ref = reference_forward(x, w, a_bn)
    assert out.shape == (B, C_in, dim_out, dim_out)
    assert bool(jnp.allclose(out, ref, atol=1e-3, rtol=1e-3)), "mismatch vs JAX reference"

    # Extra check 1: the BN-fold is algebraically exact for a NON-identity A as well
    # (validates the fused-weight restructuring without eigh in the comparison path).
    g = jax.random.normal(kg, (dim_out, dim_out), jnp.float32)
    g_spd = 0.1 * (g @ g.T) + 0.5 * jnp.eye(dim_out, dtype=jnp.float32)
    a_bn2 = _sym_sqrt(g_spd)                       # running_mean = I -> A = G^{1/2}
    p_pallas = jax.block_until_ready(bimap_bn(x, w, a_bn2))
    p_ref = reference_bimap_bn(x, w, a_bn2)
    assert bool(jnp.allclose(p_pallas, p_ref, atol=1e-3, rtol=1e-3)), "BN-fold mismatch"

    # Extra check 2: collapsed-grid path (what single-TC v5e/v6e would use) agrees too.
    out_collapsed = jax.block_until_ready(bimap_2_reduced_forward(x, w, a_bn, batch_block=B))
    assert bool(jnp.allclose(out_collapsed, ref, atol=1e-3, rtol=1e-3)), "collapsed-grid mismatch"

    print("KERNEL_OK")
</pallas_src>

<mosaic_0001>
module attributes {stable_mosaic.version = 11 : i64} {
  func.func @_bimap_bn_kernel(%arg0: i32, %arg1: memref<1x4x16x16xf32, #tpu.memory_space<vmem>>, %arg2: memref<64x32xf32, #tpu.memory_space<vmem>>, %arg3: memref<1x8x32xf32, #tpu.memory_space<vmem>>) attributes {dimension_semantics = [#tpu.dimension_semantics<parallel>], iteration_bounds = array<i64: 2>, scalar_prefetch = 0 : i64, scratch_operands = 0 : i64, tpu.core_type = #tpu.core_type<tc>, window_params = [{transform_indices = @transform_0, window_bounds = array<i64: 1, 4, 16, 16>}, {pipeline_mode = #tpu.pipeline_mode<synchronous>, transform_indices = @transform_1, window_bounds = array<i64: 64, 32>}, {transform_indices = @transform_2, window_bounds = array<i64: 1, 8, 32>}]} {
    %c0 = arith.constant 0 : index
    %c0_0 = arith.constant 0 : index
    %0 = vector.load %arg2[%c0, %c0_0] : memref<64x32xf32, #tpu.memory_space<vmem>>, vector<64x32xf32>
    %1 = tpu.iota {dimensions = array<i32: 1>} : vector<8x32xi32>
    %c0_1 = arith.constant 0 : index
    %c0_2 = arith.constant 0 : index
    %c0_3 = arith.constant 0 : index
    %c0_4 = arith.constant 0 : index
    %2 = vector.load %arg1[%c0_1, %c0_2, %c0_3, %c0_4] : memref<1x4x16x16xf32, #tpu.memory_space<vmem>>, vector<1x4x16x16xf32>
    %3 = vector.shape_cast %2 : vector<1x4x16x16xf32> to vector<4x16x16xf32>
    %cst = arith.constant 0.000000e+00 : f32
    %4 = vector.broadcast %cst : f32 to vector<32x32xf32>
    %5 = vector.extract_strided_slice %0 {offsets = [0, 0], sizes = [16, 32], strides = [1, 1]} : vector<64x32xf32> to vector<16x32xf32>
    %6 = vector.extract_strided_slice %3 {offsets = [0, 0, 0], sizes = [1, 16, 16], strides = [1, 1, 1]} : vector<4x16x16xf32> to vector<1x16x16xf32>
    %7 = vector.shape_cast %6 : vector<1x16x16xf32> to vector<16x16xf32>
    %cst_5 = arith.constant dense<0.000000e+00> : vector<16x32xf32>
    %8 = tpu.matmul %7, %5, %cst_5 {dimension_numbers = #tpu.dot_dimension_numbers<[1], [0], [0], [1], [0, 0, 1, 1], [], []>} : vector<16x16xf32>, vector<16x32xf32>, vector<16x32xf32> -> vector<16x32xf32>
    %cst_6 = arith.constant dense<0.000000e+00> : vector<32x32xf32>
    %9 = tpu.matmul %5, %8, %cst_6 {dimension_numbers = #tpu.dot_dimension_numbers<[0], [0], [1], [1], [0, 1, 1, 1], [], []>} : vector<16x32xf32>, vector<16x32xf32>, vector<32x32xf32> -> vector<32x32xf32>
    %10 = arith.addf %4, %9 : vector<32x32xf32>
    %11 = vector.extract_strided_slice %0 {offsets = [16, 0], sizes = [16, 32], strides = [1, 1]} : vector<64x32xf32> to vector<16x32xf32>
    %12 = vector.extract_strided_slice %3 {offsets = [1, 0, 0], sizes = [1, 16, 16], strides = [1, 1, 1]} : vector<4x16x16xf32> to vector<1x16x16xf32>
    %13 = vector.shape_cast %12 : vector<1x16x16xf32> to vector<16x16xf32>
    %cst_7 = arith.constant dense<0.000000e+00> : vector<16x32xf32>
    %14 = tpu.matmul %13, %11, %cst_7 {dimension_numbers = #tpu.dot_dimension_numbers<[1], [0], [0], [1], [0, 0, 1, 1], [], []>} : vector<16x16xf32>, vector<16x32xf32>, vector<16x32xf32> -> vector<16x32xf32>
    %cst_8 = arith.constant dense<0.000000e+00> : vector<32x32xf32>
    %15 = tpu.matmul %11, %14, %cst_8 {dimension_numbers = #tpu.dot_dimension_numbers<[0], [0], [1], [1], [0, 1, 1, 1], [], []>} : vector<16x32xf32>, vector<16x32xf32>, vector<32x32xf32> -> vector<32x32xf32>
    %16 = arith.addf %10, %15 : vector<32x32xf32>
    %17 = vector.extract_strided_slice %0 {offsets = [32, 0], sizes = [16, 32], strides = [1, 1]} : vector<64x32xf32> to vector<16x32xf32>
    %18 = vector.extract_strided_slice %3 {offsets = [2, 0, 0], sizes = [1, 16, 16], strides = [1, 1, 1]} : vector<4x16x16xf32> to vector<1x16x16xf32>
    %19 = vector.shape_cast %18 : vector<1x16x16xf32> to vector<16x16xf32>
    %cst_9 = arith.constant dense<0.000000e+00> : vector<16x32xf32>
    %20 = tpu.matmul %19, %17, %cst_9 {dimension_numbers = #tpu.dot_dimension_numbers<[1], [0], [0], [1], [0, 0, 1, 1], [], []>} : vector<16x16xf32>, vector<16x32xf32>, vector<16x32xf32> -> vector<16x32xf32>
    %cst_10 = arith.constant dense<0.000000e+00> : vector<32x32xf32>
    %21 = tpu.matmul %17, %20, %cst_10 {dimension_numbers = #tpu.dot_dimension_numbers<[0], [0], [1], [1], [0, 1, 1, 1], [], []>} : vector<16x32xf32>, vector<16x32xf32>, vector<32x32xf32> -> vector<32x32xf32>
    %22 = arith.addf %16, %21 : vector<32x32xf32>
    %23 = vector.extract_strided_slice %0 {offsets = [48, 0], sizes = [16, 32], strides = [1, 1]} : vector<64x32xf32> to vector<16x32xf32>
    %24 = vector.extract_strided_slice %3 {offsets = [3, 0, 0], sizes = [1, 16, 16], strides = [1, 1, 1]} : vector<4x16x16xf32> to vector<1x16x16xf32>
    %25 = vector.shape_cast %24 : vector<1x16x16xf32> to vector<16x16xf32>
    %cst_11 = arith.constant dense<0.000000e+00> : vector<16x32xf32>
    %26 = tpu.matmul %25, %23, %cst_11 {dimension_numbers = #tpu.dot_dimension_numbers<[1], [0], [0], [1], [0, 0, 1, 1], [], []>} : vector<16x16xf32>, vector<16x32xf32>, vector<16x32xf32> -> vector<16x32xf32>
    %cst_12 = arith.constant dense<0.000000e+00> : vector<32x32xf32>
    %27 = tpu.matmul %23, %26, %cst_12 {dimension_numbers = #tpu.dot_dimension_numbers<[0], [0], [1], [1], [0, 1, 1, 1], [], []>} : vector<16x32xf32>, vector<16x32xf32>, vector<32x32xf32> -> vector<32x32xf32>
    %28 = arith.addf %22, %27 : vector<32x32xf32>
    %cst_13 = arith.constant 0.000000e+00 : f32
    %29 = vector.broadcast %cst_13 : f32 to vector<8x32xf32>
    %30 = vector.extract_strided_slice %28 {offsets = [0, 0], sizes = [8, 32], strides = [1, 1]} : vector<32x32xf32> to vector<8x32xf32>
    %c0_i32 = arith.constant 0 : i32
    %31 = vector.broadcast %c0_i32 : i32 to vector<8x32xi32>
    %32 = arith.cmpi sge, %1, %31 : vector<8x32xi32>
    %c8_i32 = arith.constant 8 : i32
    %33 = vector.broadcast %c8_i32 : i32 to vector<8x32xi32>
    %34 = arith.cmpi slt, %1, %33 : vector<8x32xi32>
    %35 = arith.andi %32, %34 : vector<8x32xi1>
    %36 = arith.select %35, %30, %29 : vector<8x32xi1>, vector<8x32xf32>
    %37 = vector.extract_strided_slice %28 {offsets = [8, 0], sizes = [8, 32], strides = [1, 1]} : vector<32x32xf32> to vector<8x32xf32>
    %c8_i32_14 = arith.constant 8 : i32
    %38 = vector.broadcast %c8_i32_14 : i32 to vector<8x32xi32>
    %39 = arith.cmpi sge, %1, %38 : vector<8x32xi32>
    %c16_i32 = arith.constant 16 : i32
    %40 = vector.broadcast %c16_i32 : i32 to vector<8x32xi32>
    %41 = arith.cmpi slt, %1, %40 : vector<8x32xi32>
    %42 = arith.andi %39, %41 : vector<8x32xi1>
    %43 = arith.select %42, %37, %36 : vector<8x32xi1>, vector<8x32xf32>
    %44 = vector.extract_strided_slice %28 {offsets = [16, 0], sizes = [8, 32], strides = [1, 1]} : vector<32x32xf32> to vector<8x32xf32>
    %c16_i32_15 = arith.constant 16 : i32
    %45 = vector.broadcast %c16_i32_15 : i32 to vector<8x32xi32>
    %46 = arith.cmpi sge, %1, %45 : vector<8x32xi32>
    %c24_i32 = arith.constant 24 : i32
    %47 = vector.broadcast %c24_i32 : i32 to vector<8x32xi32>
    %48 = arith.cmpi slt, %1, %47 : vector<8x32xi32>
    %49 = arith.andi %46, %48 : vector<8x32xi1>
    %50 = arith.select %49, %44, %43 : vector<8x32xi1>, vector<8x32xf32>
    %51 = vector.extract_strided_slice %28 {offsets = [24, 0], sizes = [8, 32], strides = [1, 1]} : vector<32x32xf32> to vector<8x32xf32>
    %c24_i32_16 = arith.constant 24 : i32
    %52 = vector.broadcast %c24_i32_16 : i32 to vector<8x32xi32>
    %53 = arith.cmpi sge, %1, %52 : vector<8x32xi32>
    %c32_i32 = arith.constant 32 : i32
    %54 = vector.broadcast %c32_i32 : i32 to vector<8x32xi32>
    %55 = arith.cmpi slt, %1, %54 : vector<8x32xi32>
    %56 = arith.andi %53, %55 : vector<8x32xi1>
    %57 = arith.select %56, %51, %50 : vector<8x32xi1>, vector<8x32xf32>
    %c0_17 = arith.constant 0 : index
    %c0_18 = arith.constant 0 : index
    %c0_19 = arith.constant 0 : index
    %58 = vector.load %arg3[%c0_17, %c0_18, %c0_19] : memref<1x8x32xf32, #tpu.memory_space<vmem>>, vector<1x8x32xf32>
    %59 = vector.shape_cast %58 : vector<1x8x32xf32> to vector<8x32xf32>
    %60 = vector.shape_cast %57 : vector<8x32xf32> to vector<1x8x32xf32>
    tpu.vector_store %arg3[%c0_17, %c0_18, %c0_19], %60 {strides = array<i32>} : memref<1x8x32xf32, #tpu.memory_space<vmem>>, vector<1x8x32xf32>,
    return
  }
  func.func @transform_0(%arg0: i32) -> (i32, i32, i32, i32) {
    %c0_i32 = arith.constant 0 : i32
    %c0_i32_0 = arith.constant 0 : i32
    %c0_i32_1 = arith.constant 0 : i32
    %c0_i32_2 = arith.constant 0 : i32
    return %arg0, %c0_i32, %c0_i32_0, %c0_i32_1 : i32, i32, i32, i32
  }
  func.func @transform_1(%arg0: i32) -> (i32, i32) {
    %c0_i32 = arith.constant 0 : i32
    %c0_i32_0 = arith.constant 0 : i32
    %c0_i32_1 = arith.constant 0 : i32
    return %c0_i32, %c0_i32_0 : i32, i32
  }
  func.func @transform_2(%arg0: i32) -> (i32, i32, i32) {
    %c0_i32 = arith.constant 0 : i32
    %c0_i32_0 = arith.constant 0 : i32
    %c0_i32_1 = arith.constant 0 : i32
    return %arg0, %c0_i32, %c0_i32_0 : i32, i32, i32
  }
}

module attributes {stable_mosaic.version = 11 : i64} {
  func.func @_reeig_kernel(%arg0: i32, %arg1: memref<1x4x8x8xf32, #tpu.memory_space<vmem>>, %arg2: memref<1x4x1x8xf32, #tpu.memory_space<vmem>>, %arg3: memref<1x4x8x8xf32, #tpu.memory_space<vmem>>) attributes {dimension_semantics = [#tpu.dimension_semantics<parallel>], iteration_bounds = array<i64: 2>, scalar_prefetch = 0 : i64, scratch_operands = 0 : i64, tpu.core_type = #tpu.core_type<tc>, window_params = [{transform_indices = @transform_0, window_bounds = array<i64: 1, 4, 8, 8>}, {transform_indices = @transform_1, window_bounds = array<i64: 1, 4, 1, 8>}, {transform_indices = @transform_2, window_bounds = array<i64: 1, 4, 8, 8>}]} {
    %c0 = arith.constant 0 : index
    %c0_0 = arith.constant 0 : index
    %c0_1 = arith.constant 0 : index
    %c0_2 = arith.constant 0 : index
    %0 = vector.load %arg1[%c0, %c0_0, %c0_1, %c0_2] : memref<1x4x8x8xf32, #tpu.memory_space<vmem>>, vector<1x4x8x8xf32>
    %1 = vector.shape_cast %0 : vector<1x4x8x8xf32> to vector<4x8x8xf32>
    %c0_3 = arith.constant 0 : index
    %c0_4 = arith.constant 0 : index
    %c0_5 = arith.constant 0 : index
    %c0_6 = arith.constant 0 : index
    %2 = vector.load %arg2[%c0_3, %c0_4, %c0_5, %c0_6] : memref<1x4x1x8xf32, #tpu.memory_space<vmem>>, vector<1x4x1x8xf32>
    %3 = vector.shape_cast %2 : vector<1x4x1x8xf32> to vector<4x1x8xf32>
    %cst = arith.constant 9.99999974E-5 : f32
    %4 = vector.broadcast %cst : f32 to vector<4x1x8xf32>
    %5 = arith.maximumf %3, %4 : vector<4x1x8xf32>
    %6 = vector.broadcast %5 : vector<4x1x8xf32> to vector<4x8x8xf32>
    %7 = arith.mulf %1, %6 : vector<4x8x8xf32>
    "tpu.trace_start"() <{level = 10 : i32, message = "cik,cjk->cij"}> : () -> ()
    %cst_7 = arith.constant dense<0.000000e+00> : vector<4x8x8xf32>
    %8 = tpu.matmul %7, %1, %cst_7 {dimension_numbers = #tpu.dot_dimension_numbers<[2], [2], [1], [1], [0, 0, 0, 1, 1, 1], [0], [0]>} : vector<4x8x8xf32>, vector<4x8x8xf32>, vector<4x8x8xf32> -> vector<4x8x8xf32>
    "tpu.trace_stop"() : () -> ()
    %c0_8 = arith.constant 0 : index
    %c0_9 = arith.constant 0 : index
    %c0_10 = arith.constant 0 : index
    %c0_11 = arith.constant 0 : index
    %9 = vector.load %arg3[%c0_8, %c0_9, %c0_10, %c0_11] : memref<1x4x8x8xf32, #tpu.memory_space<vmem>>, vector<1x4x8x8xf32>
    %10 = vector.shape_cast %9 : vector<1x4x8x8xf32> to vector<4x8x8xf32>
    %11 = vector.shape_cast %8 : vector<4x8x8xf32> to vector<1x4x8x8xf32>
    tpu.vector_store %arg3[%c0_8, %c0_9, %c0_10, %c0_11], %11 {strides = array<i32>} : memref<1x4x8x8xf32, #tpu.memory_space<vmem>>, vector<1x4x8x8xf32>,
    return
  }
  func.func @transform_0(%arg0: i32) -> (i32, i32, i32, i32) {
    %c0_i32 = arith.constant 0 : i32
    %c0_i32_0 = arith.constant 0 : i32
    %c0_i32_1 = arith.constant 0 : i32
    %c0_i32_2 = arith.constant 0 : i32
    return %arg0, %c0_i32, %c0_i32_0, %c0_i32_1 : i32, i32, i32, i32
  }
  func.func @transform_1(%arg0: i32) -> (i32, i32, i32, i32) {
    %c0_i32 = arith.constant 0 : i32
    %c0_i32_0 = arith.constant 0 : i32
    %c0_i32_1 = arith.constant 0 : i32
    %c0_i32_2 = arith.constant 0 : i32
    return %arg0, %c0_i32, %c0_i32_0, %c0_i32_1 : i32, i32, i32, i32
  }
  func.func @transform_2(%arg0: i32) -> (i32, i32, i32, i32) {
    %c0_i32 = arith.constant 0 : i32
    %c0_i32_0 = arith.constant 0 : i32
    %c0_i32_1 = arith.constant 0 : i32
    %c0_i32_2 = arith.constant 0 : i32
    return %arg0, %c0_i32, %c0_i32_0, %c0_i32_1 : i32, i32, i32, i32
  }
}

</mosaic_0001>

<llo_original>
// kernel: custom-call.2
$region0: #{custom-call.2}
  %s0 = inlined_call_operand.vmem [shape: f32[2,4,4,4], index: 0, kind: input, shape index: {}]
  %s1 = inlined_call_operand.vmem [shape: f32[2,4,4,4], index: 1, kind: input, shape index: {}]
  %s2 = inlined_call_operand.vmem [shape: f32[2,4,4,4], index: 2, kind: input, shape index: {}]
  %s3 = inlined_call_operand.vmem [shape: f32[2,4,4,4], index: 3, kind: input, shape index: {}]
  %s4 = inlined_call_operand.vmem [shape: f32[2,4,4], index: 4, kind: output, shape index: {0}]
  %s5 = inlined_call_operand.vmem [shape: f32[2,4,4], index: 5, kind: output, shape index: {1}]
  %s6 = inlined_call_operand.vmem [shape: f32[2,4,4,4], index: 6, kind: output, shape index: {2}]
  %s7 = inlined_call_operand.vmem [shape: f32[2,4,4,4], index: 7, kind: output, shape index: {3}]
  %s8 = inlined_call_operand.vmem [shape: f32[2,4,4,4], index: 8, kind: output, shape index: {4}]
  %s9 = inlined_call_operand.vmem [shape: f32[2,4,4,4], index: 9, kind: output, shape index: {5}]
  %10 = xla_tuple %s4, %s5, %s6, %s7, %s8, %s9
  $region1: #{custom-call.2} parent=0
    #allocation0 [shape = 'u8[4096]{0}', space=vmem, size = 0x1000, scoped, tag = 'operand span for operand 0']
    #allocation1 [shape = 'u8[4096]{0}', space=vmem, size = 0x1000, scoped, tag = 'packed  for operand 0']
    #allocation2 [shape = 'u8[4096]{0}', space=vmem, size = 0x1000, scoped, tag = 'operand span for operand 1']
    #allocation3 [shape = 'u8[4096]{0}', space=vmem, size = 0x1000, scoped, tag = 'packed  for operand 1']
    #allocation4 [shape = 'u8[4096]{0}', space=vmem, size = 0x1000, scoped, tag = 'operand span for operand 2']
    #allocation5 [shape = 'u8[4096]{0}', space=vmem, size = 0x1000, scoped, tag = 'packed  for operand 2']
    #allocation6 [shape = 'u8[4096]{0}', space=vmem, size = 0x1000, scoped, tag = 'operand span for operand 3']
    #allocation7 [shape = 'u8[4096]{0}', space=vmem, size = 0x1000, scoped, tag = 'packed  for operand 3']
    #allocation8 [shape = 'u8[4096]{0}', space=vmem, size = 0x1000, scoped, tag = 'operand span for operand 4']
    #allocation9 [shape = 'u8[4096]{0}', space=vmem, size = 0x1000, scoped, tag = 'packed  for operand 4']
    #allocation10 [shape = 'u8[4096]{0}', space=vmem, size = 0x1000, scoped, tag = 'operand span for operand 5']
    #allocation11 [shape = 'u8[4096]{0}', space=vmem, size = 0x1000, scoped, tag = 'packed  for operand 5']
    #allocation12 [shape = 'u8[4096]{0}', space=vmem, size = 0x1000, scoped, tag = 'operand span for operand 6']
    #allocation13 [shape = 'u8[4096]{0}', space=vmem, size = 0x1000, scoped, tag = 'packed  for operand 6']
    #allocation14 [shape = 'u8[4096]{0}', space=vmem, size = 0x1000, scoped, tag = 'operand span for operand 7']
    #allocation15 [shape = 'u8[4096]{0}', space=vmem, size = 0x1000, scoped, tag = 'packed  for operand 7']
    #allocation16 [shape = 'u8[4096]{0}', space=vmem, size = 0x1000, scoped, tag = 'operand span for operand 8']
    #allocation17 [shape = 'u8[4096]{0}', space=vmem, size = 0x1000, scoped, tag = 'packed  for operand 8']
    #allocation18 [shape = 'u8[4096]{0}', space=vmem, size = 0x1000, scoped, tag = 'operand span for operand 9']
    #allocation19 [shape = 'u8[4096]{0}', space=vmem, size = 0x1000, scoped, tag = 'packed  for operand 9']
    loop: start=0, step=1, limit=10
    $region2: #{custom-call.2} parent=1 // loop_pre_header
      _
    $region3: #{custom-call.2} parent=1 // loop_header
      %s12 = sphi 0, %s16
      %p13 = scmp.ge.s32.totalorder %s12, 10
      %s19 = sphi 0, %s31
      %s20 = sphi 0, %s27
      %s21 = sphi 0, %s19
      %s22 = sphi 0, %s20
      %s23 = sphi 0, %s21
      %s24 = sphi 0, %s22
      %s38 = sphi 0, %s40
      %s41 = sphi 0, %s38
      %s42 = sphi 0, %s41
      %s58 = sphi 0, %s42
      %s68 = sphi 0, %s70
      %s71 = sphi 0, %s68
      %s72 = sphi 0, %s71
      %s88 = sphi 0, %s72
    $region4: #{custom-call.2} parent=1 // loop_header_branch
      %15 = sbr.rel (%p13) target = $region8
    $region5: #{custom-call.2} parent=1 // loop_body
      %s17 = ssub.s32 %s12, 1
      %s18 = ssub.s32 %s12, 2
      %s25 = sadd.s32 1, %s20
      %p26 = scmp.ge.s32.totalorder %s25, 4
      %s27 = scalar_select %p26, 0, %s25
      %s28 = sadd.s32 1, %s19
      %s29 = scalar_select %p26, %s28, %s19
      %p30 = scmp.ge.s32.totalorder %s29, 2
      %s31 = scalar_select %p30, 0, %s29
      %s32 = sshrl.u32 %s20, 3
      %s33 = sshrl.u32 %s27, 3
      %s34 = ssub.s32 %s19, %s31
      %s35 = ssub.s32 %s32, %s33
      %s36 = sor.u32 %s34, %s35
      %p37 = scmp.eq.s32.totalorder %s36, 0
      %s39 = sadd.s32 %s38, 1
      %s40 = scalar_select %p37, %s38, %s39
      %p43 = pneg %p37
      %p44 = scmp.eq.s32.totalorder %s12, 7
      %p45 = por %p43, %p44
      %p46 = scmp.ne.s32.totalorder %s38, %s41
      %p47 = scmp.eq.s32.totalorder %s12, 0
      %p48 = por %p46, %p47
      %p49 = scmp.ne.s32.totalorder %s38, %s41
      %p50 = scmp.eq.s32.totalorder %s17, 7
      %p51 = por %p49, %p50
      %p52 = scmp.ne.s32.totalorder %s41, %s42
      %p53 = scmp.eq.s32.totalorder %s17, 0
      %p54 = por %p52, %p53
      %p55 = scmp.ne.s32.totalorder %s41, %s42
      %p56 = scmp.eq.s32.totalorder %s18, 7
      %p57 = por %p55, %p56
      %p59 = scmp.ne.s32.totalorder %s42, %s58
      %p60 = scmp.eq.s32.totalorder %s18, 0
      %p61 = por %p59, %p60
      %s62 = sshrl.u32 %s20, 3
      %s63 = sshrl.u32 %s27, 3
      %s64 = ssub.s32 %s19, %s31
      %s65 = ssub.s32 %s62, %s63
      %s66 = sor.u32 %s64, %s65
      %p67 = scmp.eq.s32.totalorder %s66, 0
      %s69 = sadd.s32 %s68, 1
      %s70 = scalar_select %p67, %s68, %s69
      %p73 = pneg %p67
      %p74 = scmp.eq.s32.totalorder %s12, 7
      %p75 = por %p73, %p74
      %p76 = scmp.ne.s32.totalorder %s68, %s71
      %p77 = scmp.eq.s32.totalorder %s12, 0
      %p78 = por %p76, %p77
      %p79 = scmp.ne.s32.totalorder %s68, %s71
      %p80 = scmp.eq.s32.totalorder %s17, 7
      %p81 = por %p79, %p80
      %p82 = scmp.ne.s32.totalorder %s71, %s72
      %p83 = scmp.eq.s32.totalorder %s17, 0
      %p84 = por %p82, %p83
      %p85 = scmp.ne.s32.totalorder %s71, %s72
      %p86 = scmp.eq.s32.totalorder %s18, 7
      %p87 = por %p85, %p86
      %p89 = scmp.ne.s32.totalorder %s72, %s88
      %p90 = scmp.eq.s32.totalorder %s18, 0
      %p91 = por %p89, %p90
      %p92 = scmp.le.s32.totalorder 1, %s12
      %p93 = scmp.lt.s32.totalorder %s12, 9
      %p94 = pnand %p92, %p93
      %p95 = pneg %p94
      // Predicated region
      $region9: #{custom-call.2} parent=5 // pred_check
        _
      $region10: #{custom-call.2} parent=5 // pred_check_branch
        %97 = sbr.rel (%p94) target = $region12
      $region11: #{custom-call.2} parent=5 // pred_region
        %s98 = ssub.s32 %s12, 1
      $region12: #{custom-call.2} parent=5 // pred_fallthru
        _
      %p99 = scmp.lt.s32.totalorder %s12, 8
      // Predicated region
      $region13: #{custom-call.2} parent=5 // pred_check
        %p100 = pneg %p99
      $region14: #{custom-call.2} parent=5 // pred_check_branch
        %102 = sbr.rel (%p100) target = $region16
      $region15: #{custom-call.2} parent=5 // pred_region
        %s103 = sand.u32 %s12, 1
        %s104 = sand.u32 %s12, 1
        %s105 = smul.addr %s104, 4
        %s106 = scalar_lea.vmem [#allocation1], %s105
        %s107 = smul.addr %s19, 4
        %s108 = sadd.s32 %s20, %s107
        %s109 = smul.addr %s108, 4
        %s110 = scalar_lea.vmem %s0, %s109
        // Predicated region
        $region17: #{custom-call.2} parent=15 // pred_check
          _
        $region18: #{custom-call.2} parent=15 // pred_check_branch
          %112 = sbr.rel (0) target = $region20
        $region19: #{custom-call.2} parent=15 // pred_region
          // Predicated region
          $region21: #{custom-call.2} parent=19 // pred_check
            _
          $region22: #{custom-call.2} parent=19 // pred_check_branch
            %114 = sbr.rel target = $region24
          $region23: #{custom-call.2} parent=19 // pred_region
            // Predicated region
            $region36: #{custom-call.2} parent=23 // pred_check
              _
            $region37: #{custom-call.2} parent=23 // pred_check_branch
              %130 = sbr.rel (0) target = $region39
            $region38: #{custom-call.2} parent=23 // pred_region
              %s132 = ssub.s32 16, 1
              loop: start=0, step=1, limit=1
              $region40: #{custom-call.2} parent=38 // loop_pre_header
                _
              $region41: #{custom-call.2} parent=38 // loop_header
                %s134 = sphi 0, %s138
                %p135 = scmp.ge.s32.totalorder %s134, 1
                %s139 = sphi %s110, %s110
                %s140 = sphi %s106, %s106
              $region42: #{custom-call.2} parent=38 // loop_header_branch
                %137 = sbr.rel (%p135) target = $region46
              $region43: #{custom-call.2} parent=38 // loop_body
                %v141 = vld [vmem:[%s139] sm:%s132]
                %142 = vst [vmem:[%s140] sm:%s132] %v141
              $region44: #{custom-call.2} parent=38 // loop_footer
                %s138 = sadd.s32 1, %s134
              $region45: #{custom-call.2} parent=38 // loop_footer_branch
                %133 = sbr.rel target = $region41
              $region46: #{custom-call.2} parent=38 // loop_exit
                _
            $region39: #{custom-call.2} parent=23 // pred_fallthru
              _
          $region24: #{custom-call.2} parent=19 // pred_fallthru
            _
          // Predicated region
          $region25: #{custom-call.2} parent=19 // pred_check
            _
          $region26: #{custom-call.2} parent=19 // pred_check_branch
            %116 = sbr.rel (0) target = $region28
          $region27: #{custom-call.2} parent=19 // pred_region
            %s118 = ssub.s32 16, 1
            loop: start=0, step=1, limit=1
            $region29: #{custom-call.2} parent=27 // loop_pre_header
              _
            $region30: #{custom-call.2} parent=27 // loop_header
              %s120 = sphi 0, %s124
              %p121 = scmp.ge.s32.totalorder %s120, 1
              %s125 = sphi %s110, %s110
              %s126 = sphi %s106, %s106
            $region31: #{custom-call.2} parent=27 // loop_header_branch
              %123 = sbr.rel (%p121) target = $region35
            $region32: #{custom-call.2} parent=27 // loop_body
              %v127 = vld [vmem:[%s125] sm:%s118]
              %128 = vst [vmem:[%s126] sm:%s118] %v127
            $region33: #{custom-call.2} parent=27 // loop_footer
              %s124 = sadd.s32 1, %s120
            $region34: #{custom-call.2} parent=27 // loop_footer_branch
              %119 = sbr.rel target = $region30
            $region35: #{custom-call.2} parent=27 // loop_exit
              _
          $region28: #{custom-call.2} parent=19 // pred_fallthru
            _
        $region20: #{custom-call.2} parent=15 // pred_fallthru
          _
        %143 = vnop
        %s144 = sand.u32 %s12, 1
        %s145 = sand.u32 %s12, 1
        %s146 = smul.addr %s145, 4
        %s147 = scalar_lea.vmem [#allocation3], %s146
        %s148 = smul.addr %s19, 4
        %s149 = sadd.s32 %s20, %s148
        %s150 = smul.addr %s149, 4
        %s151 = scalar_lea.vmem %s1, %s150
        // Predicated region
        $region47: #{custom-call.2} parent=15 // pred_check
          _
        $region48: #{custom-call.2} parent=15 // pred_check_branch
          %153 = sbr.rel (0) target = $region50
        $region49: #{custom-call.2} parent=15 // pred_region
          // Predicated region
          $region51: #{custom-call.2} parent=49 // pred_check
            _
          $region52: #{custom-call.2} parent=49 // pred_check_branch
            %155 = sbr.rel target = $region54
          $region53: #{custom-call.2} parent=49 // pred_region
            // Predicated region
            $region66: #{custom-call.2} parent=53 // pred_check
              _
            $region67: #{custom-call.2} parent=53 // pred_check_branch
              %171 = sbr.rel (0) target = $region69
            $region68: #{custom-call.2} parent=53 // pred_region
              %s173 = ssub.s32 16, 1
              loop: start=0, step=1, limit=1
              $region70: #{custom-call.2} parent=68 // loop_pre_header
                _
              $region71: #{custom-call.2} parent=68 // loop_header
                %s175 = sphi 0, %s179
                %p176 = scmp.ge.s32.totalorder %s175, 1
                %s180 = sphi %s151, %s151
                %s181 = sphi %s147, %s147
              $region72: #{custom-call.2} parent=68 // loop_header_branch
                %178 = sbr.rel (%p176) target = $region76
              $region73: #{custom-call.2} parent=68 // loop_body
                %v182 = vld [vmem:[%s180] sm:%s173]
                %183 = vst [vmem:[%s181] sm:%s173] %v182
              $region74: #{custom-call.2} parent=68 // loop_footer
                %s179 = sadd.s32 1, %s175
              $region75: #{custom-call.2} parent=68 // loop_footer_branch
                %174 = sbr.rel target = $region71
              $region76: #{custom-call.2} parent=68 // loop_exit
                _
            $region69: #{custom-call.2} parent=53 // pred_fallthru
              _
          $region54: #{custom-call.2} parent=49 // pred_fallthru
            _
          // Predicated region
          $region55: #{custom-call.2} parent=49 // pred_check
            _
          $region56: #{custom-call.2} parent=49 // pred_check_branch
            %157 = sbr.rel (0) target = $region58
          $region57: #{custom-call.2} parent=49 // pred_region
            %s159 = ssub.s32 16, 1
            loop: start=0, step=1, limit=1
            $region59: #{custom-call.2} parent=57 // loop_pre_header
              _
            $region60: #{custom-call.2} parent=57 // loop_header
              %s161 = sphi 0, %s165
              %p162 = scmp.ge.s32.totalorder %s161, 1
              %s166 = sphi %s151, %s151
              %s167 = sphi %s147, %s147
            $region61: #{custom-call.2} parent=57 // loop_header_branch
              %164 = sbr.rel (%p162) target = $region65
            $region62: #{custom-call.2} parent=57 // loop_body
              %v168 = vld [vmem:[%s166] sm:%s159]
              %169 = vst [vmem:[%s167] sm:%s159] %v168
            $region63: #{custom-call.2} parent=57 // loop_footer
              %s165 = sadd.s32 1, %s161
            $region64: #{custom-call.2} parent=57 // loop_footer_branch
              %160 = sbr.rel target = $region60
            $region65: #{custom-call.2} parent=57 // loop_exit
              _
          $region58: #{custom-call.2} parent=49 // pred_fallthru
            _
        $region50: #{custom-call.2} parent=15 // pred_fallthru
          _
        %184 = vnop
        %s185 = sand.u32 %s12, 1
        %s186 = sand.u32 %s12, 1
        %s187 = smul.addr %s186, 4
        %s188 = scalar_lea.vmem [#allocation5], %s187
        %s189 = smul.addr %s19, 4
        %s190 = sadd.s32 %s20, %s189
        %s191 = smul.addr %s190, 4
        %s192 = scalar_lea.vmem %s2, %s191
        // Predicated region
        $region77: #{custom-call.2} parent=15 // pred_check
          _
        $region78: #{custom-call.2} parent=15 // pred_check_branch
          %194 = sbr.rel (0) target = $region80
        $region79: #{custom-call.2} parent=15 // pred_region
          // Predicated region
          $region81: #{custom-call.2} parent=79 // pred_check
            _
          $region82: #{custom-call.2} parent=79 // pred_check_branch
            %196 = sbr.rel target = $region84
          $region83: #{custom-call.2} parent=79 // pred_region
            // Predicated region
            $region96: #{custom-call.2} parent=83 // pred_check
              _
            $region97: #{custom-call.2} parent=83 // pred_check_branch
              %212 = sbr.rel (0) target = $region99
            $region98: #{custom-call.2} parent=83 // pred_region
              %s214 = ssub.s32 16, 1
              loop: start=0, step=1, limit=1
              $region100: #{custom-call.2} parent=98 // loop_pre_header
                _
              $region101: #{custom-call.2} parent=98 // loop_header
                %s216 = sphi 0, %s220
                %p217 = scmp.ge.s32.totalorder %s216, 1
                %s221 = sphi %s192, %s192
                %s222 = sphi %s188, %s188
              $region102: #{custom-call.2} parent=98 // loop_header_branch
                %219 = sbr.rel (%p217) target = $region106
              $region103: #{custom-call.2} parent=98 // loop_body
                %v223 = vld [vmem:[%s221] sm:%s214]
                %224 = vst [vmem:[%s222] sm:%s214] %v223
              $region104: #{custom-call.2} parent=98 // loop_footer
                %s220 = sadd.s32 1, %s216
              $region105: #{custom-call.2} parent=98 // loop_footer_branch
                %215 = sbr.rel target = $region101
              $region106: #{custom-call.2} parent=98 // loop_exit
                _
            $region99: #{custom-call.2} parent=83 // pred_fallthru
              _
          $region84: #{custom-call.2} parent=79 // pred_fallthru
            _
          // Predicated region
          $region85: #{custom-call.2} parent=79 // pred_check
            _
          $region86: #{custom-call.2} parent=79 // pred_check_branch
            %198 = sbr.rel (0) target = $region88
          $region87: #{custom-call.2} parent=79 // pred_region
            %s200 = ssub.s32 16, 1
            loop: start=0, step=1, limit=1
            $region89: #{custom-call.2} parent=87 // loop_pre_header
              _
            $region90: #{custom-call.2} parent=87 // loop_header
              %s202 = sphi 0, %s206
              %p203 = scmp.ge.s32.totalorder %s202, 1
              %s207 = sphi %s192, %s192
              %s208 = sphi %s188, %s188
            $region91: #{custom-call.2} parent=87 // loop_header_branch
              %205 = sbr.rel (%p203) target = $region95
            $region92: #{custom-call.2} parent=87 // loop_body
              %v209 = vld [vmem:[%s207] sm:%s200]
              %210 = vst [vmem:[%s208] sm:%s200] %v209
            $region93: #{custom-call.2} parent=87 // loop_footer
              %s206 = sadd.s32 1, %s202
            $region94: #{custom-call.2} parent=87 // loop_footer_branch
              %201 = sbr.rel target = $region90
            $region95: #{custom-call.2} parent=87 // loop_exit
              _
          $region88: #{custom-call.2} parent=79 // pred_fallthru
            _
        $region80: #{custom-call.2} parent=15 // pred_fallthru
          _
        %225 = vnop
        %s226 = sand.u32 %s12, 1
        %s227 = sand.u32 %s12, 1
        %s228 = smul.addr %s227, 4
        %s229 = scalar_lea.vmem [#allocation7], %s228
        %s230 = smul.addr %s19, 4
        %s231 = sadd.s32 %s20, %s230
        %s232 = smul.addr %s231, 4
        %s233 = scalar_lea.vmem %s3, %s232
        // Predicated region
        $region107: #{custom-call.2} parent=15 // pred_check
          _
        $region108: #{custom-call.2} parent=15 // pred_check_branch
          %235 = sbr.rel (0) target = $region110
        $region109: #{custom-call.2} parent=15 // pred_region
          // Predicated region
          $region111: #{custom-call.2} parent=109 // pred_check
            _
          $region112: #{custom-call.2} parent=109 // pred_check_branch
            %237 = sbr.rel target = $region114
          $region113: #{custom-call.2} parent=109 // pred_region
            // Predicated region
            $region126: #{custom-call.2} parent=113 // pred_check
              _
            $region127: #{custom-call.2} parent=113 // pred_check_branch
              %253 = sbr.rel (0) target = $region129
            $region128: #{custom-call.2} parent=113 // pred_region
              %s255 = ssub.s32 16, 1
              loop: start=0, step=1, limit=1
              $region130: #{custom-call.2} parent=128 // loop_pre_header
                _
              $region131: #{custom-call.2} parent=128 // loop_header
                %s257 = sphi 0, %s261
                %p258 = scmp.ge.s32.totalorder %s257, 1
                %s262 = sphi %s233, %s233
                %s263 = sphi %s229, %s229
              $region132: #{custom-call.2} parent=128 // loop_header_branch
                %260 = sbr.rel (%p258) target = $region136
              $region133: #{custom-call.2} parent=128 // loop_body
                %v264 = vld [vmem:[%s262] sm:%s255]
                %265 = vst [vmem:[%s263] sm:%s255] %v264
              $region134: #{custom-call.2} parent=128 // loop_footer
                %s261 = sadd.s32 1, %s257
              $region135: #{custom-call.2} parent=128 // loop_footer_branch
                %256 = sbr.rel target = $region131
              $region136: #{custom-call.2} parent=128 // loop_exit
                _
            $region129: #{custom-call.2} parent=113 // pred_fallthru
              _
          $region114: #{custom-call.2} parent=109 // pred_fallthru
            _
          // Predicated region
          $region115: #{custom-call.2} parent=109 // pred_check
            _
          $region116: #{custom-call.2} parent=109 // pred_check_branch
            %239 = sbr.rel (0) target = $region118
          $region117: #{custom-call.2} parent=109 // pred_region
            %s241 = ssub.s32 16, 1
            loop: start=0, step=1, limit=1
            $region119: #{custom-call.2} parent=117 // loop_pre_header
              _
            $region120: #{custom-call.2} parent=117 // loop_header
              %s243 = sphi 0, %s247
              %p244 = scmp.ge.s32.totalorder %s243, 1
              %s248 = sphi %s233, %s233
              %s249 = sphi %s229, %s229
            $region121: #{custom-call.2} parent=117 // loop_header_branch
              %246 = sbr.rel (%p244) target = $region125
            $region122: #{custom-call.2} parent=117 // loop_body
              %v250 = vld [vmem:[%s248] sm:%s241]
              %251 = vst [vmem:[%s249] sm:%s241] %v250
            $region123: #{custom-call.2} parent=117 // loop_footer
              %s247 = sadd.s32 1, %s243
            $region124: #{custom-call.2} parent=117 // loop_footer_branch
              %242 = sbr.rel target = $region120
            $region125: #{custom-call.2} parent=117 // loop_exit
              _
          $region118: #{custom-call.2} parent=109 // pred_fallthru
            _
        $region110: #{custom-call.2} parent=15 // pred_fallthru
          _
        %266 = vnop
      $region16: #{custom-call.2} parent=5 // pred_fallthru
        _
      %p267 = scmp.le.s32.totalorder 1, %s12
      %p268 = scmp.lt.s32.totalorder %s12, 9
      %p269 = pnand %p267, %p268
      %p270 = pneg %p269
      // Predicated region
      $region137: #{custom-call.2} parent=5 // pred_check
        _
      $region138: #{custom-call.2} parent=5 // pred_check_branch
        %272 = sbr.rel (%p269) target = $region140
      $region139: #{custom-call.2} parent=5 // pred_region
        #allocation20 [shape = 'f32[4,4]{1,0}', space=vmem, size = 0x1000, scoped, tag = 'a top-left matrix']
        #allocation21 [shape = 'f32[4,4]{1,0}', space=vmem, size = 0x1000, scoped, tag = 'a top-right matrix']
        #allocation22 [shape = 'f32[4,4]{1,0}', space=vmem, size = 0x1000, scoped, tag = 'a bottom-left matrix']
        #allocation23 [shape = 'f32[4,4]{1,0}', space=vmem, size = 0x1000, scoped, tag = 'a bottom-right matrix']
        %s273 = ssub.s32 %s12, 1
        %s274 = sand.u32 %s17, 1
        %s275 = sand.u32 %s17, 1
        %s276 = smul.addr %s275, 4
        %s277 = scalar_lea.vmem [#allocation1], %s276
        %s278 = sand.u32 %s17, 1
        %s279 = sand.u32 %s17, 1
        %s280 = smul.addr %s279, 4
        %s281 = scalar_lea.vmem [#allocation3], %s280
        %s282 = sand.u32 %s17, 1
        %s283 = sand.u32 %s17, 1
        %s284 = smul.addr %s283, 4
        %s285 = scalar_lea.vmem [#allocation5], %s284
        %s286 = sand.u32 %s17, 1
        %s287 = sand.u32 %s17, 1
        %s288 = smul.addr %s287, 4
        %s289 = scalar_lea.vmem [#allocation7], %s288
        %s290 = sand.u32 %s17, 1
        %s291 = sand.u32 %s17, 1
        %s292 = smul.addr %s291, 4
        %s293 = scalar_lea.vmem [#allocation1], %s292
        %s294 = sand.u32 %s17, 1
        %s295 = sand.u32 %s17, 1
        %s296 = smul.addr %s295, 4
        %s297 = scalar_lea.vmem [#allocation3], %s296
        %s298 = sand.u32 %s17, 1
        %s299 = sand.u32 %s17, 1
        %s300 = smul.addr %s299, 4
        %s301 = scalar_lea.vmem [#allocation5], %s300
        %s302 = sand.u32 %s17, 1
        %s303 = sand.u32 %s17, 1
        %s304 = smul.addr %s303, 4
        %s305 = scalar_lea.vmem [#allocation7], %s304
        %p306 = pneg %p54
        %p307 = pneg %p51
        %s308 = sand.u32 %s41, 1
        %s309 = sand.u32 %s41, 1
        %s310 = smul.addr %s309, 4
        %s311 = scalar_lea.vmem [#allocation9], %s310
        %p312 = pneg %p84
        %p313 = pneg %p81
        %s314 = sand.u32 %s71, 1
        %s315 = sand.u32 %s71, 1
        %s316 = smul.addr %s315, 4
        %s317 = scalar_lea.vmem [#allocation11], %s316
        %s318 = sand.u32 %s17, 1
        %s319 = sand.u32 %s17, 1
        %s320 = smul.addr %s319, 4
        %s321 = scalar_lea.vmem [#allocation13], %s320
        %s322 = sand.u32 %s17, 1
        %s323 = sand.u32 %s17, 1
        %s324 = smul.addr %s323, 4
        %s325 = scalar_lea.vmem [#allocation15], %s324
        %s326 = sand.u32 %s17, 1
        %s327 = sand.u32 %s17, 1
        %s328 = smul.addr %s327, 4
        %s329 = scalar_lea.vmem [#allocation17], %s328
        %s330 = sand.u32 %s17, 1
        %s331 = sand.u32 %s17, 1
        %s332 = smul.addr %s331, 4
        %s333 = scalar_lea.vmem [#allocation19], %s332
        %s335 = sshll.u32 1, 4
        %s336 = ssub.s32 %s335, 1
        %v337 = vld [vmem:[%s293] sm:%s336]
        %338 = vst [vmem:[#allocation0] sm:%s336] %v337
        %s340 = sshll.u32 1, 4
        %s341 = ssub.s32 %s340, 1
        %v342 = vld [vmem:[%s297] sm:%s341]
        %343 = vst [vmem:[#allocation2] sm:%s341] %v342
        %s345 = sshll.u32 1, 4
        %s346 = ssub.s32 %s345, 1
        %v347 = vld [vmem:[%s301] sm:%s346]
        %348 = vst [vmem:[#allocation4] sm:%s346] %v347
        %s350 = sshll.u32 1, 4
        %s351 = ssub.s32 %s350, 1
        %v352 = vld [vmem:[%s305] sm:%s351]
        %353 = vst [vmem:[#allocation6] sm:%s351] %v352
        %s354 = sshrl.u32 %s22, 3
        %s355 = sshrl.u32 %s22, 3
        %s356 = smov [#allocation20]
        %v357 = vld [vmem:[#allocation0] sm:$0xff]
        %358 = vst [vmem:[%s356] sm:$0xff] %v357
        %s359 = smov [#allocation21]
        %v360 = vld [vmem:[#allocation2] sm:$0xff]
        %361 = vst [vmem:[%s359] sm:$0xff] %v360
        %s362 = smov [#allocation22]
        %v363 = vld [vmem:[#allocation4] sm:$0xff]
        %364 = vst [vmem:[%s362] sm:$0xff] %v363
        %s365 = smov [#allocation23]
        %v366 = vld [vmem:[#allocation6] sm:$0xff]
        %367 = vst [vmem:[%s365] sm:$0xff] %v366
        %368 = vst [vmem:[#allocation12] sm:$0xff] 0.0
        %369 = vst [vmem:[#allocation14] sm:$0xff] 0.0
        %370 = vst [vmem:[#allocation16] sm:$0xff] 0.0
        %371 = vst [vmem:[#allocation18] sm:$0xff] 0.0
        %s372 = smov [#allocation12]
        %v373 = vlaneseq
        %v374 = vand.u32 %v373, 127
        %v375 = vmov %v374
        %v376 = vlaneseq
        %v377 = vshrl.u32 %v376, 7
        %v378 = vmov %v377
        %v379 = vld [vmem:[%s372] sm:$0xf]
        %vm382 = vcmp.eq.s32.totalorder %v378, %v375
        %v383 = vsel %vm382, 1.0, %v379
        %384 = vst [vmem:[%s372] sm:$0xf] %v383
        %s385 = smov [#allocation18]
        %v386 = vlaneseq
        %v387 = vand.u32 %v386, 127
        %v388 = vmov %v387
        %v389 = vlaneseq
        %v390 = vshrl.u32 %v389, 7
        %v391 = vmov %v390
        %v392 = vld [vmem:[%s385] sm:$0xf]
        %vm395 = vcmp.eq.s32.totalorder %v391, %v388
        %v396 = vsel %vm395, 1.0, %v392
        %397 = vst [vmem:[%s385] sm:$0xf] %v396
        // While loop
        $region141: #{custom-call.2} parent=139 // loop_pre_header
          _
        $region142: #{custom-call.2} parent=139 // loop_header
          %s399 = sphi 0, %s941
          %v400 = vlaneseq
          %v401 = vand.u32 %v400, 127
          %v402 = vmov %v401
          %v403 = vlaneseq
          %v404 = vshrl.u32 %v403, 7
          %v405 = vmov %v404
          %s406 = smov [#allocation20]
          %v407 = vlaneseq
          %v408 = vand.u32 %v407, 127
          %vm409 = vcmp.ge.s32.totalorder %v408, 0
          %vm410 = vcmp.lt.s32.totalorder %v408, 4
          %vm411 = vmand %vm409, %vm410
          %v412 = vld [vmem:[%s406] sm:$0xf]
          %v413 = vsel %vm411, %v412, 0.0
          %v414 = vmul.f32 %v413, %v413
          %vm417 = vcmp.eq.s32.totalorder %v405, %v402
          %v418 = vsel %vm417, 0.0, %v414
          %v419 = vlaneseq
          %v420 = vand.u32 %v419, 127
          %v421 = vmov %v420
          %v422 = vlaneseq
          %v423 = vshrl.u32 %v422, 7
          %v424 = vmov %v423
          %s425 = smov [#allocation21]
          %v426 = vlaneseq
          %v427 = vand.u32 %v426, 127
          %vm428 = vcmp.ge.s32.totalorder %v427, 0
          %vm429 = vcmp.lt.s32.totalorder %v427, 4
          %vm430 = vmand %vm428, %vm429
          %v431 = vld [vmem:[%s425] sm:$0xf]
          %v432 = vsel %vm430, %v431, 0.0
          %v433 = vmul.f32 %v432, %v432
          %v434 = vadd.f32 %v418, %v433
          %v435 = vadd.f32 %v414, %v433
          %v436 = vlaneseq
          %v437 = vand.u32 %v436, 127
          %v438 = vmov %v437
          %v439 = vlaneseq
          %v440 = vshrl.u32 %v439, 7
          %v441 = vmov %v440
          %s442 = smov [#allocation22]
          %v443 = vlaneseq
          %v444 = vand.u32 %v443, 127
          %vm445 = vcmp.ge.s32.totalorder %v444, 0
          %vm446 = vcmp.lt.s32.totalorder %v444, 4
          %vm447 = vmand %vm445, %vm446
          %v448 = vld [vmem:[%s442] sm:$0xf]
          %v449 = vsel %vm447, %v448, 0.0
          %v450 = vmul.f32 %v449, %v449
          %v451 = vadd.f32 %v434, %v450
          %v452 = vadd.f32 %v435, %v450
          %v453 = vlaneseq
          %v454 = vand.u32 %v453, 127
          %v455 = vmov %v454
          %v456 = vlaneseq
          %v457 = vshrl.u32 %v456, 7
          %v458 = vmov %v457
          %s459 = smov [#allocation23]
          %v460 = vlaneseq
          %v461 = vand.u32 %v460, 127
          %vm462 = vcmp.ge.s32.totalorder %v461, 0
          %vm463 = vcmp.lt.s32.totalorder %v461, 4
          %vm464 = vmand %vm462, %vm463
          %v465 = vld [vmem:[%s459] sm:$0xf]
          %v466 = vsel %vm464, %v465, 0.0
          %v467 = vmul.f32 %v466, %v466
          %vm470 = vcmp.eq.s32.totalorder %v458, %v455
          %v471 = vsel %vm470, 0.0, %v467
          %v472 = vadd.f32 %v451, %v471
          %v473 = vadd.f32 %v452, %v467
          %474 = vadd.xlane.f32.xlu0 %v473
          %v475 = vpop.xlane.xlu0 %474
          %v476 = vrot.slane %v475, 4
          %v477 = vadd.f32 %v475, %v476
          %v478 = vrot.slane %v477, 2
          %v479 = vadd.f32 %v477, %v478
          %v480 = vrot.slane %v479, 1
          %v481 = vadd.f32 %v479, %v480
          %482 = vadd.xlane.f32.xlu0 %v472
          %v483 = vpop.xlane.xlu0 %482
          %v484 = vrot.slane %v483, 4
          %v485 = vadd.f32 %v483, %v484
          %v486 = vrot.slane %v485, 2
          %v487 = vadd.f32 %v485, %v486
          %v488 = vrot.slane %v487, 1
          %v489 = vadd.f32 %v487, %v488
          %s490 = vtos %v489
          %s491 = vtos %v481
          %s492 = smul.f32 1e-10, %s491
          %p493 = scmp.le.f32.partialorder %s490, %s492
          %p494 = scmp.ge.s32.totalorder %s399, 15
          %p495 = por %p493, %p494
        $region143: #{custom-call.2} parent=139 // loop_header_branch
          %943 = sbr.rel (%p495) target = $region147
        $region144: #{custom-call.2} parent=139 // loop_body
          loop: start=0, step=1, limit=7
          $region148: #{custom-call.2} parent=144 // loop_pre_header
            _
          $region149: #{custom-call.2} parent=144 // loop_header
            %s497 = sphi 0, %s501
            %p498 = scmp.ge.s32.totalorder %s497, 7
          $region150: #{custom-call.2} parent=144 // loop_header_branch
            %500 = sbr.rel (%p498) target = $region154
          $region151: #{custom-call.2} parent=144 // loop_body
            #allocation24 [shape = 'f32[1024]{0}', space=vmem, size = 0x1000, scoped, tag = 'a_tl_diag vmem']
            #allocation25 [shape = 'f32[1024]{0}', space=vmem, size = 0x1000, scoped, tag = 'a_tr_diag vmem']
            #allocation26 [shape = 'f32[1024]{0}', space=vmem, size = 0x1000, scoped, tag = 'a_br_diag vmem']
            #allocation27 [shape = 'f32[1024]{0}', space=vmem, size = 0x1000, scoped, tag = 'rt1 vmem']
            #allocation28 [shape = 'f32[1024]{0}', space=vmem, size = 0x1000, scoped, tag = 'rt2 vmem']
            #allocation29 [shape = 'f32[1024]{0}', space=vmem, size = 0x1000, scoped, tag = 'c vmem']
            #allocation30 [shape = 'f32[1024]{0}', space=vmem, size = 0x1000, scoped, tag = 's vmem']
            #allocation31 [shape = 'f32[4096]{0}', space=vmem, size = 0x4000, scoped, tag = 'c broadcast']
            #allocation32 [shape = 'f32[4096]{0}', space=vmem, size = 0x4000, scoped, tag = 's broadcast']
            %s502 = smov [#allocation20]
            %s503 = smov [#allocation24]
            %v504 = vlaneseq
            %v505 = vand.u32 %v504, 127
            %v506 = vmov %v505
            %v507 = vlaneseq
            %v508 = vshrl.u32 %v507, 7
            %v509 = vmov %v508
            %v510 = vld [vmem:[%s502] sm:$0xf]
            %vm513 = vcmp.eq.s32.totalorder %v509, %v506
            %v514 = vsel %vm513, %v510, 0.0
            %v515 = vrot.slane %v514, 4
            %v516 = vadd.f32 %v514, %v515
            %v517 = vrot.slane %v516, 2
            %v518 = vadd.f32 %v516, %v517
            %v519 = vrot.slane %v518, 1
            %v520 = vadd.f32 %v518, %v519
            %521 = vst [vmem:[%s503] sm:$0x1] %v520
            %s522 = smov [#allocation21]
            %s523 = smov [#allocation25]
            %v524 = vlaneseq
            %v525 = vand.u32 %v524, 127
            %v526 = vmov %v525
            %v527 = vlaneseq
            %v528 = vshrl.u32 %v527, 7
            %v529 = vmov %v528
            %v530 = vld [vmem:[%s522] sm:$0xf]
            %vm533 = vcmp.eq.s32.totalorder %v529, %v526
            %v534 = vsel %vm533, %v530, 0.0
            %v535 = vrot.slane %v534, 4
            %v536 = vadd.f32 %v534, %v535
            %v537 = vrot.slane %v536, 2
            %v538 = vadd.f32 %v536, %v537
            %v539 = vrot.slane %v538, 1
            %v540 = vadd.f32 %v538, %v539
            %541 = vst [vmem:[%s523] sm:$0x1] %v540
            %s542 = smov [#allocation23]
            %s543 = smov [#allocation26]
            %v544 = vlaneseq
            %v545 = vand.u32 %v544, 127
            %v546 = vmov %v545
            %v547 = vlaneseq
            %v548 = vshrl.u32 %v547, 7
            %v549 = vmov %v548
            %v550 = vld [vmem:[%s542] sm:$0xf]
            %vm553 = vcmp.eq.s32.totalorder %v549, %v546
            %v554 = vsel %vm553, %v550, 0.0
            %v555 = vrot.slane %v554, 4
            %v556 = vadd.f32 %v554, %v555
            %v557 = vrot.slane %v556, 2
            %v558 = vadd.f32 %v556, %v557
            %v559 = vrot.slane %v558, 1
            %v560 = vadd.f32 %v558, %v559
            %561 = vst [vmem:[%s543] sm:$0x1] %v560
            %s562 = smov [#allocation29]
            %s563 = smov [#allocation30]
            %s564 = smov [#allocation24]
            %v565 = vld [vmem:[%s564] sm:$0xff]
            %s566 = smov [#allocation25]
            %v567 = vld [vmem:[%s566] sm:$0xff]
            %s568 = smov [#allocation26]
            %v569 = vld [vmem:[%s568] sm:$0xff]
            %v570 = vsub.f32 %v569, %v565
            %v571 = vmul.f32 2.0, %v567
            %v572 = vrcp.pop %v571
            %v573 = vmul.f32 %v570, %v572
            %vm574 = vcmp.ge.f32.partialorder %v573, 0.0
            %v575 = vmul.f32 %v573, %v573
            %v576 = vadd.f32 1.0, %v575
            %v577 = vrsqrt.pop %v576
            %v578 = vmul.f32 %v576, %v577
            %vm579 = vcmp.eq.f32.partialorder %v576, inf
            %v580 = vsel %vm579, %v576, %v578
            %vm581 = vcmp.eq.f32.partialorder %v576, 0.0
            %v582 = vand.u32 %v576, 2147483648
            %v583 = vsel %vm581, %v582, %v580
            %v584 = vxor.u32 %v583, 2147483648
            %v585 = vsel %vm574, %v583, %v584
            %v586 = vadd.f32 %v573, %v585
            %v587 = vrcp.pop %v586
            %v588 = vand.u32 2147483647, %v565
            %v589 = vand.u32 2147483647, %v567
            %v590 = vand.u32 2147483647, %v569
            %v591 = vmin.f32 %v588, %v590
            %v592 = vmul.f32 1.1920929e-08, %v591
            %vm593 = vcmp.le.f32.partialorder %v589, %v592
            %v594 = vsel %vm593, 0.0, %v587
            %v595 = vmul.f32 %v594, %v594
            %v596 = vadd.f32 1.0, %v595
            %v597 = vrsqrt.pop %v596
            %v598 = vmul.f32 %v594, %v597
            %v599 = vmul.f32 %v594, %v567
            %v600 = vsub.f32 %v565, %v599
            %v601 = vmul.f32 %v594, %v567
            %v602 = vadd.f32 %v569, %v601
            %s603 = smov [#allocation27]
            %604 = vst [vmem:[%s603] sm:$0xff] %v600
            %s605 = smov [#allocation28]
            %606 = vst [vmem:[%s605] sm:$0xff] %v602
            %s607 = smov %s562
            %608 = vst [vmem:[%s607] sm:$0xff] %v597
            %s609 = smov %s563
            %610 = vst [vmem:[%s609] sm:$0xff] %v598
            %s611 = smov [#allocation29]
            %v612 = vld [vmem:[%s611] ss:$0 sm:$0xff]
            %v613 = vlaneseq
            %v614 = vand.u32 %v613, 127
            %v615 = vmov %v614
            %v616 = vlaneseq
            %v617 = vshrl.u32 %v616, 7
            %v618 = vmov %v617
            %vm620 = vcmp.eq.s32.totalorder %v618, %v615
            %v621 = vsel %vm620, %v612, 0.0
            %622 = vadd.xlane.f32.xlu0 %v621
            %v623 = vpop.xlane.xlu0 %622
            %s624 = smov [#allocation31]
            %625 = vst [vmem:[%s624] sm:$0xff] %v623
            %s626 = smov [#allocation30]
            %v627 = vld [vmem:[%s626] ss:$0 sm:$0xff]
            %v628 = vlaneseq
            %v629 = vand.u32 %v628, 127
            %v630 = vmov %v629
            %v631 = vlaneseq
            %v632 = vshrl.u32 %v631, 7
            %v633 = vmov %v632
            %vm635 = vcmp.eq.s32.totalorder %v633, %v630
            %v636 = vsel %vm635, %v627, 0.0
            %637 = vadd.xlane.f32.xlu0 %v636
            %v638 = vpop.xlane.xlu0 %637
            %s639 = smov [#allocation32]
            %640 = vst [vmem:[%s639] sm:$0xff] %v638
            %s641 = smov [#allocation31]
            %v642 = vld [vmem:[%s641] sm:$0xff]
            %s643 = smov [#allocation32]
            %v644 = vld [vmem:[%s643] sm:$0xff]
            %s645 = smov [#allocation20]
            %s646 = smov [#allocation21]
            %s647 = smov [#allocation22]
            %s648 = smov [#allocation23]
            %v649 = vld [vmem:[%s645] sm:$0xf]
            %v650 = vld [vmem:[%s646] sm:$0xf]
            %v651 = vld [vmem:[%s647] sm:$0xf]
            %v652 = vld [vmem:[%s648] sm:$0xf]
            %v653 = vmul.f32 %v642, %v649
            %v654 = vmul.f32 %v644, %v651
            %v655 = vsub.f32 %v653, %v654
            %v656 = vmul.f32 %v642, %v650
            %v657 = vmul.f32 %v644, %v652
            %v658 = vsub.f32 %v656, %v657
            %v659 = vmul.f32 %v644, %v649
            %v660 = vmul.f32 %v642, %v651
            %v661 = vadd.f32 %v659, %v660
            %v662 = vmul.f32 %v644, %v650
            %v663 = vmul.f32 %v642, %v652
            %v664 = vadd.f32 %v662, %v663
            %665 = vst [vmem:[%s645] sm:$0xf] %v655
            %666 = vst [vmem:[%s646] sm:$0xf] %v658
            %667 = vst [vmem:[%s647] sm:$0xf] %v661
            %668 = vst [vmem:[%s648] sm:$0xf] %v664
            %s669 = smov [#allocation29]
            %v670 = vld [vmem:[%s669] ss:$0 sm:$0xff]
            %s671 = smov [#allocation30]
            %v672 = vld [vmem:[%s671] ss:$0 sm:$0xff]
            %s673 = smov [#allocation20]
            %s674 = smov [#allocation21]
            %s675 = smov [#allocation22]
            %s676 = smov [#allocation23]
            %v677 = vld [vmem:[%s673] sm:$0xf]
            %v678 = vld [vmem:[%s674] sm:$0xf]
            %v679 = vld [vmem:[%s675] sm:$0xf]
            %v680 = vld [vmem:[%s676] sm:$0xf]
            %v681 = vmul.f32 %v670, %v677
            %v682 = vmul.f32 %v672, %v678
            %v683 = vsub.f32 %v681, %v682
            %v684 = vmul.f32 %v672, %v677
            %v685 = vmul.f32 %v670, %v678
            %v686 = vadd.f32 %v684, %v685
            %v687 = vmul.f32 %v670, %v679
            %v688 = vmul.f32 %v672, %v680
            %v689 = vsub.f32 %v687, %v688
            %v690 = vmul.f32 %v672, %v679
            %v691 = vmul.f32 %v670, %v680
            %v692 = vadd.f32 %v690, %v691
            %693 = vst [vmem:[%s673] sm:$0xf] %v683
            %694 = vst [vmem:[%s674] sm:$0xf] %v686
            %695 = vst [vmem:[%s675] sm:$0xf] %v689
            %696 = vst [vmem:[%s676] sm:$0xf] %v692
            %s697 = smov [#allocation20]
            %s698 = smov [#allocation27]
            %v699 = vlaneseq
            %v700 = vand.u32 %v699, 127
            %v701 = vmov %v700
            %v702 = vlaneseq
            %v703 = vshrl.u32 %v702, 7
            %v704 = vmov %v703
            %v705 = vld [vmem:[%s698] ss:$0 sm:$0xff]
            %v706 = vld [vmem:[%s697] sm:$0xf]
            %vm709 = vcmp.eq.s32.totalorder %v704, %v701
            %v710 = vsel %vm709, %v705, %v706
            %711 = vst [vmem:[%s697] sm:$0xf] %v710
            %s712 = smov [#allocation21]
            %v713 = vlaneseq
            %v714 = vand.u32 %v713, 127
            %v715 = vmov %v714
            %v716 = vlaneseq
            %v717 = vshrl.u32 %v716, 7
            %v718 = vmov %v717
            %v719 = vld [vmem:[%s712] sm:$0xf]
            %vm722 = vcmp.eq.s32.totalorder %v718, %v715
            %v723 = vsel %vm722, 0.0, %v719
            %724 = vst [vmem:[%s712] sm:$0xf] %v723
            %s725 = smov [#allocation22]
            %v726 = vlaneseq
            %v727 = vand.u32 %v726, 127
            %v728 = vmov %v727
            %v729 = vlaneseq
            %v730 = vshrl.u32 %v729, 7
            %v731 = vmov %v730
            %v732 = vld [vmem:[%s725] sm:$0xf]
            %vm735 = vcmp.eq.s32.totalorder %v731, %v728
            %v736 = vsel %vm735, 0.0, %v732
            %737 = vst [vmem:[%s725] sm:$0xf] %v736
            %s738 = smov [#allocation23]
            %s739 = smov [#allocation28]
            %v740 = vlaneseq
            %v741 = vand.u32 %v740, 127
            %v742 = vmov %v741
            %v743 = vlaneseq
            %v744 = vshrl.u32 %v743, 7
            %v745 = vmov %v744
            %v746 = vld [vmem:[%s739] ss:$0 sm:$0xff]
            %v747 = vld [vmem:[%s738] sm:$0xf]
            %vm750 = vcmp.eq.s32.totalorder %v745, %v742
            %v751 = vsel %vm750, %v746, %v747
            %752 = vst [vmem:[%s738] sm:$0xf] %v751
            %s753 = smov [#allocation20]
            %s754 = smov [#allocation21]
            %v755 = vld [vmem:[%s754] sm:$0xf]
            %756 = vrot.lane.b32.xlu0 %v755, 1
            %v757 = vpop.permute.xlu0 %756
            %v758 = vld [vmem:[%s753] sm:$0xf]
            %v759 = vld [vmem:[%s753] sm:$0xf]
            %760 = vrot.lane.b32.xlu0 %v759, 1
            %v761 = vpop.permute.xlu0 %760
            %v762 = vlaneseq
            %v763 = vand.u32 %v762, 127
            %vm764 = vcmp.eq.s32.totalorder %v763, 0
            %v765 = vsel %vm764, %v759, %v761
            %v766 = vlaneseq
            %v767 = vand.u32 %v766, 127
            %vm768 = vcmp.eq.s32.totalorder %v767, 1
            %v769 = vsel %vm768, %v757, %v765
            %v770 = vlaneseq
            %v771 = vand.u32 %v770, 127
            %vm772 = vcmp.ge.s32.totalorder %v771, 0
            %vm773 = vcmp.lt.s32.totalorder %v771, 4
            %vm774 = vmand %vm772, %vm773
            %v775 = vsel %vm774, %v769, 0.0
            %v776 = vld [vmem:[%s754] sm:$0xf]
            %777 = vrot.lane.b32.xlu0 %v776, 127
            %v778 = vpop.permute.xlu0 %777
            %v779 = vlaneseq
            %v780 = vand.u32 %v779, 127
            %vm781 = vcmp.eq.s32.totalorder %v780, 3
            %v782 = vsel %vm781, %v758, %v778
            %783 = vst [vmem:[%s753] sm:$0xf] %v775
            %784 = vst [vmem:[%s754] sm:$0xf] %v782
            %s785 = smov [#allocation22]
            %s786 = smov [#allocation23]
            %v787 = vld [vmem:[%s786] sm:$0xf]
            %788 = vrot.lane.b32.xlu0 %v787, 1
            %v789 = vpop.permute.xlu0 %788
            %v790 = vld [vmem:[%s785] sm:$0xf]
            %v791 = vld [vmem:[%s785] sm:$0xf]
            %792 = vrot.lane.b32.xlu0 %v791, 1
            %v793 = vpop.permute.xlu0 %792
            %v794 = vlaneseq
            %v795 = vand.u32 %v794, 127
            %vm796 = vcmp.eq.s32.totalorder %v795, 0
            %v797 = vsel %vm796, %v791, %v793
            %v798 = vlaneseq
            %v799 = vand.u32 %v798, 127
            %vm800 = vcmp.eq.s32.totalorder %v799, 1
            %v801 = vsel %vm800, %v789, %v797
            %v802 = vlaneseq
            %v803 = vand.u32 %v802, 127
            %vm804 = vcmp.ge.s32.totalorder %v803, 0
            %vm805 = vcmp.lt.s32.totalorder %v803, 4
            %vm806 = vmand %vm804, %vm805
            %v807 = vsel %vm806, %v801, 0.0
            %v808 = vld [vmem:[%s786] sm:$0xf]
            %809 = vrot.lane.b32.xlu0 %v808, 127
            %v810 = vpop.permute.xlu0 %809
            %v811 = vlaneseq
            %v812 = vand.u32 %v811, 127
            %vm813 = vcmp.eq.s32.totalorder %v812, 3
            %v814 = vsel %vm813, %v790, %v810
            %815 = vst [vmem:[%s785] sm:$0xf] %v807
            %816 = vst [vmem:[%s786] sm:$0xf] %v814
            %s817 = smov [#allocation20]
            %s818 = smov [#allocation22]
            %v819 = vld [vmem:[%s817] ss:$0 sm:$0xff]
            %s821 = scalar_lea.vmem %s817, 4294967295
            %v822 = vld [vmem:[%s821] sm:$0xe]
            %v823 = vlaneseq
            %v824 = vshrl.u32 %v823, 7
            %vm825 = vcmp.eq.s32.totalorder %v824, 0
            %v826 = vsel %vm825, %v819, %v822
            %s827 = scalar_lea.vmem %s817, 3
            %v828 = vld [vmem:[%s827] ss:$0 sm:$0xff]
            %829 = vst [vmem:[%s817] sm:$0xf] %v826
            %v830 = vld [vmem:[%s818] ss:$0 sm:$0xff]
            %s831 = scalar_lea.vmem %s817, 1
            %832 = vst [vmem:[%s831] sm:$0x1] %v830
            %s833 = scalar_lea.vmem %s818, 1
            %v834 = vld [vmem:[%s833] sm:$0x7]
            %v835 = vlaneseq
            %v836 = vshrl.u32 %v835, 7
            %vm837 = vcmp.eq.s32.totalorder %v836, 3
            %v838 = vsel %vm837, %v828, %v834
            %v839 = vld [vmem:[%s818] ss:$0 sm:$0xff]
            %840 = vst [vmem:[%s818] sm:$0xf] %v838
            %s841 = smov [#allocation21]
            %s842 = smov [#allocation23]
            %v843 = vld [vmem:[%s841] ss:$0 sm:$0xff]
            %s845 = scalar_lea.vmem %s841, 4294967295
            %v846 = vld [vmem:[%s845] sm:$0xe]
            %v847 = vlaneseq
            %v848 = vshrl.u32 %v847, 7
            %vm849 = vcmp.eq.s32.totalorder %v848, 0
            %v850 = vsel %vm849, %v843, %v846
            %s851 = scalar_lea.vmem %s841, 3
            %v852 = vld [vmem:[%s851] ss:$0 sm:$0xff]
            %853 = vst [vmem:[%s841] sm:$0xf] %v850
            %v854 = vld [vmem:[%s842] ss:$0 sm:$0xff]
            %s855 = scalar_lea.vmem %s841, 1
            %856 = vst [vmem:[%s855] sm:$0x1] %v854
            %s857 = scalar_lea.vmem %s842, 1
            %v858 = vld [vmem:[%s857] sm:$0x7]
            %v859 = vlaneseq
            %v860 = vshrl.u32 %v859, 7
            %vm861 = vcmp.eq.s32.totalorder %v860, 3
            %v862 = vsel %vm861, %v852, %v858
            %v863 = vld [vmem:[%s842] ss:$0 sm:$0xff]
            %864 = vst [vmem:[%s842] sm:$0xf] %v862
            %s865 = smov [#allocation31]
            %v866 = vld [vmem:[%s865] sm:$0xff]
            %s867 = smov [#allocation32]
            %v868 = vld [vmem:[%s867] sm:$0xff]
            %s869 = smov [#allocation12]
            %s870 = smov [#allocation14]
            %s871 = smov [#allocation16]
            %s872 = smov [#allocation18]
            %v873 = vld [vmem:[%s869] sm:$0xf]
            %v874 = vld [vmem:[%s870] sm:$0xf]
            %v875 = vld [vmem:[%s871] sm:$0xf]
            %v876 = vld [vmem:[%s872] sm:$0xf]
            %v877 = vmul.f32 %v866, %v873
            %v878 = vmul.f32 %v868, %v875
            %v879 = vsub.f32 %v877, %v878
            %v880 = vmul.f32 %v866, %v874
            %v881 = vmul.f32 %v868, %v876
            %v882 = vsub.f32 %v880, %v881
            %v883 = vmul.f32 %v868, %v873
            %v884 = vmul.f32 %v866, %v875
            %v885 = vadd.f32 %v883, %v884
            %v886 = vmul.f32 %v868, %v874
            %v887 = vmul.f32 %v866, %v876
            %v888 = vadd.f32 %v886, %v887
            %889 = vst [vmem:[%s869] sm:$0xf] %v879
            %890 = vst [vmem:[%s870] sm:$0xf] %v882
            %891 = vst [vmem:[%s871] sm:$0xf] %v885
            %892 = vst [vmem:[%s872] sm:$0xf] %v888
            %s893 = smov [#allocation12]
            %s894 = smov [#allocation16]
            %v895 = vld [vmem:[%s893] ss:$0 sm:$0xff]
            %s897 = scalar_lea.vmem %s893, 4294967295
            %v898 = vld [vmem:[%s897] sm:$0xe]
            %v899 = vlaneseq
            %v900 = vshrl.u32 %v899, 7
            %vm901 = vcmp.eq.s32.totalorder %v900, 0
            %v902 = vsel %vm901, %v895, %v898
            %s903 = scalar_lea.vmem %s893, 3
            %v904 = vld [vmem:[%s903] ss:$0 sm:$0xff]
            %905 = vst [vmem:[%s893] sm:$0xf] %v902
            %v906 = vld [vmem:[%s894] ss:$0 sm:$0xff]
            %s907 = scalar_lea.vmem %s893, 1
            %908 = vst [vmem:[%s907] sm:$0x1] %v906
            %s909 = scalar_lea.vmem %s894, 1
            %v910 = vld [vmem:[%s909] sm:$0x7]
            %v911 = vlaneseq
            %v912 = vshrl.u32 %v911, 7
            %vm913 = vcmp.eq.s32.totalorder %v912, 3
            %v914 = vsel %vm913, %v904, %v910
            %v915 = vld [vmem:[%s894] ss:$0 sm:$0xff]
            %916 = vst [vmem:[%s894] sm:$0xf] %v914
            %s917 = smov [#allocation14]
            %s918 = smov [#allocation18]
            %v919 = vld [vmem:[%s917] ss:$0 sm:$0xff]
            %s921 = scalar_lea.vmem %s917, 4294967295
            %v922 = vld [vmem:[%s921] sm:$0xe]
            %v923 = vlaneseq
            %v924 = vshrl.u32 %v923, 7
            %vm925 = vcmp.eq.s32.totalorder %v924, 0
            %v926 = vsel %vm925, %v919, %v922
            %s927 = scalar_lea.vmem %s917, 3
            %v928 = vld [vmem:[%s927] ss:$0 sm:$0xff]
            %929 = vst [vmem:[%s917] sm:$0xf] %v926
            %v930 = vld [vmem:[%s918] ss:$0 sm:$0xff]
            %s931 = scalar_lea.vmem %s917, 1
            %932 = vst [vmem:[%s931] sm:$0x1] %v930
            %s933 = scalar_lea.vmem %s918, 1
            %v934 = vld [vmem:[%s933] sm:$0x7]
            %v935 = vlaneseq
            %v936 = vshrl.u32 %v935, 7
            %vm937 = vcmp.eq.s32.totalorder %v936, 3
            %v938 = vsel %vm937, %v928, %v934
            %v939 = vld [vmem:[%s918] ss:$0 sm:$0xff]
            %940 = vst [vmem:[%s918] sm:$0xf] %v938
          $region152: #{custom-call.2} parent=144 // loop_footer
            %s501 = sadd.s32 1, %s497
          $region153: #{custom-call.2} parent=144 // loop_footer_branch
            %496 = sbr.rel target = $region149
          $region154: #{custom-call.2} parent=144 // loop_exit
            _
          %s941 = sadd.s32 %s399, 1
        $region145: #{custom-call.2} parent=139 // loop_footer
          _
        $region146: #{custom-call.2} parent=139 // loop_footer_branch
          %398 = sbr.rel target = $region142
        $region147: #{custom-call.2} parent=139 // loop_exit
          _
        %s944 = sand.u32 %s22, 7
        %s945 = scalar_lea.vmem [#allocation8], %s944
        %s946 = sand.u32 %s22, 7
        %s947 = scalar_lea.vmem [#allocation10], %s946
        %s948 = smov [#allocation20]
        %s949 = smov %s945
        %v950 = vlaneseq
        %v951 = vand.u32 %v950, 127
        %v952 = vmov %v951
        %v953 = vlaneseq
        %v954 = vshrl.u32 %v953, 7
        %v955 = vmov %v954
        %v956 = vld [vmem:[%s948] sm:$0xf]
        %vm959 = vcmp.eq.s32.totalorder %v955, %v952
        %v960 = vsel %vm959, %v956, 0.0
        %v961 = vrot.slane %v960, 4
        %v962 = vadd.f32 %v960, %v961
        %v963 = vrot.slane %v962, 2
        %v964 = vadd.f32 %v962, %v963
        %v965 = vrot.slane %v964, 1
        %v966 = vadd.f32 %v964, %v965
        %967 = vst [vmem:[%s949] sm:$0x1] %v966
        %s968 = smov [#allocation23]
        %s969 = smov %s947
        %v970 = vlaneseq
        %v971 = vand.u32 %v970, 127
        %v972 = vmov %v971
        %v973 = vlaneseq
        %v974 = vshrl.u32 %v973, 7
        %v975 = vmov %v974
        %v976 = vld [vmem:[%s968] sm:$0xf]
        %vm979 = vcmp.eq.s32.totalorder %v975, %v972
        %v980 = vsel %vm979, %v976, 0.0
        %v981 = vrot.slane %v980, 4
        %v982 = vadd.f32 %v980, %v981
        %v983 = vrot.slane %v982, 2
        %v984 = vadd.f32 %v982, %v983
        %v985 = vrot.slane %v984, 1
        %v986 = vadd.f32 %v984, %v985
        %987 = vst [vmem:[%s969] sm:$0x1] %v986
        %s989 = sshll.u32 1, 4
        %s990 = ssub.s32 %s989, 1
        %v992 = vld [vmem:[#allocation8] sm:%s990]
        %s993 = sshll.u32 1, 4
        %s994 = ssub.s32 %s993, 1
        %995 = vst [vmem:[%s311] sm:%s994] %v992
        %s997 = sshll.u32 1, 4
        %s998 = ssub.s32 %s997, 1
        %v1000 = vld [vmem:[#allocation10] sm:%s998]
        %s1001 = sshll.u32 1, 4
        %s1002 = ssub.s32 %s1001, 1
        %1003 = vst [vmem:[%s317] sm:%s1002] %v1000
        %s1005 = sshll.u32 1, 4
        %s1006 = ssub.s32 %s1005, 1
        %v1008 = vld [vmem:[#allocation12] sm:%s1006]
        %s1009 = sshll.u32 1, 4
        %s1010 = ssub.s32 %s1009, 1
        %1011 = vst [vmem:[%s321] sm:%s1010] %v1008
        %s1013 = sshll.u32 1, 4
        %s1014 = ssub.s32 %s1013, 1
        %v1016 = vld [vmem:[#allocation14] sm:%s1014]
        %s1017 = sshll.u32 1, 4
        %s1018 = ssub.s32 %s1017, 1
        %1019 = vst [vmem:[%s325] sm:%s1018] %v1016
        %s1021 = sshll.u32 1, 4
        %s1022 = ssub.s32 %s1021, 1
        %v1024 = vld [vmem:[#allocation16] sm:%s1022]
        %s1025 = sshll.u32 1, 4
        %s1026 = ssub.s32 %s1025, 1
        %1027 = vst [vmem:[%s329] sm:%s1026] %v1024
        %s1029 = sshll.u32 1, 4
        %s1030 = ssub.s32 %s1029, 1
        %v1032 = vld [vmem:[#allocation18] sm:%s1030]
        %s1033 = sshll.u32 1, 4
        %s1034 = ssub.s32 %s1033, 1
        %1035 = vst [vmem:[%s333] sm:%s1034] %v1032
        %s1036 = sand.u32 %s41, 1
        %s1037 = sand.u32 %s41, 1
        %s1038 = smul.addr %s1037, 4
        %s1039 = scalar_lea.vmem [#allocation9], %s1038
        %s1040 = sand.u32 %s71, 1
        %s1041 = sand.u32 %s71, 1
        %s1042 = smul.addr %s1041, 4
        %s1043 = scalar_lea.vmem [#allocation11], %s1042
        %s1044 = sand.u32 %s17, 1
        %s1045 = sand.u32 %s17, 1
        %s1046 = smul.addr %s1045, 4
        %s1047 = scalar_lea.vmem [#allocation13], %s1046
        %s1048 = sand.u32 %s17, 1
        %s1049 = sand.u32 %s17, 1
        %s1050 = smul.addr %s1049, 4
        %s1051 = scalar_lea.vmem [#allocation15], %s1050
        %s1052 = sand.u32 %s17, 1
        %s1053 = sand.u32 %s17, 1
        %s1054 = smul.addr %s1053, 4
        %s1055 = scalar_lea.vmem [#allocation17], %s1054
        %s1056 = sand.u32 %s17, 1
        %s1057 = sand.u32 %s17, 1
        %s1058 = smul.addr %s1057, 4
        %s1059 = scalar_lea.vmem [#allocation19], %s1058
        // Predicated region
        $region155: #{custom-call.2} parent=139 // pred_check
          %p1060 = pneg %p51
        $region156: #{custom-call.2} parent=139 // pred_check_branch
          %1062 = sbr.rel (%p1060) target = $region158
        $region157: #{custom-call.2} parent=139 // pred_region
          %s1063 = sshrl.u32 %s22, 3
          %s1064 = sadd.s32 %s1063, %s21
          %s1065 = smul.addr %s1064, 4
          %s1066 = scalar_lea.vmem %s4, %s1065
          // Predicated region
          $region159: #{custom-call.2} parent=157 // pred_check
            _
          $region160: #{custom-call.2} parent=157 // pred_check_branch
            %1068 = sbr.rel (0) target = $region162
          $region161: #{custom-call.2} parent=157 // pred_region
            // Predicated region
            $region163: #{custom-call.2} parent=161 // pred_check
              _
            $region164: #{custom-call.2} parent=161 // pred_check_branch
              %1070 = sbr.rel target = $region166
            $region165: #{custom-call.2} parent=161 // pred_region
              // Predicated region
              $region178: #{custom-call.2} parent=165 // pred_check
                _
              $region179: #{custom-call.2} parent=165 // pred_check_branch
                %1086 = sbr.rel (0) target = $region181
              $region180: #{custom-call.2} parent=165 // pred_region
                %s1088 = ssub.s32 16, 1
                loop: start=0, step=1, limit=1
                $region182: #{custom-call.2} parent=180 // loop_pre_header
                  _
                $region183: #{custom-call.2} parent=180 // loop_header
                  %s1090 = sphi 0, %s1094
                  %p1091 = scmp.ge.s32.totalorder %s1090, 1
                  %s1095 = sphi %s1039, %s1039
                  %s1096 = sphi %s1066, %s1066
                $region184: #{custom-call.2} parent=180 // loop_header_branch
                  %1093 = sbr.rel (%p1091) target = $region188
                $region185: #{custom-call.2} parent=180 // loop_body
                  %v1097 = vld [vmem:[%s1095] sm:%s1088]
                  %1098 = vst [vmem:[%s1096] sm:%s1088] %v1097
                $region186: #{custom-call.2} parent=180 // loop_footer
                  %s1094 = sadd.s32 1, %s1090
                $region187: #{custom-call.2} parent=180 // loop_footer_branch
                  %1089 = sbr.rel target = $region183
                $region188: #{custom-call.2} parent=180 // loop_exit
                  _
              $region181: #{custom-call.2} parent=165 // pred_fallthru
                _
            $region166: #{custom-call.2} parent=161 // pred_fallthru
              _
            // Predicated region
            $region167: #{custom-call.2} parent=161 // pred_check
              _
            $region168: #{custom-call.2} parent=161 // pred_check_branch
              %1072 = sbr.rel (0) target = $region170
            $region169: #{custom-call.2} parent=161 // pred_region
              %s1074 = ssub.s32 16, 1
              loop: start=0, step=1, limit=1
              $region171: #{custom-call.2} parent=169 // loop_pre_header
                _
              $region172: #{custom-call.2} parent=169 // loop_header
                %s1076 = sphi 0, %s1080
                %p1077 = scmp.ge.s32.totalorder %s1076, 1
                %s1081 = sphi %s1039, %s1039
                %s1082 = sphi %s1066, %s1066
              $region173: #{custom-call.2} parent=169 // loop_header_branch
                %1079 = sbr.rel (%p1077) target = $region177
              $region174: #{custom-call.2} parent=169 // loop_body
                %v1083 = vld [vmem:[%s1081] sm:%s1074]
                %1084 = vst [vmem:[%s1082] sm:%s1074] %v1083
              $region175: #{custom-call.2} parent=169 // loop_footer
                %s1080 = sadd.s32 1, %s1076
              $region176: #{custom-call.2} parent=169 // loop_footer_branch
                %1075 = sbr.rel target = $region172
              $region177: #{custom-call.2} parent=169 // loop_exit
                _
            $region170: #{custom-call.2} parent=161 // pred_fallthru
              _
          $region162: #{custom-call.2} parent=157 // pred_fallthru
            _
          %1099 = vnop
        $region158: #{custom-call.2} parent=139 // pred_fallthru
          _
        // Predicated region
        $region189: #{custom-call.2} parent=139 // pred_check
          %p1100 = pneg %p81
        $region190: #{custom-call.2} parent=139 // pred_check_branch
          %1102 = sbr.rel (%p1100) target = $region192
        $region191: #{custom-call.2} parent=139 // pred_region
          %s1103 = sshrl.u32 %s22, 3
          %s1104 = sadd.s32 %s1103, %s21
          %s1105 = smul.addr %s1104, 4
          %s1106 = scalar_lea.vmem %s5, %s1105
          // Predicated region
          $region193: #{custom-call.2} parent=191 // pred_check
            _
          $region194: #{custom-call.2} parent=191 // pred_check_branch
            %1108 = sbr.rel (0) target = $region196
          $region195: #{custom-call.2} parent=191 // pred_region
            // Predicated region
            $region197: #{custom-call.2} parent=195 // pred_check
              _
            $region198: #{custom-call.2} parent=195 // pred_check_branch
              %1110 = sbr.rel target = $region200
            $region199: #{custom-call.2} parent=195 // pred_region
              // Predicated region
              $region212: #{custom-call.2} parent=199 // pred_check
                _
              $region213: #{custom-call.2} parent=199 // pred_check_branch
                %1126 = sbr.rel (0) target = $region215
              $region214: #{custom-call.2} parent=199 // pred_region
                %s1128 = ssub.s32 16, 1
                loop: start=0, step=1, limit=1
                $region216: #{custom-call.2} parent=214 // loop_pre_header
                  _
                $region217: #{custom-call.2} parent=214 // loop_header
                  %s1130 = sphi 0, %s1134
                  %p1131 = scmp.ge.s32.totalorder %s1130, 1
                  %s1135 = sphi %s1043, %s1043
                  %s1136 = sphi %s1106, %s1106
                $region218: #{custom-call.2} parent=214 // loop_header_branch
                  %1133 = sbr.rel (%p1131) target = $region222
                $region219: #{custom-call.2} parent=214 // loop_body
                  %v1137 = vld [vmem:[%s1135] sm:%s1128]
                  %1138 = vst [vmem:[%s1136] sm:%s1128] %v1137
                $region220: #{custom-call.2} parent=214 // loop_footer
                  %s1134 = sadd.s32 1, %s1130
                $region221: #{custom-call.2} parent=214 // loop_footer_branch
                  %1129 = sbr.rel target = $region217
                $region222: #{custom-call.2} parent=214 // loop_exit
                  _
              $region215: #{custom-call.2} parent=199 // pred_fallthru
                _
            $region200: #{custom-call.2} parent=195 // pred_fallthru
              _
            // Predicated region
            $region201: #{custom-call.2} parent=195 // pred_check
              _
            $region202: #{custom-call.2} parent=195 // pred_check_branch
              %1112 = sbr.rel (0) target = $region204
            $region203: #{custom-call.2} parent=195 // pred_region
              %s1114 = ssub.s32 16, 1
              loop: start=0, step=1, limit=1
              $region205: #{custom-call.2} parent=203 // loop_pre_header
                _
              $region206: #{custom-call.2} parent=203 // loop_header
                %s1116 = sphi 0, %s1120
                %p1117 = scmp.ge.s32.totalorder %s1116, 1
                %s1121 = sphi %s1043, %s1043
                %s1122 = sphi %s1106, %s1106
              $region207: #{custom-call.2} parent=203 // loop_header_branch
                %1119 = sbr.rel (%p1117) target = $region211
              $region208: #{custom-call.2} parent=203 // loop_body
                %v1123 = vld [vmem:[%s1121] sm:%s1114]
                %1124 = vst [vmem:[%s1122] sm:%s1114] %v1123
              $region209: #{custom-call.2} parent=203 // loop_footer
                %s1120 = sadd.s32 1, %s1116
              $region210: #{custom-call.2} parent=203 // loop_footer_branch
                %1115 = sbr.rel target = $region206
              $region211: #{custom-call.2} parent=203 // loop_exit
                _
            $region204: #{custom-call.2} parent=195 // pred_fallthru
              _
          $region196: #{custom-call.2} parent=191 // pred_fallthru
            _
          %1139 = vnop
        $region192: #{custom-call.2} parent=139 // pred_fallthru
          _
        %s1140 = smul.addr %s21, 4
        %s1141 = sadd.s32 %s22, %s1140
        %s1142 = smul.addr %s1141, 4
        %s1143 = scalar_lea.vmem %s6, %s1142
        // Predicated region
        $region223: #{custom-call.2} parent=139 // pred_check
          _
        $region224: #{custom-call.2} parent=139 // pred_check_branch
          %1145 = sbr.rel (0) target = $region226
        $region225: #{custom-call.2} parent=139 // pred_region
          // Predicated region
          $region227: #{custom-call.2} parent=225 // pred_check
            _
          $region228: #{custom-call.2} parent=225 // pred_check_branch
            %1147 = sbr.rel target = $region230
          $region229: #{custom-call.2} parent=225 // pred_region
            // Predicated region
            $region242: #{custom-call.2} parent=229 // pred_check
              _
            $region243: #{custom-call.2} parent=229 // pred_check_branch
              %1163 = sbr.rel (0) target = $region245
            $region244: #{custom-call.2} parent=229 // pred_region
              %s1165 = ssub.s32 16, 1
              loop: start=0, step=1, limit=1
              $region246: #{custom-call.2} parent=244 // loop_pre_header
                _
              $region247: #{custom-call.2} parent=244 // loop_header
                %s1167 = sphi 0, %s1171
                %p1168 = scmp.ge.s32.totalorder %s1167, 1
                %s1172 = sphi %s1047, %s1047
                %s1173 = sphi %s1143, %s1143
              $region248: #{custom-call.2} parent=244 // loop_header_branch
                %1170 = sbr.rel (%p1168) target = $region252
              $region249: #{custom-call.2} parent=244 // loop_body
                %v1174 = vld [vmem:[%s1172] sm:%s1165]
                %1175 = vst [vmem:[%s1173] sm:%s1165] %v1174
              $region250: #{custom-call.2} parent=244 // loop_footer
                %s1171 = sadd.s32 1, %s1167
              $region251: #{custom-call.2} parent=244 // loop_footer_branch
                %1166 = sbr.rel target = $region247
              $region252: #{custom-call.2} parent=244 // loop_exit
                _
            $region245: #{custom-call.2} parent=229 // pred_fallthru
              _
          $region230: #{custom-call.2} parent=225 // pred_fallthru
            _
          // Predicated region
          $region231: #{custom-call.2} parent=225 // pred_check
            _
          $region232: #{custom-call.2} parent=225 // pred_check_branch
            %1149 = sbr.rel (0) target = $region234
          $region233: #{custom-call.2} parent=225 // pred_region
            %s1151 = ssub.s32 16, 1
            loop: start=0, step=1, limit=1
            $region235: #{custom-call.2} parent=233 // loop_pre_header
              _
            $region236: #{custom-call.2} parent=233 // loop_header
              %s1153 = sphi 0, %s1157
              %p1154 = scmp.ge.s32.totalorder %s1153, 1
              %s1158 = sphi %s1047, %s1047
              %s1159 = sphi %s1143, %s1143
            $region237: #{custom-call.2} parent=233 // loop_header_branch
              %1156 = sbr.rel (%p1154) target = $region241
            $region238: #{custom-call.2} parent=233 // loop_body
              %v1160 = vld [vmem:[%s1158] sm:%s1151]
              %1161 = vst [vmem:[%s1159] sm:%s1151] %v1160
            $region239: #{custom-call.2} parent=233 // loop_footer
              %s1157 = sadd.s32 1, %s1153
            $region240: #{custom-call.2} parent=233 // loop_footer_branch
              %1152 = sbr.rel target = $region236
            $region241: #{custom-call.2} parent=233 // loop_exit
              _
          $region234: #{custom-call.2} parent=225 // pred_fallthru
            _
        $region226: #{custom-call.2} parent=139 // pred_fallthru
          _
        %1176 = vnop
        %s1177 = smul.addr %s21, 4
        %s1178 = sadd.s32 %s22, %s1177
        %s1179 = smul.addr %s1178, 4
        %s1180 = scalar_lea.vmem %s7, %s1179
        // Predicated region
        $region253: #{custom-call.2} parent=139 // pred_check
          _
        $region254: #{custom-call.2} parent=139 // pred_check_branch
          %1182 = sbr.rel (0) target = $region256
        $region255: #{custom-call.2} parent=139 // pred_region
          // Predicated region
          $region257: #{custom-call.2} parent=255 // pred_check
            _
          $region258: #{custom-call.2} parent=255 // pred_check_branch
            %1184 = sbr.rel target = $region260
          $region259: #{custom-call.2} parent=255 // pred_region
            // Predicated region
            $region272: #{custom-call.2} parent=259 // pred_check
              _
            $region273: #{custom-call.2} parent=259 // pred_check_branch
              %1200 = sbr.rel (0) target = $region275
            $region274: #{custom-call.2} parent=259 // pred_region
              %s1202 = ssub.s32 16, 1
              loop: start=0, step=1, limit=1
              $region276: #{custom-call.2} parent=274 // loop_pre_header
                _
              $region277: #{custom-call.2} parent=274 // loop_header
                %s1204 = sphi 0, %s1208
                %p1205 = scmp.ge.s32.totalorder %s1204, 1
                %s1209 = sphi %s1051, %s1051
                %s1210 = sphi %s1180, %s1180
              $region278: #{custom-call.2} parent=274 // loop_header_branch
                %1207 = sbr.rel (%p1205) target = $region282
              $region279: #{custom-call.2} parent=274 // loop_body
                %v1211 = vld [vmem:[%s1209] sm:%s1202]
                %1212 = vst [vmem:[%s1210] sm:%s1202] %v1211
              $region280: #{custom-call.2} parent=274 // loop_footer
                %s1208 = sadd.s32 1, %s1204
              $region281: #{custom-call.2} parent=274 // loop_footer_branch
                %1203 = sbr.rel target = $region277
              $region282: #{custom-call.2} parent=274 // loop_exit
                _
            $region275: #{custom-call.2} parent=259 // pred_fallthru
              _
          $region260: #{custom-call.2} parent=255 // pred_fallthru
            _
          // Predicated region
          $region261: #{custom-call.2} parent=255 // pred_check
            _
          $region262: #{custom-call.2} parent=255 // pred_check_branch
            %1186 = sbr.rel (0) target = $region264
          $region263: #{custom-call.2} parent=255 // pred_region
            %s1188 = ssub.s32 16, 1
            loop: start=0, step=1, limit=1
            $region265: #{custom-call.2} parent=263 // loop_pre_header
              _
            $region266: #{custom-call.2} parent=263 // loop_header
              %s1190 = sphi 0, %s1194
              %p1191 = scmp.ge.s32.totalorder %s1190, 1
              %s1195 = sphi %s1051, %s1051
              %s1196 = sphi %s1180, %s1180
            $region267: #{custom-call.2} parent=263 // loop_header_branch
              %1193 = sbr.rel (%p1191) target = $region271
            $region268: #{custom-call.2} parent=263 // loop_body
              %v1197 = vld [vmem:[%s1195] sm:%s1188]
              %1198 = vst [vmem:[%s1196] sm:%s1188] %v1197
            $region269: #{custom-call.2} parent=263 // loop_footer
              %s1194 = sadd.s32 1, %s1190
            $region270: #{custom-call.2} parent=263 // loop_footer_branch
              %1189 = sbr.rel target = $region266
            $region271: #{custom-call.2} parent=263 // loop_exit
              _
          $region264: #{custom-call.2} parent=255 // pred_fallthru
            _
        $region256: #{custom-call.2} parent=139 // pred_fallthru
          _
        %1213 = vnop
        %s1214 = smul.addr %s21, 4
        %s1215 = sadd.s32 %s22, %s1214
        %s1216 = smul.addr %s1215, 4
        %s1217 = scalar_lea.vmem %s8, %s1216
        // Predicated region
        $region283: #{custom-call.2} parent=139 // pred_check
          _
        $region284: #{custom-call.2} parent=139 // pred_check_branch
          %1219 = sbr.rel (0) target = $region286
        $region285: #{custom-call.2} parent=139 // pred_region
          // Predicated region
          $region287: #{custom-call.2} parent=285 // pred_check
            _
          $region288: #{custom-call.2} parent=285 // pred_check_branch
            %1221 = sbr.rel target = $region290
          $region289: #{custom-call.2} parent=285 // pred_region
            // Predicated region
            $region302: #{custom-call.2} parent=289 // pred_check
              _
            $region303: #{custom-call.2} parent=289 // pred_check_branch
              %1237 = sbr.rel (0) target = $region305
            $region304: #{custom-call.2} parent=289 // pred_region
              %s1239 = ssub.s32 16, 1
              loop: start=0, step=1, limit=1
              $region306: #{custom-call.2} parent=304 // loop_pre_header
                _
              $region307: #{custom-call.2} parent=304 // loop_header
                %s1241 = sphi 0, %s1245
                %p1242 = scmp.ge.s32.totalorder %s1241, 1
                %s1246 = sphi %s1055, %s1055
                %s1247 = sphi %s1217, %s1217
              $region308: #{custom-call.2} parent=304 // loop_header_branch
                %1244 = sbr.rel (%p1242) target = $region312
              $region309: #{custom-call.2} parent=304 // loop_body
                %v1248 = vld [vmem:[%s1246] sm:%s1239]
                %1249 = vst [vmem:[%s1247] sm:%s1239] %v1248
              $region310: #{custom-call.2} parent=304 // loop_footer
                %s1245 = sadd.s32 1, %s1241
              $region311: #{custom-call.2} parent=304 // loop_footer_branch
                %1240 = sbr.rel target = $region307
              $region312: #{custom-call.2} parent=304 // loop_exit
                _
            $region305: #{custom-call.2} parent=289 // pred_fallthru
              _
          $region290: #{custom-call.2} parent=285 // pred_fallthru
            _
          // Predicated region
          $region291: #{custom-call.2} parent=285 // pred_check
            _
          $region292: #{custom-call.2} parent=285 // pred_check_branch
            %1223 = sbr.rel (0) target = $region294
          $region293: #{custom-call.2} parent=285 // pred_region
            %s1225 = ssub.s32 16, 1
            loop: start=0, step=1, limit=1
            $region295: #{custom-call.2} parent=293 // loop_pre_header
              _
            $region296: #{custom-call.2} parent=293 // loop_header
              %s1227 = sphi 0, %s1231
              %p1228 = scmp.ge.s32.totalorder %s1227, 1
              %s1232 = sphi %s1055, %s1055
              %s1233 = sphi %s1217, %s1217
            $region297: #{custom-call.2} parent=293 // loop_header_branch
              %1230 = sbr.rel (%p1228) target = $region301
            $region298: #{custom-call.2} parent=293 // loop_body
              %v1234 = vld [vmem:[%s1232] sm:%s1225]
              %1235 = vst [vmem:[%s1233] sm:%s1225] %v1234
            $region299: #{custom-call.2} parent=293 // loop_footer
              %s1231 = sadd.s32 1, %s1227
            $region300: #{custom-call.2} parent=293 // loop_footer_branch
              %1226 = sbr.rel target = $region296
            $region301: #{custom-call.2} parent=293 // loop_exit
              _
          $region294: #{custom-call.2} parent=285 // pred_fallthru
            _
        $region286: #{custom-call.2} parent=139 // pred_fallthru
          _
        %1250 = vnop
        %s1251 = smul.addr %s21, 4
        %s1252 = sadd.s32 %s22, %s1251
        %s1253 = smul.addr %s1252, 4
        %s1254 = scalar_lea.vmem %s9, %s1253
        // Predicated region
        $region313: #{custom-call.2} parent=139 // pred_check
          _
        $region314: #{custom-call.2} parent=139 // pred_check_branch
          %1256 = sbr.rel (0) target = $region316
        $region315: #{custom-call.2} parent=139 // pred_region
          // Predicated region
          $region317: #{custom-call.2} parent=315 // pred_check
            _
          $region318: #{custom-call.2} parent=315 // pred_check_branch
            %1258 = sbr.rel target = $region320
          $region319: #{custom-call.2} parent=315 // pred_region
            // Predicated region
            $region332: #{custom-call.2} parent=319 // pred_check
              _
            $region333: #{custom-call.2} parent=319 // pred_check_branch
              %1274 = sbr.rel (0) target = $region335
            $region334: #{custom-call.2} parent=319 // pred_region
              %s1276 = ssub.s32 16, 1
              loop: start=0, step=1, limit=1
              $region336: #{custom-call.2} parent=334 // loop_pre_header
                _
              $region337: #{custom-call.2} parent=334 // loop_header
                %s1278 = sphi 0, %s1282
                %p1279 = scmp.ge.s32.totalorder %s1278, 1
                %s1283 = sphi %s1059, %s1059
                %s1284 = sphi %s1254, %s1254
              $region338: #{custom-call.2} parent=334 // loop_header_branch
                %1281 = sbr.rel (%p1279) target = $region342
              $region339: #{custom-call.2} parent=334 // loop_body
                %v1285 = vld [vmem:[%s1283] sm:%s1276]
                %1286 = vst [vmem:[%s1284] sm:%s1276] %v1285
              $region340: #{custom-call.2} parent=334 // loop_footer
                %s1282 = sadd.s32 1, %s1278
              $region341: #{custom-call.2} parent=334 // loop_footer_branch
                %1277 = sbr.rel target = $region337
              $region342: #{custom-call.2} parent=334 // loop_exit
                _
            $region335: #{custom-call.2} parent=319 // pred_fallthru
              _
          $region320: #{custom-call.2} parent=315 // pred_fallthru
            _
          // Predicated region
          $region321: #{custom-call.2} parent=315 // pred_check
            _
          $region322: #{custom-call.2} parent=315 // pred_check_branch
            %1260 = sbr.rel (0) target = $region324
          $region323: #{custom-call.2} parent=315 // pred_region
            %s1262 = ssub.s32 16, 1
            loop: start=0, step=1, limit=1
            $region325: #{custom-call.2} parent=323 // loop_pre_header
              _
            $region326: #{custom-call.2} parent=323 // loop_header
              %s1264 = sphi 0, %s1268
              %p1265 = scmp.ge.s32.totalorder %s1264, 1
              %s1269 = sphi %s1059, %s1059
              %s1270 = sphi %s1254, %s1254
            $region327: #{custom-call.2} parent=323 // loop_header_branch
              %1267 = sbr.rel (%p1265) target = $region331
            $region328: #{custom-call.2} parent=323 // loop_body
              %v1271 = vld [vmem:[%s1269] sm:%s1262]
              %1272 = vst [vmem:[%s1270] sm:%s1262] %v1271
            $region329: #{custom-call.2} parent=323 // loop_footer
              %s1268 = sadd.s32 1, %s1264
            $region330: #{custom-call.2} parent=323 // loop_footer_branch
              %1263 = sbr.rel target = $region326
            $region331: #{custom-call.2} parent=323 // loop_exit
              _
          $region324: #{custom-call.2} parent=315 // pred_fallthru
            _
        $region316: #{custom-call.2} parent=139 // pred_fallthru
          _
        %1287 = vnop
      $region140: #{custom-call.2} parent=5 // pred_fallthru
        _
      %p1288 = scmp.le.s32.totalorder 2, %s12
      // Predicated region
      $region343: #{custom-call.2} parent=5 // pred_check
        %p1289 = pneg %p1288
      $region344: #{custom-call.2} parent=5 // pred_check_branch
        %1291 = sbr.rel (%p1289) target = $region346
      $region345: #{custom-call.2} parent=5 // pred_region
        %s1292 = ssub.s32 %s12, 2
        // Predicated region
        $region347: #{custom-call.2} parent=345 // pred_check
          %p1293 = pneg %p57
        $region348: #{custom-call.2} parent=345 // pred_check_branch
          %1295 = sbr.rel (%p1293) target = $region350
        $region349: #{custom-call.2} parent=345 // pred_region
          %s1296 = sand.u32 %s42, 1
          %s1297 = sand.u32 %s42, 1
          %s1298 = smul.addr %s1297, 4
          %s1299 = scalar_lea.vmem [#allocation9], %s1298
        $region350: #{custom-call.2} parent=345 // pred_fallthru
          _
        // Predicated region
        $region351: #{custom-call.2} parent=345 // pred_check
          %p1300 = pneg %p87
        $region352: #{custom-call.2} parent=345 // pred_check_branch
          %1302 = sbr.rel (%p1300) target = $region354
        $region353: #{custom-call.2} parent=345 // pred_region
          %s1303 = sand.u32 %s72, 1
          %s1304 = sand.u32 %s72, 1
          %s1305 = smul.addr %s1304, 4
          %s1306 = scalar_lea.vmem [#allocation11], %s1305
        $region354: #{custom-call.2} parent=345 // pred_fallthru
          _
        %s1307 = sand.u32 %s18, 1
        %s1308 = sand.u32 %s18, 1
        %s1309 = smul.addr %s1308, 4
        %s1310 = scalar_lea.vmem [#allocation13], %s1309
        %s1311 = sand.u32 %s18, 1
        %s1312 = sand.u32 %s18, 1
        %s1313 = smul.addr %s1312, 4
        %s1314 = scalar_lea.vmem [#allocation15], %s1313
        %s1315 = sand.u32 %s18, 1
        %s1316 = sand.u32 %s18, 1
        %s1317 = smul.addr %s1316, 4
        %s1318 = scalar_lea.vmem [#allocation17], %s1317
        %s1319 = sand.u32 %s18, 1
        %s1320 = sand.u32 %s18, 1
        %s1321 = smul.addr %s1320, 4
        %s1322 = scalar_lea.vmem [#allocation19], %s1321
      $region346: #{custom-call.2} parent=5 // pred_fallthru
        _
    $region6: #{custom-call.2} parent=1 // loop_footer
      %s16 = sadd.s32 1, %s12
    $region7: #{custom-call.2} parent=1 // loop_footer_branch
      %11 = sbr.rel target = $region3
    $region8: #{custom-call.2} parent=1 // loop_exit
      _

// kernel: bimap_2_reduced_forward.3
$region0: #{bimap_2_reduced_forward.3}
  #allocation0 [shape = 'u32[]', space=smem, size = 0x4, offset = 0x4, fixed_abs, tag = 'smem constant byte address 0x4 - core index']
  #allocation1 [shape = 'u32[144,128]{1,0:T(1,128)}', space=vmem, size = 0x12000, scoped, tag = 'internal scratch']
  %s0 = inlined_call_operand.vmem [shape: f32[2,4,8,8], index: 0, kind: input, shape index: {}]
  %s1 = inlined_call_operand.vmem [shape: f32[2,4,1,8], index: 1, kind: input, shape index: {}]
  %s2 = inlined_call_operand.hbm [shape: f32[2,4,8,8], index: 2, kind: output, shape index: {}]
  %s3 = sld [smem:[#allocation0]]
  $region41: #{bimap_2_reduced_forward.3} parent=0
    _
  %s5 = ssub.s32 1, %s3
  %s6 = scalar_select 0, %s5, %s3
  $region1: #{bimap_2_reduced_forward.3} parent=0
    #allocation2 [shape = 'u8[32768]{0}', space=vmem, size = 0x8000, scoped, tag = 'output window, operand 0']
    #allocation3 [shape = 's32[2]{0}', space=sflag, size = 0x8, scoped, tag = 'scoped memory for bimap_2_reduced_forward.3']
    %7 = vsyncpa [#allocation3], 0
    %s8 = scalar_lea.sflag [#allocation3], 1
    %9 = vsyncpa %s8, 0
    loop: start=0, step=1, limit=4
    $region2: #{bimap_2_reduced_forward.3} parent=1 // loop_pre_header
      _
    $region3: #{bimap_2_reduced_forward.3} parent=1 // loop_header
      %s11 = sphi 0, %s15
      %p12 = scmp.ge.s32.totalorder %s11, 4
      %s21 = sphi 0, %s23
      %s24 = sphi 0, %s21
      %s25 = sphi 0, %s24
      %s41 = sphi 0, %s25
      %s47 = sphi 0, %s49
      %s50 = sphi 0, %s47
      %s51 = sphi 0, %s50
      %s67 = sphi 0, %s51
      %s73 = sphi 0, %s75
      %s76 = sphi 0, %s73
      %s77 = sphi 0, %s76
      %s93 = sphi 0, %s77
    $region4: #{bimap_2_reduced_forward.3} parent=1 // loop_header_branch
      %14 = sbr.rel (%p12) target = $region8
    $region5: #{bimap_2_reduced_forward.3} parent=1 // loop_body
      %s16 = ssub.s32 %s11, 1
      %s17 = ssub.s32 %s11, 2
      %s18 = sadd.s32 %s11, 1
      %s19 = ssub.s32 %s11, %s18
      %p20 = scmp.eq.s32.totalorder %s19, 0
      %s22 = sadd.s32 %s21, 1
      %s23 = scalar_select %p20, %s21, %s22
      %p26 = pneg %p20
      %p27 = scmp.eq.s32.totalorder %s11, 1
      %p28 = por %p26, %p27
      %p29 = scmp.ne.s32.totalorder %s21, %s24
      %p30 = scmp.eq.s32.totalorder %s11, 0
      %p31 = por %p29, %p30
      %p32 = scmp.ne.s32.totalorder %s21, %s24
      %p33 = scmp.eq.s32.totalorder %s16, 1
      %p34 = por %p32, %p33
      %p35 = scmp.ne.s32.totalorder %s24, %s25
      %p36 = scmp.eq.s32.totalorder %s16, 0
      %p37 = por %p35, %p36
      %p38 = scmp.ne.s32.totalorder %s24, %s25
      %p39 = scmp.eq.s32.totalorder %s17, 1
      %p40 = por %p38, %p39
      %p42 = scmp.ne.s32.totalorder %s25, %s41
      %p43 = scmp.eq.s32.totalorder %s17, 0
      %p44 = por %p42, %p43
      %s45 = ssub.s32 %s11, %s18
      %p46 = scmp.eq.s32.totalorder %s45, 0
      %s48 = sadd.s32 %s47, 1
      %s49 = scalar_select %p46, %s47, %s48
      %p52 = pneg %p46
      %p53 = scmp.eq.s32.totalorder %s11, 1
      %p54 = por %p52, %p53
      %p55 = scmp.ne.s32.totalorder %s47, %s50
      %p56 = scmp.eq.s32.totalorder %s11, 0
      %p57 = por %p55, %p56
      %p58 = scmp.ne.s32.totalorder %s47, %s50
      %p59 = scmp.eq.s32.totalorder %s16, 1
      %p60 = por %p58, %p59
      %p61 = scmp.ne.s32.totalorder %s50, %s51
      %p62 = scmp.eq.s32.totalorder %s16, 0
      %p63 = por %p61, %p62
      %p64 = scmp.ne.s32.totalorder %s50, %s51
      %p65 = scmp.eq.s32.totalorder %s17, 1
      %p66 = por %p64, %p65
      %p68 = scmp.ne.s32.totalorder %s51, %s67
      %p69 = scmp.eq.s32.totalorder %s17, 0
      %p70 = por %p68, %p69
      %s71 = ssub.s32 %s11, %s18
      %p72 = scmp.eq.s32.totalorder %s71, 0
      %s74 = sadd.s32 %s73, 1
      %s75 = scalar_select %p72, %s73, %s74
      %p78 = pneg %p72
      %p79 = scmp.eq.s32.totalorder %s11, 1
      %p80 = por %p78, %p79
      %p81 = scmp.ne.s32.totalorder %s73, %s76
      %p82 = scmp.eq.s32.totalorder %s11, 0
      %p83 = por %p81, %p82
      %p84 = scmp.ne.s32.totalorder %s73, %s76
      %p85 = scmp.eq.s32.totalorder %s16, 1
      %p86 = por %p84, %p85
      %p87 = scmp.ne.s32.totalorder %s76, %s77
      %p88 = scmp.eq.s32.totalorder %s16, 0
      %p89 = por %p87, %p88
      %p90 = scmp.ne.s32.totalorder %s76, %s77
      %p91 = scmp.eq.s32.totalorder %s17, 1
      %p92 = por %p90, %p91
      %p94 = scmp.ne.s32.totalorder %s77, %s93
      %p95 = scmp.eq.s32.totalorder %s17, 0
      %p96 = por %p94, %p95
      %p97 = scmp.le.s32.totalorder 1, %s11
      %p98 = scmp.lt.s32.totalorder %s11, 3
      %p99 = pnand %p97, %p98
      %p100 = pneg %p99
      // Predicated region
      $region9: #{bimap_2_reduced_forward.3} parent=5 // pred_check
        _
      $region10: #{bimap_2_reduced_forward.3} parent=5 // pred_check_branch
        %102 = sbr.rel (%p99) target = $region12
      $region11: #{bimap_2_reduced_forward.3} parent=5 // pred_region
        %s103 = ssub.s32 %s11, 1
      $region12: #{bimap_2_reduced_forward.3} parent=5 // pred_fallthru
        _
      %p104 = scmp.lt.s32.totalorder %s11, 2
      // Predicated region
      $region13: #{bimap_2_reduced_forward.3} parent=5 // pred_check
        %p105 = pneg %p104
      $region14: #{bimap_2_reduced_forward.3} parent=5 // pred_check_branch
        %107 = sbr.rel (%p105) target = $region16
      $region15: #{bimap_2_reduced_forward.3} parent=5 // pred_region
        // Predicated region
        $region17: #{bimap_2_reduced_forward.3} parent=15 // pred_check
          %p108 = pneg %p31
        $region18: #{bimap_2_reduced_forward.3} parent=15 // pred_check_branch
          %110 = sbr.rel (%p108) target = $region20
        $region19: #{bimap_2_reduced_forward.3} parent=15 // pred_region
          %p111 = scmp.lt.s32.totalorder %s11, 1
          %s112 = scalar_select %p111, %s11, 1
          %s113 = smul.addr %s112, 4
          %s114 = smul.addr %s113, 8
          %s115 = scalar_lea.vmem %s0, %s114
        $region20: #{bimap_2_reduced_forward.3} parent=15 // pred_fallthru
          _
        // Predicated region
        $region21: #{bimap_2_reduced_forward.3} parent=15 // pred_check
          %p116 = pneg %p57
        $region22: #{bimap_2_reduced_forward.3} parent=15 // pred_check_branch
          %118 = sbr.rel (%p116) target = $region24
        $region23: #{bimap_2_reduced_forward.3} parent=15 // pred_region
          %p119 = scmp.lt.s32.totalorder %s11, 1
          %s120 = scalar_select %p119, %s11, 1
          %s121 = smul.addr %s120, 4
          %s122 = scalar_lea.vmem %s1, %s121
        $region24: #{bimap_2_reduced_forward.3} parent=15 // pred_fallthru
          _
      $region16: #{bimap_2_reduced_forward.3} parent=5 // pred_fallthru
        _
      %p123 = scmp.le.s32.totalorder 1, %s11
      %p124 = scmp.lt.s32.totalorder %s11, 3
      %p125 = pnand %p123, %p124
      %p126 = pneg %p125
      // Predicated region
      $region25: #{bimap_2_reduced_forward.3} parent=5 // pred_check
        _
      $region26: #{bimap_2_reduced_forward.3} parent=5 // pred_check_branch
        %128 = sbr.rel (%p125) target = $region28
      $region27: #{bimap_2_reduced_forward.3} parent=5 // pred_region
        %s129 = ssub.s32 %s11, 1
        %p130 = scmp.lt.s32.totalorder %s16, 1
        %s131 = scalar_select %p130, %s16, 1
        %s132 = smul.addr %s131, 4
        %s133 = smul.addr %s132, 8
        %s134 = scalar_lea.vmem %s0, %s133
        %p135 = pneg %p37
        %p136 = pneg %p34
        %p137 = scmp.lt.s32.totalorder %s16, 1
        %s138 = scalar_select %p137, %s16, 1
        %s139 = smul.addr %s138, 4
        %s140 = scalar_lea.vmem %s1, %s139
        %p141 = pneg %p63
        %p142 = pneg %p60
        %p143 = pneg %p89
        %p144 = pneg %p86
        %s145 = sand.u32 %s76, 1
        %s146 = scalar_lea.sflag [#allocation3], %s145
        %s147 = sand.u32 %s76, 1
        %s148 = smul.addr %s147, 32
        %s149 = scalar_lea.vmem [#allocation2], %s148
        %p150 = scmp.lt.s32.totalorder %s16, 1
        %s151 = scalar_select %p150, %s16, 1
        %s152 = smul.addr %s151, 4
        %s153 = smul.addr %s152, 8
        %s154 = scalar_lea.vmem %s0, %s153
        %p155 = scmp.lt.s32.totalorder %s16, 1
        %s156 = scalar_select %p155, %s16, 1
        %s157 = smul.addr %s156, 4
        %s158 = scalar_lea.vmem %s1, %s157
        %v159 = vld [vmem:[%s154] sm:$0xff]
        %v160 = vld [vmem:[%s154 + $0x8] sm:$0xff]
        %v161 = vld [vmem:[%s154 + $0x10] sm:$0xff]
        %v162 = vld [vmem:[%s154 + $0x18] sm:$0xff]
        %v163 = vld [vmem:[%s158] sm:$0x1]
        %v164 = vld [vmem:[%s158 + $0x1] sm:$0x1]
        %v165 = vld [vmem:[%s158 + $0x2] sm:$0x1]
        %v166 = vld [vmem:[%s158 + $0x3] sm:$0x1]
        %v167 = vmax.f32 %v163, 0.0001
        %v168 = vmax.f32 %v164, 0.0001
        %v169 = vmax.f32 %v165, 0.0001
        %v170 = vmax.f32 %v166, 0.0001
        %v175 = vlaneseq
        %v176 = vshrl.u32 %v175, 7
        %v177 = vsub.s32 0, %v176
        %v178 = vrot.slane %v167, %v177
        %v179 = vlaneseq
        %v180 = vshrl.u32 %v179, 7
        %v181 = vsub.s32 0, %v180
        %v182 = vrot.slane %v168, %v181
        %v183 = vlaneseq
        %v184 = vshrl.u32 %v183, 7
        %v185 = vsub.s32 0, %v184
        %v186 = vrot.slane %v169, %v185
        %v187 = vlaneseq
        %v188 = vshrl.u32 %v187, 7
        %v189 = vsub.s32 0, %v188
        %v190 = vrot.slane %v170, %v189
        %v195 = vmul.f32 %v159, %v178
        %v196 = vmul.f32 %v160, %v182
        %v197 = vmul.f32 %v161, %v186
        %v198 = vmul.f32 %v162, %v190
        %vm199 = vcmask 64512
        %v201 = vsel %vm199, %v195, 0
        %v204 = vsel %vm199, %v159, 0
        %206 = vmatprep.subr.mxu0 0.0
        %207 = vmatpush1.xpose.msra.mxu0 0.0
        %208 = vmatprep.subr.mxu0 0.0
        %209 = vmatpush1.xpose.msra.mxu0 0.0
        %210 = vmatprep.subr.mxu0 0.0
        %211 = vmatpush1.xpose.msra.mxu0 0.0
        %212 = vmatprep.subr.mxu0 0.0
        %213 = vmatpush1.xpose.msra.mxu0 0.0
        %214 = vmatprep.subr.mxu0 0.0
        %215 = vmatpush1.xpose.msra.mxu0 0.0
        %216 = vmatprep.subr.mxu0 0.0
        %217 = vmatpush1.xpose.msra.mxu0 0.0
        %218 = vmatprep.subr.mxu0 0.0
        %219 = vmatpush1.xpose.msra.mxu0 0.0
        %220 = vmatprep.subr.mxu0 0.0
        %221 = vmatpush1.xpose.msra.mxu0 0.0
        %222 = vmatprep.subr.mxu0 0.0
        %223 = vmatpush1.xpose.msra.mxu0 0.0
        %224 = vmatprep.subr.mxu0 0.0
        %225 = vmatpush1.xpose.msra.mxu0 0.0
        %226 = vmatprep.subr.mxu0 0.0
        %227 = vmatpush1.xpose.msra.mxu0 0.0
        %228 = vmatprep.subr.mxu0 0.0
        %229 = vmatpush1.xpose.msra.mxu0 0.0
        %230 = vmatprep.subr.mxu0 0.0
        %231 = vmatpush1.xpose.msra.mxu0 0.0
        %232 = vmatprep.subr.mxu0 0.0
        %233 = vmatpush1.xpose.msra.mxu0 0.0
        %234 = vmatprep.subr.mxu0 0.0
        %235 = vmatpush1.xpose.msra.mxu0 0.0
        %236 = vmatprep.subr.mxu0 0.0
        %237 = vmatpush1.xpose.msra.mxu0 %v204
        %238 = vmatprep.subr.mxu0 0.0
        %239 = vmatpush2.xpose.msra.mxu0 0.0
        %240 = vmatprep.subr.mxu0 0.0
        %241 = vmatpush2.xpose.msra.mxu0 0.0
        %242 = vmatprep.subr.mxu0 0.0
        %243 = vmatpush2.xpose.msra.mxu0 0.0
        %244 = vmatprep.subr.mxu0 0.0
        %245 = vmatpush2.xpose.msra.mxu0 0.0
        %246 = vmatprep.subr.mxu0 0.0
        %247 = vmatpush2.xpose.msra.mxu0 0.0
        %248 = vmatprep.subr.mxu0 0.0
        %249 = vmatpush2.xpose.msra.mxu0 0.0
        %250 = vmatprep.subr.mxu0 0.0
        %251 = vmatpush2.xpose.msra.mxu0 0.0
        %252 = vmatprep.subr.mxu0 0.0
        %253 = vmatpush2.xpose.msra.mxu0 0.0
        %254 = vmatprep.subr.mxu0 0.0
        %255 = vmatpush2.xpose.msra.mxu0 0.0
        %256 = vmatprep.subr.mxu0 0.0
        %257 = vmatpush2.xpose.msra.mxu0 0.0
        %258 = vmatprep.subr.mxu0 0.0
        %259 = vmatpush2.xpose.msra.mxu0 0.0
        %260 = vmatprep.subr.mxu0 0.0
        %261 = vmatpush2.xpose.msra.mxu0 0.0
        %262 = vmatprep.subr.mxu0 0.0
        %263 = vmatpush2.xpose.msra.mxu0 0.0
        %264 = vmatprep.subr.mxu0 0.0
        %265 = vmatpush2.xpose.msra.mxu0 0.0
        %266 = vmatprep.subr.mxu0 0.0
        %267 = vmatpush2.xpose.msra.mxu0 0.0
        %268 = vmatprep.subr.mxu0 0.0
        %269 = vmatpush2.xpose.msra.mxu0 0.0
        %270 = vmatprep.mubr.f32.mxu0 0.0
        %271 = vmatmul.mubr.f32.gmra.mxu0 %v201
        %v272 = vpop.f32.mrf.mxu0
        %v273 = vadd.f32 0.0, %v272
        %v274 = vpop.f32.mrf.mxu0
        %275 = vdwg.mxu0
        %v277 = vsel %vm199, %v196, 0
        %v280 = vsel %vm199, %v160, 0
        %282 = vmatprep.subr.mxu0 0.0
        %283 = vmatpush1.xpose.msra.mxu0 0.0
        %284 = vmatprep.subr.mxu0 0.0
        %285 = vmatpush1.xpose.msra.mxu0 0.0
        %286 = vmatprep.subr.mxu0 0.0
        %287 = vmatpush1.xpose.msra.mxu0 0.0
        %288 = vmatprep.subr.mxu0 0.0
        %289 = vmatpush1.xpose.msra.mxu0 0.0
        %290 = vmatprep.subr.mxu0 0.0
        %291 = vmatpush1.xpose.msra.mxu0 0.0
        %292 = vmatprep.subr.mxu0 0.0
        %293 = vmatpush1.xpose.msra.mxu0 0.0
        %294 = vmatprep.subr.mxu0 0.0
        %295 = vmatpush1.xpose.msra.mxu0 0.0
        %296 = vmatprep.subr.mxu0 0.0
        %297 = vmatpush1.xpose.msra.mxu0 0.0
        %298 = vmatprep.subr.mxu0 0.0
        %299 = vmatpush1.xpose.msra.mxu0 0.0
        %300 = vmatprep.subr.mxu0 0.0
        %301 = vmatpush1.xpose.msra.mxu0 0.0
        %302 = vmatprep.subr.mxu0 0.0
        %303 = vmatpush1.xpose.msra.mxu0 0.0
        %304 = vmatprep.subr.mxu0 0.0
        %305 = vmatpush1.xpose.msra.mxu0 0.0
        %306 = vmatprep.subr.mxu0 0.0
        %307 = vmatpush1.xpose.msra.mxu0 0.0
        %308 = vmatprep.subr.mxu0 0.0
        %309 = vmatpush1.xpose.msra.mxu0 0.0
        %310 = vmatprep.subr.mxu0 0.0
        %311 = vmatpush1.xpose.msra.mxu0 0.0
        %312 = vmatprep.subr.mxu0 0.0
        %313 = vmatpush1.xpose.msra.mxu0 %v280
        %314 = vmatprep.subr.mxu0 0.0
        %315 = vmatpush2.xpose.msra.mxu0 0.0
        %316 = vmatprep.subr.mxu0 0.0
        %317 = vmatpush2.xpose.msra.mxu0 0.0
        %318 = vmatprep.subr.mxu0 0.0
        %319 = vmatpush2.xpose.msra.mxu0 0.0
        %320 = vmatprep.subr.mxu0 0.0
        %321 = vmatpush2.xpose.msra.mxu0 0.0
        %322 = vmatprep.subr.mxu0 0.0
        %323 = vmatpush2.xpose.msra.mxu0 0.0
        %324 = vmatprep.subr.mxu0 0.0
        %325 = vmatpush2.xpose.msra.mxu0 0.0
        %326 = vmatprep.subr.mxu0 0.0
        %327 = vmatpush2.xpose.msra.mxu0 0.0
        %328 = vmatprep.subr.mxu0 0.0
        %329 = vmatpush2.xpose.msra.mxu0 0.0
        %330 = vmatprep.subr.mxu0 0.0
        %331 = vmatpush2.xpose.msra.mxu0 0.0
        %332 = vmatprep.subr.mxu0 0.0
        %333 = vmatpush2.xpose.msra.mxu0 0.0
        %334 = vmatprep.subr.mxu0 0.0
        %335 = vmatpush2.xpose.msra.mxu0 0.0
        %336 = vmatprep.subr.mxu0 0.0
        %337 = vmatpush2.xpose.msra.mxu0 0.0
        %338 = vmatprep.subr.mxu0 0.0
        %339 = vmatpush2.xpose.msra.mxu0 0.0
        %340 = vmatprep.subr.mxu0 0.0
        %341 = vmatpush2.xpose.msra.mxu0 0.0
        %342 = vmatprep.subr.mxu0 0.0
        %343 = vmatpush2.xpose.msra.mxu0 0.0
        %344 = vmatprep.subr.mxu0 0.0
        %345 = vmatpush2.xpose.msra.mxu0 0.0
        %346 = vmatprep.mubr.f32.mxu0 0.0
        %347 = vmatmul.mubr.f32.gmra.mxu0 %v277
        %v348 = vpop.f32.mrf.mxu0
        %v349 = vadd.f32 0.0, %v348
        %v350 = vpop.f32.mrf.mxu0
        %351 = vdwg.mxu0
        %v353 = vsel %vm199, %v197, 0
        %v356 = vsel %vm199, %v161, 0
        %358 = vmatprep.subr.mxu0 0.0
        %359 = vmatpush1.xpose.msra.mxu0 0.0
        %360 = vmatprep.subr.mxu0 0.0
        %361 = vmatpush1.xpose.msra.mxu0 0.0
        %362 = vmatprep.subr.mxu0 0.0
        %363 = vmatpush1.xpose.msra.mxu0 0.0
        %364 = vmatprep.subr.mxu0 0.0
        %365 = vmatpush1.xpose.msra.mxu0 0.0
        %366 = vmatprep.subr.mxu0 0.0
        %367 = vmatpush1.xpose.msra.mxu0 0.0
        %368 = vmatprep.subr.mxu0 0.0
        %369 = vmatpush1.xpose.msra.mxu0 0.0
        %370 = vmatprep.subr.mxu0 0.0
        %371 = vmatpush1.xpose.msra.mxu0 0.0
        %372 = vmatprep.subr.mxu0 0.0
        %373 = vmatpush1.xpose.msra.mxu0 0.0
        %374 = vmatprep.subr.mxu0 0.0
        %375 = vmatpush1.xpose.msra.mxu0 0.0
        %376 = vmatprep.subr.mxu0 0.0
        %377 = vmatpush1.xpose.msra.mxu0 0.0
        %378 = vmatprep.subr.mxu0 0.0
        %379 = vmatpush1.xpose.msra.mxu0 0.0
        %380 = vmatprep.subr.mxu0 0.0
        %381 = vmatpush1.xpose.msra.mxu0 0.0
        %382 = vmatprep.subr.mxu0 0.0
        %383 = vmatpush1.xpose.msra.mxu0 0.0
        %384 = vmatprep.subr.mxu0 0.0
        %385 = vmatpush1.xpose.msra.mxu0 0.0
        %386 = vmatprep.subr.mxu0 0.0
        %387 = vmatpush1.xpose.msra.mxu0 0.0
        %388 = vmatprep.subr.mxu0 0.0
        %389 = vmatpush1.xpose.msra.mxu0 %v356
        %390 = vmatprep.subr.mxu0 0.0
        %391 = vmatpush2.xpose.msra.mxu0 0.0
        %392 = vmatprep.subr.mxu0 0.0
        %393 = vmatpush2.xpose.msra.mxu0 0.0
        %394 = vmatprep.subr.mxu0 0.0
        %395 = vmatpush2.xpose.msra.mxu0 0.0
        %396 = vmatprep.subr.mxu0 0.0
        %397 = vmatpush2.xpose.msra.mxu0 0.0
        %398 = vmatprep.subr.mxu0 0.0
        %399 = vmatpush2.xpose.msra.mxu0 0.0
        %400 = vmatprep.subr.mxu0 0.0
        %401 = vmatpush2.xpose.msra.mxu0 0.0
        %402 = vmatprep.subr.mxu0 0.0
        %403 = vmatpush2.xpose.msra.mxu0 0.0
        %404 = vmatprep.subr.mxu0 0.0
        %405 = vmatpush2.xpose.msra.mxu0 0.0
        %406 = vmatprep.subr.mxu0 0.0
        %407 = vmatpush2.xpose.msra.mxu0 0.0
        %408 = vmatprep.subr.mxu0 0.0
        %409 = vmatpush2.xpose.msra.mxu0 0.0
        %410 = vmatprep.subr.mxu0 0.0
        %411 = vmatpush2.xpose.msra.mxu0 0.0
        %412 = vmatprep.subr.mxu0 0.0
        %413 = vmatpush2.xpose.msra.mxu0 0.0
        %414 = vmatprep.subr.mxu0 0.0
        %415 = vmatpush2.xpose.msra.mxu0 0.0
        %416 = vmatprep.subr.mxu0 0.0
        %417 = vmatpush2.xpose.msra.mxu0 0.0
        %418 = vmatprep.subr.mxu0 0.0
        %419 = vmatpush2.xpose.msra.mxu0 0.0
        %420 = vmatprep.subr.mxu0 0.0
        %421 = vmatpush2.xpose.msra.mxu0 0.0
        %422 = vmatprep.mubr.f32.mxu0 0.0
        %423 = vmatmul.mubr.f32.gmra.mxu0 %v353
        %v424 = vpop.f32.mrf.mxu0
        %v425 = vadd.f32 0.0, %v424
        %v426 = vpop.f32.mrf.mxu0
        %427 = vdwg.mxu0
        %v429 = vsel %vm199, %v198, 0
        %v432 = vsel %vm199, %v162, 0
        %434 = vmatprep.subr.mxu0 0.0
        %435 = vmatpush1.xpose.msra.mxu0 0.0
        %436 = vmatprep.subr.mxu0 0.0
        %437 = vmatpush1.xpose.msra.mxu0 0.0
        %438 = vmatprep.subr.mxu0 0.0
        %439 = vmatpush1.xpose.msra.mxu0 0.0
        %440 = vmatprep.subr.mxu0 0.0
        %441 = vmatpush1.xpose.msra.mxu0 0.0
        %442 = vmatprep.subr.mxu0 0.0
        %443 = vmatpush1.xpose.msra.mxu0 0.0
        %444 = vmatprep.subr.mxu0 0.0
        %445 = vmatpush1.xpose.msra.mxu0 0.0
        %446 = vmatprep.subr.mxu0 0.0
        %447 = vmatpush1.xpose.msra.mxu0 0.0
        %448 = vmatprep.subr.mxu0 0.0
        %449 = vmatpush1.xpose.msra.mxu0 0.0
        %450 = vmatprep.subr.mxu0 0.0
        %451 = vmatpush1.xpose.msra.mxu0 0.0
        %452 = vmatprep.subr.mxu0 0.0
        %453 = vmatpush1.xpose.msra.mxu0 0.0
        %454 = vmatprep.subr.mxu0 0.0
        %455 = vmatpush1.xpose.msra.mxu0 0.0
        %456 = vmatprep.subr.mxu0 0.0
        %457 = vmatpush1.xpose.msra.mxu0 0.0
        %458 = vmatprep.subr.mxu0 0.0
        %459 = vmatpush1.xpose.msra.mxu0 0.0
        %460 = vmatprep.subr.mxu0 0.0
        %461 = vmatpush1.xpose.msra.mxu0 0.0
        %462 = vmatprep.subr.mxu0 0.0
        %463 = vmatpush1.xpose.msra.mxu0 0.0
        %464 = vmatprep.subr.mxu0 0.0
        %465 = vmatpush1.xpose.msra.mxu0 %v432
        %466 = vmatprep.subr.mxu0 0.0
        %467 = vmatpush2.xpose.msra.mxu0 0.0
        %468 = vmatprep.subr.mxu0 0.0
        %469 = vmatpush2.xpose.msra.mxu0 0.0
        %470 = vmatprep.subr.mxu0 0.0
        %471 = vmatpush2.xpose.msra.mxu0 0.0
        %472 = vmatprep.subr.mxu0 0.0
        %473 = vmatpush2.xpose.msra.mxu0 0.0
        %474 = vmatprep.subr.mxu0 0.0
        %475 = vmatpush2.xpose.msra.mxu0 0.0
        %476 = vmatprep.subr.mxu0 0.0
        %477 = vmatpush2.xpose.msra.mxu0 0.0
        %478 = vmatprep.subr.mxu0 0.0
        %479 = vmatpush2.xpose.msra.mxu0 0.0
        %480 = vmatprep.subr.mxu0 0.0
        %481 = vmatpush2.xpose.msra.mxu0 0.0
        %482 = vmatprep.subr.mxu0 0.0
        %483 = vmatpush2.xpose.msra.mxu0 0.0
        %484 = vmatprep.subr.mxu0 0.0
        %485 = vmatpush2.xpose.msra.mxu0 0.0
        %486 = vmatprep.subr.mxu0 0.0
        %487 = vmatpush2.xpose.msra.mxu0 0.0
        %488 = vmatprep.subr.mxu0 0.0
        %489 = vmatpush2.xpose.msra.mxu0 0.0
        %490 = vmatprep.subr.mxu0 0.0
        %491 = vmatpush2.xpose.msra.mxu0 0.0
        %492 = vmatprep.subr.mxu0 0.0
        %493 = vmatpush2.xpose.msra.mxu0 0.0
        %494 = vmatprep.subr.mxu0 0.0
        %495 = vmatpush2.xpose.msra.mxu0 0.0
        %496 = vmatprep.subr.mxu0 0.0
        %497 = vmatpush2.xpose.msra.mxu0 0.0
        %498 = vmatprep.mubr.f32.mxu0 0.0
        %499 = vmatmul.mubr.f32.gmra.mxu0 %v429
        %v500 = vpop.f32.mrf.mxu0
        %v501 = vadd.f32 0.0, %v500
        %v502 = vpop.f32.mrf.mxu0
        %503 = vdwg.mxu0
        %504 = vst.msk [vmem:[%s149] sm:$0xff] %vm199, %v273
        %505 = vst.msk [vmem:[%s149 + $0x8] sm:$0xff] %vm199, %v349
        %506 = vst.msk [vmem:[%s149 + $0x10] sm:$0xff] %vm199, %v425
        %507 = vst.msk [vmem:[%s149 + $0x18] sm:$0xff] %vm199, %v501
        %s508 = sand.u32 %s76, 1
        %s509 = scalar_lea.sflag [#allocation3], %s508
        %s510 = sand.u32 %s76, 1
        %s511 = smul.addr %s510, 32
        %s512 = scalar_lea.vmem [#allocation2], %s511
        // Predicated region
        $region29: #{bimap_2_reduced_forward.3} parent=27 // pred_check
          %p513 = pneg %p86
        $region30: #{bimap_2_reduced_forward.3} parent=27 // pred_check_branch
          %515 = sbr.rel (%p513) target = $region32
        $region31: #{bimap_2_reduced_forward.3} parent=27 // pred_region
          %s517 = ssub.s32 512, 512
          %518 = vsyncadd %s509, %s517
          %s519 = smul.addr %s16, 4
          %s520 = smul.addr %s519, 128
          %s521 = scalar_lea.hbm %s2, %s520
          %s522 = sshll.u32 %s512, 4
          %s523 = int_to_ptr.vmem [resolvable:$true] %s522
          %528 = dma.vmem_to_hbm [thread:$0]  %s523, 512, %s521, %s509, 128, 128, 8
        $region32: #{bimap_2_reduced_forward.3} parent=27 // pred_fallthru
          _
      $region28: #{bimap_2_reduced_forward.3} parent=5 // pred_fallthru
        _
      %p529 = scmp.le.s32.totalorder 2, %s11
      // Predicated region
      $region33: #{bimap_2_reduced_forward.3} parent=5 // pred_check
        %p530 = pneg %p529
      $region34: #{bimap_2_reduced_forward.3} parent=5 // pred_check_branch
        %532 = sbr.rel (%p530) target = $region36
      $region35: #{bimap_2_reduced_forward.3} parent=5 // pred_region
        %s533 = ssub.s32 %s11, 2
        // Predicated region
        $region37: #{bimap_2_reduced_forward.3} parent=35 // pred_check
          %p534 = pneg %p92
        $region38: #{bimap_2_reduced_forward.3} parent=35 // pred_check_branch
          %536 = sbr.rel (%p534) target = $region40
        $region39: #{bimap_2_reduced_forward.3} parent=35 // pred_region
          %s537 = sand.u32 %s77, 1
          %s538 = scalar_lea.sflag [#allocation3], %s537
          %s539 = sand.u32 %s77, 1
          %s540 = smul.addr %s539, 32
          %s541 = scalar_lea.vmem [#allocation2], %s540
          %542 = dma.done %s538, 512
        $region40: #{bimap_2_reduced_forward.3} parent=35 // pred_fallthru
          _
      $region36: #{bimap_2_reduced_forward.3} parent=5 // pred_fallthru
        _
    $region6: #{bimap_2_reduced_forward.3} parent=1 // loop_footer
      %s15 = sadd.s32 1, %s11
    $region7: #{bimap_2_reduced_forward.3} parent=1 // loop_footer_branch
      %10 = sbr.rel target = $region3
    $region8: #{bimap_2_reduced_forward.3} parent=1 // loop_exit
      _
    %543 = vsyncpa [#allocation3], 1
    %s544 = scalar_lea.sflag [#allocation3], 1
    %545 = vsyncpa %s544, 1

// kernel: bimap_2_reduced_forward.2
$region0: #{bimap_2_reduced_forward.2}
  #allocation0 [shape = 'u32[]', space=smem, size = 0x4, offset = 0x4, fixed_abs, tag = 'smem constant byte address 0x4 - core index']
  #allocation1 [shape = 'u32[144,128]{1,0:T(1,128)}', space=vmem, size = 0x12000, scoped, tag = 'internal scratch']
  %s0 = inlined_call_operand.vmem [shape: f32[2,4,16,16], index: 0, kind: input, shape index: {}]
  %s1 = inlined_call_operand.vmem [shape: f32[64,32], index: 1, kind: input, shape index: {}]
  %s2 = inlined_call_operand.vmem [shape: f32[2,8,32], index: 2, kind: output, shape index: {}]
  %s3 = sld [smem:[#allocation0]]
  $region41: #{bimap_2_reduced_forward.2} parent=0
    _
  %s5 = ssub.s32 1, %s3
  %s6 = scalar_select 0, %s5, %s3
  loop: start=0, step=1, limit=4
  $region2: #{bimap_2_reduced_forward.2} parent=0 // loop_pre_header
    _
  $region3: #{bimap_2_reduced_forward.2} parent=0 // loop_header
    %s8 = sphi 0, %s12
    %p9 = scmp.ge.s32.totalorder %s8, 4
    %s18 = sphi 0, %s20
    %s21 = sphi 0, %s18
    %s22 = sphi 0, %s21
    %s38 = sphi 0, %s22
    %s42 = sphi 0, %s42
    %s44 = sphi 0, %s42
    %s45 = sphi 0, %s44
    %s59 = sphi 0, %s45
    %s65 = sphi 0, %s67
    %s68 = sphi 0, %s65
    %s69 = sphi 0, %s68
    %s85 = sphi 0, %s69
  $region4: #{bimap_2_reduced_forward.2} parent=0 // loop_header_branch
    %11 = sbr.rel (%p9) target = $region8
  $region5: #{bimap_2_reduced_forward.2} parent=0 // loop_body
    %s13 = ssub.s32 %s8, 1
    %s14 = ssub.s32 %s8, 2
    %s15 = sadd.s32 %s8, 1
    %s16 = ssub.s32 %s8, %s15
    %p17 = scmp.eq.s32.totalorder %s16, 0
    %s19 = sadd.s32 %s18, 1
    %s20 = scalar_select %p17, %s18, %s19
    %p23 = pneg %p17
    %p24 = scmp.eq.s32.totalorder %s8, 1
    %p25 = por %p23, %p24
    %p26 = scmp.ne.s32.totalorder %s18, %s21
    %p27 = scmp.eq.s32.totalorder %s8, 0
    %p28 = por %p26, %p27
    %p29 = scmp.ne.s32.totalorder %s18, %s21
    %p30 = scmp.eq.s32.totalorder %s13, 1
    %p31 = por %p29, %p30
    %p32 = scmp.ne.s32.totalorder %s21, %s22
    %p33 = scmp.eq.s32.totalorder %s13, 0
    %p34 = por %p32, %p33
    %p35 = scmp.ne.s32.totalorder %s21, %s22
    %p36 = scmp.eq.s32.totalorder %s14, 1
    %p37 = por %p35, %p36
    %p39 = scmp.ne.s32.totalorder %s22, %s38
    %p40 = scmp.eq.s32.totalorder %s14, 0
    %p41 = por %p39, %p40
    %s43 = sadd.s32 %s42, 1
    %p46 = scmp.eq.s32.totalorder %s8, 1
    %p47 = scmp.ne.s32.totalorder %s42, %s44
    %p48 = scmp.eq.s32.totalorder %s8, 0
    %p49 = por %p47, %p48
    %p50 = scmp.ne.s32.totalorder %s42, %s44
    %p51 = scmp.eq.s32.totalorder %s13, 1
    %p52 = por %p50, %p51
    %p53 = scmp.ne.s32.totalorder %s44, %s45
    %p54 = scmp.eq.s32.totalorder %s13, 0
    %p55 = por %p53, %p54
    %p56 = scmp.ne.s32.totalorder %s44, %s45
    %p57 = scmp.eq.s32.totalorder %s14, 1
    %p58 = por %p56, %p57
    %p60 = scmp.ne.s32.totalorder %s45, %s59
    %p61 = scmp.eq.s32.totalorder %s14, 0
    %p62 = por %p60, %p61
    %s63 = ssub.s32 %s8, %s15
    %p64 = scmp.eq.s32.totalorder %s63, 0
    %s66 = sadd.s32 %s65, 1
    %s67 = scalar_select %p64, %s65, %s66
    %p70 = pneg %p64
    %p71 = scmp.eq.s32.totalorder %s8, 1
    %p72 = por %p70, %p71
    %p73 = scmp.ne.s32.totalorder %s65, %s68
    %p74 = scmp.eq.s32.totalorder %s8, 0
    %p75 = por %p73, %p74
    %p76 = scmp.ne.s32.totalorder %s65, %s68
    %p77 = scmp.eq.s32.totalorder %s13, 1
    %p78 = por %p76, %p77
    %p79 = scmp.ne.s32.totalorder %s68, %s69
    %p80 = scmp.eq.s32.totalorder %s13, 0
    %p81 = por %p79, %p80
    %p82 = scmp.ne.s32.totalorder %s68, %s69
    %p83 = scmp.eq.s32.totalorder %s14, 1
    %p84 = por %p82, %p83
    %p86 = scmp.ne.s32.totalorder %s69, %s85
    %p87 = scmp.eq.s32.totalorder %s14, 0
    %p88 = por %p86, %p87
    %p89 = scmp.le.s32.totalorder 1, %s8
    %p90 = scmp.lt.s32.totalorder %s8, 3
    %p91 = pnand %p89, %p90
    %p92 = pneg %p91
    // Predicated region
    $region9: #{bimap_2_reduced_forward.2} parent=5 // pred_check
      _
    $region10: #{bimap_2_reduced_forward.2} parent=5 // pred_check_branch
      %94 = sbr.rel (%p91) target = $region12
    $region11: #{bimap_2_reduced_forward.2} parent=5 // pred_region
      %s95 = ssub.s32 %s8, 1
      // Predicated region
      $region13: #{bimap_2_reduced_forward.2} parent=11 // pred_check
        %p96 = pneg %p55
      $region14: #{bimap_2_reduced_forward.2} parent=11 // pred_check_branch
        %98 = sbr.rel (%p96) target = $region16
      $region15: #{bimap_2_reduced_forward.2} parent=11 // pred_region
        _
      $region16: #{bimap_2_reduced_forward.2} parent=11 // pred_fallthru
        _
    $region12: #{bimap_2_reduced_forward.2} parent=5 // pred_fallthru
      _
    %p99 = scmp.lt.s32.totalorder %s8, 2
    // Predicated region
    $region17: #{bimap_2_reduced_forward.2} parent=5 // pred_check
      %p100 = pneg %p99
    $region18: #{bimap_2_reduced_forward.2} parent=5 // pred_check_branch
      %102 = sbr.rel (%p100) target = $region20
    $region19: #{bimap_2_reduced_forward.2} parent=5 // pred_region
      // Predicated region
      $region21: #{bimap_2_reduced_forward.2} parent=19 // pred_check
        %p103 = pneg %p28
      $region22: #{bimap_2_reduced_forward.2} parent=19 // pred_check_branch
        %105 = sbr.rel (%p103) target = $region24
      $region23: #{bimap_2_reduced_forward.2} parent=19 // pred_region
        %p106 = scmp.lt.s32.totalorder %s8, 1
        %s107 = scalar_select %p106, %s8, 1
        %s108 = smul.addr %s107, 8
        %s109 = smul.addr %s108, 8
        %s110 = scalar_lea.vmem %s0, %s109
      $region24: #{bimap_2_reduced_forward.2} parent=19 // pred_fallthru
        _
    $region20: #{bimap_2_reduced_forward.2} parent=5 // pred_fallthru
      _
    %p111 = scmp.le.s32.totalorder 1, %s8
    %p112 = scmp.lt.s32.totalorder %s8, 3
    %p113 = pnand %p111, %p112
    %p114 = pneg %p113
    // Predicated region
    $region25: #{bimap_2_reduced_forward.2} parent=5 // pred_check
      _
    $region26: #{bimap_2_reduced_forward.2} parent=5 // pred_check_branch
      %116 = sbr.rel (%p113) target = $region28
    $region27: #{bimap_2_reduced_forward.2} parent=5 // pred_region
      %s117 = ssub.s32 %s8, 1
      %p118 = scmp.lt.s32.totalorder %s13, 1
      %s119 = scalar_select %p118, %s13, 1
      %s120 = smul.addr %s119, 8
      %s121 = smul.addr %s120, 8
      %s122 = scalar_lea.vmem %s0, %s121
      %p123 = pneg %p34
      %p124 = pneg %p31
      %p125 = pneg %p55
      %p126 = pneg %p52
      %p127 = pneg %p81
      %p128 = pneg %p78
      %p129 = scmp.lt.s32.totalorder %s13, 1
      %s130 = scalar_select %p129, %s13, 1
      %s131 = smul.addr %s130, 8
      %s132 = scalar_lea.vmem %s2, %s131
      %p133 = scmp.lt.s32.totalorder %s13, 1
      %s134 = scalar_select %p133, %s13, 1
      %s135 = smul.addr %s134, 8
      %s136 = smul.addr %s135, 8
      %s137 = scalar_lea.vmem %s0, %s136
      %p138 = scmp.lt.s32.totalorder %s13, 1
      %s139 = scalar_select %p138, %s13, 1
      %s140 = smul.addr %s139, 8
      %s141 = scalar_lea.vmem %s2, %s140
      %v142 = vld [vmem:[%s1] sm:$0xff]
      %v143 = vld [vmem:[%s1 + $0x8] sm:$0xff]
      %v144 = vld [vmem:[%s1 + $0x10] sm:$0xff]
      %v145 = vld [vmem:[%s1 + $0x18] sm:$0xff]
      %v146 = vld [vmem:[%s1 + $0x20] sm:$0xff]
      %v147 = vld [vmem:[%s1 + $0x28] sm:$0xff]
      %v148 = vld [vmem:[%s1 + $0x30] sm:$0xff]
      %v149 = vld [vmem:[%s1 + $0x38] sm:$0xff]
      %v150 = vlaneseq
      %v151 = vand.u32 %v150, 127
      %v152 = vld [vmem:[%s137] sm:$0xff]
      %v153 = vld [vmem:[%s137 + $0x8] sm:$0xff]
      %v154 = vld [vmem:[%s137 + $0x10] sm:$0xff]
      %v155 = vld [vmem:[%s137 + $0x18] sm:$0xff]
      %v156 = vld [vmem:[%s137 + $0x20] sm:$0xff]
      %v157 = vld [vmem:[%s137 + $0x28] sm:$0xff]
      %v158 = vld [vmem:[%s137 + $0x30] sm:$0xff]
      %v159 = vld [vmem:[%s137 + $0x38] sm:$0xff]
      %vm160 = vcmask 130048
      %v162 = vsel %vm160, %v152, 0
      %v165 = vsel %vm160, %v153, 0
      %167 = vmatprep.subr.mxu0 0.0
      %168 = vmatpush1.msra.mxu0 0.0
      %169 = vmatprep.subr.mxu0 0.0
      %170 = vmatpush1.msra.mxu0 0.0
      %171 = vmatprep.subr.mxu0 0.0
      %172 = vmatpush1.msra.mxu0 0.0
      %173 = vmatprep.subr.mxu0 0.0
      %174 = vmatpush1.msra.mxu0 0.0
      %175 = vmatprep.subr.mxu0 0.0
      %176 = vmatpush1.msra.mxu0 0.0
      %177 = vmatprep.subr.mxu0 0.0
      %178 = vmatpush1.msra.mxu0 0.0
      %179 = vmatprep.subr.mxu0 0.0
      %180 = vmatpush1.msra.mxu0 0.0
      %181 = vmatprep.subr.mxu0 0.0
      %182 = vmatpush1.msra.mxu0 0.0
      %183 = vmatprep.subr.mxu0 0.0
      %184 = vmatpush1.msra.mxu0 0.0
      %185 = vmatprep.subr.mxu0 0.0
      %186 = vmatpush1.msra.mxu0 0.0
      %187 = vmatprep.subr.mxu0 0.0
      %188 = vmatpush1.msra.mxu0 0.0
      %189 = vmatprep.subr.mxu0 0.0
      %190 = vmatpush1.msra.mxu0 0.0
      %191 = vmatprep.subr.mxu0 0.0
      %192 = vmatpush1.msra.mxu0 0.0
      %193 = vmatprep.subr.mxu0 0.0
      %194 = vmatpush1.msra.mxu0 0.0
      %195 = vmatprep.subr.mxu0 0.0
      %196 = vmatpush1.msra.mxu0 %v143
      %197 = vmatprep.subr.mxu0 0.0
      %198 = vmatpush1.msra.mxu0 %v142
      %199 = vmatprep.subr.mxu0 0.0
      %200 = vmatpush2.msra.mxu0 0.0
      %201 = vmatprep.subr.mxu0 0.0
      %202 = vmatpush2.msra.mxu0 0.0
      %203 = vmatprep.subr.mxu0 0.0
      %204 = vmatpush2.msra.mxu0 0.0
      %205 = vmatprep.subr.mxu0 0.0
      %206 = vmatpush2.msra.mxu0 0.0
      %207 = vmatprep.subr.mxu0 0.0
      %208 = vmatpush2.msra.mxu0 0.0
      %209 = vmatprep.subr.mxu0 0.0
      %210 = vmatpush2.msra.mxu0 0.0
      %211 = vmatprep.subr.mxu0 0.0
      %212 = vmatpush2.msra.mxu0 0.0
      %213 = vmatprep.subr.mxu0 0.0
      %214 = vmatpush2.msra.mxu0 0.0
      %215 = vmatprep.subr.mxu0 0.0
      %216 = vmatpush2.msra.mxu0 0.0
      %217 = vmatprep.subr.mxu0 0.0
      %218 = vmatpush2.msra.mxu0 0.0
      %219 = vmatprep.subr.mxu0 0.0
      %220 = vmatpush2.msra.mxu0 0.0
      %221 = vmatprep.subr.mxu0 0.0
      %222 = vmatpush2.msra.mxu0 0.0
      %223 = vmatprep.subr.mxu0 0.0
      %224 = vmatpush2.msra.mxu0 0.0
      %225 = vmatprep.subr.mxu0 0.0
      %226 = vmatpush2.msra.mxu0 0.0
      %227 = vmatprep.subr.mxu0 0.0
      %228 = vmatpush2.msra.mxu0 0.0
      %229 = vmatprep.subr.mxu0 0.0
      %230 = vmatpush2.msra.mxu0 0.0
      %231 = vmatprep.mubr.f32.mxu0 0.0
      %232 = vmatmul.mubr.f32.gmra.mxu0 %v162
      %v233 = vpop.f32.mrf.mxu0
      %v234 = vadd.f32 0.0, %v233
      %v235 = vpop.f32.mrf.mxu0
      %236 = vmatprep.mubr.f32.mxu0 0.0
      %237 = vmatmul.mubr.f32.gmra.mxu0 %v165
      %v238 = vpop.f32.mrf.mxu0
      %v239 = vadd.f32 0.0, %v238
      %v240 = vpop.f32.mrf.mxu0
      %241 = vdwg.mxu0
      %v243 = vsel %vm160, %v154, 0
      %v246 = vsel %vm160, %v155, 0
      %248 = vmatprep.subr.mxu0 0.0
      %249 = vmatpush1.msra.mxu0 0.0
      %250 = vmatprep.subr.mxu0 0.0
      %251 = vmatpush1.msra.mxu0 0.0
      %252 = vmatprep.subr.mxu0 0.0
      %253 = vmatpush1.msra.mxu0 0.0
      %254 = vmatprep.subr.mxu0 0.0
      %255 = vmatpush1.msra.mxu0 0.0
      %256 = vmatprep.subr.mxu0 0.0
      %257 = vmatpush1.msra.mxu0 0.0
      %258 = vmatprep.subr.mxu0 0.0
      %259 = vmatpush1.msra.mxu0 0.0
      %260 = vmatprep.subr.mxu0 0.0
      %261 = vmatpush1.msra.mxu0 0.0
      %262 = vmatprep.subr.mxu0 0.0
      %263 = vmatpush1.msra.mxu0 0.0
      %264 = vmatprep.subr.mxu0 0.0
      %265 = vmatpush1.msra.mxu0 0.0
      %266 = vmatprep.subr.mxu0 0.0
      %267 = vmatpush1.msra.mxu0 0.0
      %268 = vmatprep.subr.mxu0 0.0
      %269 = vmatpush1.msra.mxu0 0.0
      %270 = vmatprep.subr.mxu0 0.0
      %271 = vmatpush1.msra.mxu0 0.0
      %272 = vmatprep.subr.mxu0 0.0
      %273 = vmatpush1.msra.mxu0 0.0
      %274 = vmatprep.subr.mxu0 0.0
      %275 = vmatpush1.msra.mxu0 0.0
      %276 = vmatprep.subr.mxu0 0.0
      %277 = vmatpush1.msra.mxu0 %v145
      %278 = vmatprep.subr.mxu0 0.0
      %279 = vmatpush1.msra.mxu0 %v144
      %280 = vmatprep.subr.mxu0 0.0
      %281 = vmatpush2.msra.mxu0 0.0
      %282 = vmatprep.subr.mxu0 0.0
      %283 = vmatpush2.msra.mxu0 0.0
      %284 = vmatprep.subr.mxu0 0.0
      %285 = vmatpush2.msra.mxu0 0.0
      %286 = vmatprep.subr.mxu0 0.0
      %287 = vmatpush2.msra.mxu0 0.0
      %288 = vmatprep.subr.mxu0 0.0
      %289 = vmatpush2.msra.mxu0 0.0
      %290 = vmatprep.subr.mxu0 0.0
      %291 = vmatpush2.msra.mxu0 0.0
      %292 = vmatprep.subr.mxu0 0.0
      %293 = vmatpush2.msra.mxu0 0.0
      %294 = vmatprep.subr.mxu0 0.0
      %295 = vmatpush2.msra.mxu0 0.0
      %296 = vmatprep.subr.mxu0 0.0
      %297 = vmatpush2.msra.mxu0 0.0
      %298 = vmatprep.subr.mxu0 0.0
      %299 = vmatpush2.msra.mxu0 0.0
      %300 = vmatprep.subr.mxu0 0.0
      %301 = vmatpush2.msra.mxu0 0.0
      %302 = vmatprep.subr.mxu0 0.0
      %303 = vmatpush2.msra.mxu0 0.0
      %304 = vmatprep.subr.mxu0 0.0
      %305 = vmatpush2.msra.mxu0 0.0
      %306 = vmatprep.subr.mxu0 0.0
      %307 = vmatpush2.msra.mxu0 0.0
      %308 = vmatprep.subr.mxu0 0.0
      %309 = vmatpush2.msra.mxu0 0.0
      %310 = vmatprep.subr.mxu0 0.0
      %311 = vmatpush2.msra.mxu0 0.0
      %312 = vmatprep.mubr.f32.mxu0 0.0
      %313 = vmatmul.mubr.f32.gmra.mxu0 %v243
      %v314 = vpop.f32.mrf.mxu0
      %v315 = vadd.f32 0.0, %v314
      %v316 = vpop.f32.mrf.mxu0
      %317 = vmatprep.mubr.f32.mxu0 0.0
      %318 = vmatmul.mubr.f32.gmra.mxu0 %v246
      %v319 = vpop.f32.mrf.mxu0
      %v320 = vadd.f32 0.0, %v319
      %v321 = vpop.f32.mrf.mxu0
      %322 = vdwg.mxu0
      %323 = vxpose.xlu0.b32.start [1/16] %v144, 128
      %324 = vxpose.xlu0.b32.cont [2/16] %v145, 128
      %325 = vxpose.xlu0.b32.cont [3/16] 0.0, 128
      %326 = vxpose.xlu0.b32.cont [4/16] 0.0, 128
      %327 = vxpose.xlu0.b32.cont [5/16] 0.0, 128
      %328 = vxpose.xlu0.b32.cont [6/16] 0.0, 128
      %329 = vxpose.xlu0.b32.cont [7/16] 0.0, 128
      %330 = vxpose.xlu0.b32.cont [8/16] 0.0, 128
      %331 = vxpose.xlu0.b32.cont [9/16] 0.0, 128
      %332 = vxpose.xlu0.b32.cont [10/16] 0.0, 128
      %333 = vxpose.xlu0.b32.cont [11/16] 0.0, 128
      %334 = vxpose.xlu0.b32.cont [12/16] 0.0, 128
      %335 = vxpose.xlu0.b32.cont [13/16] 0.0, 128
      %336 = vxpose.xlu0.b32.cont [14/16] 0.0, 128
      %337 = vxpose.xlu0.b32.cont [15/16] 0.0, 128
      %338 = vxpose.xlu0.b32.end [16/16] 0.0, 128
      %v339 = vpop.trf.xlu0
      %v340 = vpop.trf.xlu0
      %v341 = vpop.trf.xlu0
      %v342 = vpop.trf.xlu0
      %v343 = vpop.trf.xlu0
      %v344 = vpop.trf.xlu0
      %v345 = vpop.trf.xlu0
      %v346 = vpop.trf.xlu0
      %v347 = vpop.trf.xlu0
      %v348 = vpop.trf.xlu0
      %v349 = vpop.trf.xlu0
      %v350 = vpop.trf.xlu0
      %v351 = vpop.trf.xlu0
      %v352 = vpop.trf.xlu0
      %v353 = vpop.trf.xlu0
      %v354 = vpop.trf.xlu0
      %v356 = vsel %vm160, %v339, 0
      %v359 = vsel %vm160, %v340, 0
      %v362 = vsel %vm160, %v341, 0
      %v365 = vsel %vm160, %v342, 0
      %367 = vmatprep.subr.mxu0 0.0
      %368 = vmatpush1.msra.mxu0 0.0
      %369 = vmatprep.subr.mxu0 0.0
      %370 = vmatpush1.msra.mxu0 0.0
      %371 = vmatprep.subr.mxu0 0.0
      %372 = vmatpush1.msra.mxu0 0.0
      %373 = vmatprep.subr.mxu0 0.0
      %374 = vmatpush1.msra.mxu0 0.0
      %375 = vmatprep.subr.mxu0 0.0
      %376 = vmatpush1.msra.mxu0 0.0
      %377 = vmatprep.subr.mxu0 0.0
      %378 = vmatpush1.msra.mxu0 0.0
      %379 = vmatprep.subr.mxu0 0.0
      %380 = vmatpush1.msra.mxu0 0.0
      %381 = vmatprep.subr.mxu0 0.0
      %382 = vmatpush1.msra.mxu0 0.0
      %383 = vmatprep.subr.mxu0 0.0
      %384 = vmatpush1.msra.mxu0 0.0
      %385 = vmatprep.subr.mxu0 0.0
      %386 = vmatpush1.msra.mxu0 0.0
      %387 = vmatprep.subr.mxu0 0.0
      %388 = vmatpush1.msra.mxu0 0.0
      %389 = vmatprep.subr.mxu0 0.0
      %390 = vmatpush1.msra.mxu0 0.0
      %391 = vmatprep.subr.mxu0 0.0
      %392 = vmatpush1.msra.mxu0 0.0
      %393 = vmatprep.subr.mxu0 0.0
      %394 = vmatpush1.msra.mxu0 0.0
      %395 = vmatprep.subr.mxu0 0.0
      %396 = vmatpush1.msra.mxu0 %v320
      %397 = vmatprep.subr.mxu0 0.0
      %398 = vmatpush1.msra.mxu0 %v315
      %399 = vmatprep.subr.mxu0 0.0
      %400 = vmatpush2.msra.mxu0 0.0
      %401 = vmatprep.subr.mxu0 0.0
      %402 = vmatpush2.msra.mxu0 0.0
      %403 = vmatprep.subr.mxu0 0.0
      %404 = vmatpush2.msra.mxu0 0.0
      %405 = vmatprep.subr.mxu0 0.0
      %406 = vmatpush2.msra.mxu0 0.0
      %407 = vmatprep.subr.mxu0 0.0
      %408 = vmatpush2.msra.mxu0 0.0
      %409 = vmatprep.subr.mxu0 0.0
      %410 = vmatpush2.msra.mxu0 0.0
      %411 = vmatprep.subr.mxu0 0.0
      %412 = vmatpush2.msra.mxu0 0.0
      %413 = vmatprep.subr.mxu0 0.0
      %414 = vmatpush2.msra.mxu0 0.0
      %415 = vmatprep.subr.mxu0 0.0
      %416 = vmatpush2.msra.mxu0 0.0
      %417 = vmatprep.subr.mxu0 0.0
      %418 = vmatpush2.msra.mxu0 0.0
      %419 = vmatprep.subr.mxu0 0.0
      %420 = vmatpush2.msra.mxu0 0.0
      %421 = vmatprep.subr.mxu0 0.0
      %422 = vmatpush2.msra.mxu0 0.0
      %423 = vmatprep.subr.mxu0 0.0
      %424 = vmatpush2.msra.mxu0 0.0
      %425 = vmatprep.subr.mxu0 0.0
      %426 = vmatpush2.msra.mxu0 0.0
      %427 = vmatprep.subr.mxu0 0.0
      %428 = vmatpush2.msra.mxu0 0.0
      %429 = vmatprep.subr.mxu0 0.0
      %430 = vmatpush2.msra.mxu0 0.0
      %431 = vmatprep.mubr.f32.mxu0 0.0
      %432 = vmatmul.mubr.f32.gmra.mxu0 %v356
      %v433 = vpop.f32.mrf.mxu0
      %v434 = vadd.f32 0.0, %v433
      %v435 = vpop.f32.mrf.mxu0
      %436 = vmatprep.mubr.f32.mxu0 0.0
      %437 = vmatmul.mubr.f32.gmra.mxu0 %v359
      %v438 = vpop.f32.mrf.mxu0
      %v439 = vadd.f32 0.0, %v438
      %v440 = vpop.f32.mrf.mxu0
      %441 = vmatprep.mubr.f32.mxu0 0.0
      %442 = vmatmul.mubr.f32.gmra.mxu0 %v362
      %v443 = vpop.f32.mrf.mxu0
      %v444 = vadd.f32 0.0, %v443
      %v445 = vpop.f32.mrf.mxu0
      %446 = vmatprep.mubr.f32.mxu0 0.0
      %447 = vmatmul.mubr.f32.gmra.mxu0 %v365
      %v448 = vpop.f32.mrf.mxu0
      %v449 = vadd.f32 0.0, %v448
      %v450 = vpop.f32.mrf.mxu0
      %451 = vdwg.mxu0
      %452 = vxpose.xlu0.b32.start [1/16] %v142, 128
      %453 = vxpose.xlu0.b32.cont [2/16] %v143, 128
      %454 = vxpose.xlu0.b32.cont [3/16] 0.0, 128
      %455 = vxpose.xlu0.b32.cont [4/16] 0.0, 128
      %456 = vxpose.xlu0.b32.cont [5/16] 0.0, 128
      %457 = vxpose.xlu0.b32.cont [6/16] 0.0, 128
      %458 = vxpose.xlu0.b32.cont [7/16] 0.0, 128
      %459 = vxpose.xlu0.b32.cont [8/16] 0.0, 128
      %460 = vxpose.xlu0.b32.cont [9/16] 0.0, 128
      %461 = vxpose.xlu0.b32.cont [10/16] 0.0, 128
      %462 = vxpose.xlu0.b32.cont [11/16] 0.0, 128
      %463 = vxpose.xlu0.b32.cont [12/16] 0.0, 128
      %464 = vxpose.xlu0.b32.cont [13/16] 0.0, 128
      %465 = vxpose.xlu0.b32.cont [14/16] 0.0, 128
      %466 = vxpose.xlu0.b32.cont [15/16] 0.0, 128
      %467 = vxpose.xlu0.b32.end [16/16] 0.0, 128
      %v468 = vpop.trf.xlu0
      %v469 = vpop.trf.xlu0
      %v470 = vpop.trf.xlu0
      %v471 = vpop.trf.xlu0
      %v472 = vpop.trf.xlu0
      %v473 = vpop.trf.xlu0
      %v474 = vpop.trf.xlu0
      %v475 = vpop.trf.xlu0
      %v476 = vpop.trf.xlu0
      %v477 = vpop.trf.xlu0
      %v478 = vpop.trf.xlu0
      %v479 = vpop.trf.xlu0
      %v480 = vpop.trf.xlu0
      %v481 = vpop.trf.xlu0
      %v482 = vpop.trf.xlu0
      %v483 = vpop.trf.xlu0
      %v485 = vsel %vm160, %v468, 0
      %v488 = vsel %vm160, %v469, 0
      %v491 = vsel %vm160, %v470, 0
      %v494 = vsel %vm160, %v471, 0
      %496 = vmatprep.subr.mxu0 0.0
      %497 = vmatpush1.msra.mxu0 0.0
      %498 = vmatprep.subr.mxu0 0.0
      %499 = vmatpush1.msra.mxu0 0.0
      %500 = vmatprep.subr.mxu0 0.0
      %501 = vmatpush1.msra.mxu0 0.0
      %502 = vmatprep.subr.mxu0 0.0
      %503 = vmatpush1.msra.mxu0 0.0
      %504 = vmatprep.subr.mxu0 0.0
      %505 = vmatpush1.msra.mxu0 0.0
      %506 = vmatprep.subr.mxu0 0.0
      %507 = vmatpush1.msra.mxu0 0.0
      %508 = vmatprep.subr.mxu0 0.0
      %509 = vmatpush1.msra.mxu0 0.0
      %510 = vmatprep.subr.mxu0 0.0
      %511 = vmatpush1.msra.mxu0 0.0
      %512 = vmatprep.subr.mxu0 0.0
      %513 = vmatpush1.msra.mxu0 0.0
      %514 = vmatprep.subr.mxu0 0.0
      %515 = vmatpush1.msra.mxu0 0.0
      %516 = vmatprep.subr.mxu0 0.0
      %517 = vmatpush1.msra.mxu0 0.0
      %518 = vmatprep.subr.mxu0 0.0
      %519 = vmatpush1.msra.mxu0 0.0
      %520 = vmatprep.subr.mxu0 0.0
      %521 = vmatpush1.msra.mxu0 0.0
      %522 = vmatprep.subr.mxu0 0.0
      %523 = vmatpush1.msra.mxu0 0.0
      %524 = vmatprep.subr.mxu0 0.0
      %525 = vmatpush1.msra.mxu0 %v239
      %526 = vmatprep.subr.mxu0 0.0
      %527 = vmatpush1.msra.mxu0 %v234
      %528 = vmatprep.subr.mxu0 0.0
      %529 = vmatpush2.msra.mxu0 0.0
      %530 = vmatprep.subr.mxu0 0.0
      %531 = vmatpush2.msra.mxu0 0.0
      %532 = vmatprep.subr.mxu0 0.0
      %533 = vmatpush2.msra.mxu0 0.0
      %534 = vmatprep.subr.mxu0 0.0
      %535 = vmatpush2.msra.mxu0 0.0
      %536 = vmatprep.subr.mxu0 0.0
      %537 = vmatpush2.msra.mxu0 0.0
      %538 = vmatprep.subr.mxu0 0.0
      %539 = vmatpush2.msra.mxu0 0.0
      %540 = vmatprep.subr.mxu0 0.0
      %541 = vmatpush2.msra.mxu0 0.0
      %542 = vmatprep.subr.mxu0 0.0
      %543 = vmatpush2.msra.mxu0 0.0
      %544 = vmatprep.subr.mxu0 0.0
      %545 = vmatpush2.msra.mxu0 0.0
      %546 = vmatprep.subr.mxu0 0.0
      %547 = vmatpush2.msra.mxu0 0.0
      %548 = vmatprep.subr.mxu0 0.0
      %549 = vmatpush2.msra.mxu0 0.0
      %550 = vmatprep.subr.mxu0 0.0
      %551 = vmatpush2.msra.mxu0 0.0
      %552 = vmatprep.subr.mxu0 0.0
      %553 = vmatpush2.msra.mxu0 0.0
      %554 = vmatprep.subr.mxu0 0.0
      %555 = vmatpush2.msra.mxu0 0.0
      %556 = vmatprep.subr.mxu0 0.0
      %557 = vmatpush2.msra.mxu0 0.0
      %558 = vmatprep.subr.mxu0 0.0
      %559 = vmatpush2.msra.mxu0 0.0
      %560 = vmatprep.mubr.f32.mxu0 0.0
      %561 = vmatmul.mubr.f32.gmra.mxu0 %v485
      %v562 = vpop.f32.mrf.mxu0
      %v563 = vadd.f32 %v434, %v562
      %v564 = vpop.f32.mrf.mxu0
      %565 = vmatprep.mubr.f32.mxu0 0.0
      %566 = vmatmul.mubr.f32.gmra.mxu0 %v488
      %v567 = vpop.f32.mrf.mxu0
      %v568 = vadd.f32 %v439, %v567
      %v569 = vpop.f32.mrf.mxu0
      %570 = vmatprep.mubr.f32.mxu0 0.0
      %571 = vmatmul.mubr.f32.gmra.mxu0 %v491
      %v572 = vpop.f32.mrf.mxu0
      %v573 = vadd.f32 %v444, %v572
      %v574 = vpop.f32.mrf.mxu0
      %575 = vmatprep.mubr.f32.mxu0 0.0
      %576 = vmatmul.mubr.f32.gmra.mxu0 %v494
      %v577 = vpop.f32.mrf.mxu0
      %v578 = vadd.f32 %v449, %v577
      %v579 = vpop.f32.mrf.mxu0
      %580 = vdwg.mxu0
      %v582 = vsel %vm160, %v156, 0
      %v585 = vsel %vm160, %v157, 0
      %587 = vmatprep.subr.mxu0 0.0
      %588 = vmatpush1.msra.mxu0 0.0
      %589 = vmatprep.subr.mxu0 0.0
      %590 = vmatpush1.msra.mxu0 0.0
      %591 = vmatprep.subr.mxu0 0.0
      %592 = vmatpush1.msra.mxu0 0.0
      %593 = vmatprep.subr.mxu0 0.0
      %594 = vmatpush1.msra.mxu0 0.0
      %595 = vmatprep.subr.mxu0 0.0
      %596 = vmatpush1.msra.mxu0 0.0
      %597 = vmatprep.subr.mxu0 0.0
      %598 = vmatpush1.msra.mxu0 0.0
      %599 = vmatprep.subr.mxu0 0.0
      %600 = vmatpush1.msra.mxu0 0.0
      %601 = vmatprep.subr.mxu0 0.0
      %602 = vmatpush1.msra.mxu0 0.0
      %603 = vmatprep.subr.mxu0 0.0
      %604 = vmatpush1.msra.mxu0 0.0
      %605 = vmatprep.subr.mxu0 0.0
      %606 = vmatpush1.msra.mxu0 0.0
      %607 = vmatprep.subr.mxu0 0.0
      %608 = vmatpush1.msra.mxu0 0.0
      %609 = vmatprep.subr.mxu0 0.0
      %610 = vmatpush1.msra.mxu0 0.0
      %611 = vmatprep.subr.mxu0 0.0
      %612 = vmatpush1.msra.mxu0 0.0
      %613 = vmatprep.subr.mxu0 0.0
      %614 = vmatpush1.msra.mxu0 0.0
      %615 = vmatprep.subr.mxu0 0.0
      %616 = vmatpush1.msra.mxu0 %v147
      %617 = vmatprep.subr.mxu0 0.0
      %618 = vmatpush1.msra.mxu0 %v146
      %619 = vmatprep.subr.mxu0 0.0
      %620 = vmatpush2.msra.mxu0 0.0
      %621 = vmatprep.subr.mxu0 0.0
      %622 = vmatpush2.msra.mxu0 0.0
      %623 = vmatprep.subr.mxu0 0.0
      %624 = vmatpush2.msra.mxu0 0.0
      %625 = vmatprep.subr.mxu0 0.0
      %626 = vmatpush2.msra.mxu0 0.0
      %627 = vmatprep.subr.mxu0 0.0
      %628 = vmatpush2.msra.mxu0 0.0
      %629 = vmatprep.subr.mxu0 0.0
      %630 = vmatpush2.msra.mxu0 0.0
      %631 = vmatprep.subr.mxu0 0.0
      %632 = vmatpush2.msra.mxu0 0.0
      %633 = vmatprep.subr.mxu0 0.0
      %634 = vmatpush2.msra.mxu0 0.0
      %635 = vmatprep.subr.mxu0 0.0
      %636 = vmatpush2.msra.mxu0 0.0
      %637 = vmatprep.subr.mxu0 0.0
      %638 = vmatpush2.msra.mxu0 0.0
      %639 = vmatprep.subr.mxu0 0.0
      %640 = vmatpush2.msra.mxu0 0.0
      %641 = vmatprep.subr.mxu0 0.0
      %642 = vmatpush2.msra.mxu0 0.0
      %643 = vmatprep.subr.mxu0 0.0
      %644 = vmatpush2.msra.mxu0 0.0
      %645 = vmatprep.subr.mxu0 0.0
      %646 = vmatpush2.msra.mxu0 0.0
      %647 = vmatprep.subr.mxu0 0.0
      %648 = vmatpush2.msra.mxu0 0.0
      %649 = vmatprep.subr.mxu0 0.0
      %650 = vmatpush2.msra.mxu0 0.0
      %651 = vmatprep.mubr.f32.mxu0 0.0
      %652 = vmatmul.mubr.f32.gmra.mxu0 %v582
      %v653 = vpop.f32.mrf.mxu0
      %v654 = vadd.f32 0.0, %v653
      %v655 = vpop.f32.mrf.mxu0
      %656 = vmatprep.mubr.f32.mxu0 0.0
      %657 = vmatmul.mubr.f32.gmra.mxu0 %v585
      %v658 = vpop.f32.mrf.mxu0
      %v659 = vadd.f32 0.0, %v658
      %v660 = vpop.f32.mrf.mxu0
      %661 = vdwg.mxu0
      %662 = vxpose.xlu0.b32.start [1/16] %v146, 128
      %663 = vxpose.xlu0.b32.cont [2/16] %v147, 128
      %664 = vxpose.xlu0.b32.cont [3/16] 0.0, 128
      %665 = vxpose.xlu0.b32.cont [4/16] 0.0, 128
      %666 = vxpose.xlu0.b32.cont [5/16] 0.0, 128
      %667 = vxpose.xlu0.b32.cont [6/16] 0.0, 128
      %668 = vxpose.xlu0.b32.cont [7/16] 0.0, 128
      %669 = vxpose.xlu0.b32.cont [8/16] 0.0, 128
      %670 = vxpose.xlu0.b32.cont [9/16] 0.0, 128
      %671 = vxpose.xlu0.b32.cont [10/16] 0.0, 128
      %672 = vxpose.xlu0.b32.cont [11/16] 0.0, 128
      %673 = vxpose.xlu0.b32.cont [12/16] 0.0, 128
      %674 = vxpose.xlu0.b32.cont [13/16] 0.0, 128
      %675 = vxpose.xlu0.b32.cont [14/16] 0.0, 128
      %676 = vxpose.xlu0.b32.cont [15/16] 0.0, 128
      %677 = vxpose.xlu0.b32.end [16/16] 0.0, 128
      %v678 = vpop.trf.xlu0
      %v679 = vpop.trf.xlu0
      %v680 = vpop.trf.xlu0
      %v681 = vpop.trf.xlu0
      %v682 = vpop.trf.xlu0
      %v683 = vpop.trf.xlu0
      %v684 = vpop.trf.xlu0
      %v685 = vpop.trf.xlu0
      %v686 = vpop.trf.xlu0
      %v687 = vpop.trf.xlu0
      %v688 = vpop.trf.xlu0
      %v689 = vpop.trf.xlu0
      %v690 = vpop.trf.xlu0
      %v691 = vpop.trf.xlu0
      %v692 = vpop.trf.xlu0
      %v693 = vpop.trf.xlu0
      %v695 = vsel %vm160, %v678, 0
      %v698 = vsel %vm160, %v679, 0
      %v701 = vsel %vm160, %v680, 0
      %v704 = vsel %vm160, %v681, 0
      %706 = vmatprep.subr.mxu0 0.0
      %707 = vmatpush1.msra.mxu0 0.0
      %708 = vmatprep.subr.mxu0 0.0
      %709 = vmatpush1.msra.mxu0 0.0
      %710 = vmatprep.subr.mxu0 0.0
      %711 = vmatpush1.msra.mxu0 0.0
      %712 = vmatprep.subr.mxu0 0.0
      %713 = vmatpush1.msra.mxu0 0.0
      %714 = vmatprep.subr.mxu0 0.0
      %715 = vmatpush1.msra.mxu0 0.0
      %716 = vmatprep.subr.mxu0 0.0
      %717 = vmatpush1.msra.mxu0 0.0
      %718 = vmatprep.subr.mxu0 0.0
      %719 = vmatpush1.msra.mxu0 0.0
      %720 = vmatprep.subr.mxu0 0.0
      %721 = vmatpush1.msra.mxu0 0.0
      %722 = vmatprep.subr.mxu0 0.0
      %723 = vmatpush1.msra.mxu0 0.0
      %724 = vmatprep.subr.mxu0 0.0
      %725 = vmatpush1.msra.mxu0 0.0
      %726 = vmatprep.subr.mxu0 0.0
      %727 = vmatpush1.msra.mxu0 0.0
      %728 = vmatprep.subr.mxu0 0.0
      %729 = vmatpush1.msra.mxu0 0.0
      %730 = vmatprep.subr.mxu0 0.0
      %731 = vmatpush1.msra.mxu0 0.0
      %732 = vmatprep.subr.mxu0 0.0
      %733 = vmatpush1.msra.mxu0 0.0
      %734 = vmatprep.subr.mxu0 0.0
      %735 = vmatpush1.msra.mxu0 %v659
      %736 = vmatprep.subr.mxu0 0.0
      %737 = vmatpush1.msra.mxu0 %v654
      %738 = vmatprep.subr.mxu0 0.0
      %739 = vmatpush2.msra.mxu0 0.0
      %740 = vmatprep.subr.mxu0 0.0
      %741 = vmatpush2.msra.mxu0 0.0
      %742 = vmatprep.subr.mxu0 0.0
      %743 = vmatpush2.msra.mxu0 0.0
      %744 = vmatprep.subr.mxu0 0.0
      %745 = vmatpush2.msra.mxu0 0.0
      %746 = vmatprep.subr.mxu0 0.0
      %747 = vmatpush2.msra.mxu0 0.0
      %748 = vmatprep.subr.mxu0 0.0
      %749 = vmatpush2.msra.mxu0 0.0
      %750 = vmatprep.subr.mxu0 0.0
      %751 = vmatpush2.msra.mxu0 0.0
      %752 = vmatprep.subr.mxu0 0.0
      %753 = vmatpush2.msra.mxu0 0.0
      %754 = vmatprep.subr.mxu0 0.0
      %755 = vmatpush2.msra.mxu0 0.0
      %756 = vmatprep.subr.mxu0 0.0
      %757 = vmatpush2.msra.mxu0 0.0
      %758 = vmatprep.subr.mxu0 0.0
      %759 = vmatpush2.msra.mxu0 0.0
      %760 = vmatprep.subr.mxu0 0.0
      %761 = vmatpush2.msra.mxu0 0.0
      %762 = vmatprep.subr.mxu0 0.0
      %763 = vmatpush2.msra.mxu0 0.0
      %764 = vmatprep.subr.mxu0 0.0
      %765 = vmatpush2.msra.mxu0 0.0
      %766 = vmatprep.subr.mxu0 0.0
      %767 = vmatpush2.msra.mxu0 0.0
      %768 = vmatprep.subr.mxu0 0.0
      %769 = vmatpush2.msra.mxu0 0.0
      %770 = vmatprep.mubr.f32.mxu0 0.0
      %771 = vmatmul.mubr.f32.gmra.mxu0 %v695
      %v772 = vpop.f32.mrf.mxu0
      %v773 = vadd.f32 0.0, %v772
      %v774 = vpop.f32.mrf.mxu0
      %775 = vmatprep.mubr.f32.mxu0 0.0
      %776 = vmatmul.mubr.f32.gmra.mxu0 %v698
      %v777 = vpop.f32.mrf.mxu0
      %v778 = vadd.f32 0.0, %v777
      %v779 = vpop.f32.mrf.mxu0
      %780 = vmatprep.mubr.f32.mxu0 0.0
      %781 = vmatmul.mubr.f32.gmra.mxu0 %v701
      %v782 = vpop.f32.mrf.mxu0
      %v783 = vadd.f32 0.0, %v782
      %v784 = vpop.f32.mrf.mxu0
      %785 = vmatprep.mubr.f32.mxu0 0.0
      %786 = vmatmul.mubr.f32.gmra.mxu0 %v704
      %v787 = vpop.f32.mrf.mxu0
      %v788 = vadd.f32 0.0, %v787
      %v789 = vpop.f32.mrf.mxu0
      %790 = vdwg.mxu0
      %v791 = vadd.f32 %v563, %v773
      %v792 = vadd.f32 %v568, %v778
      %v793 = vadd.f32 %v573, %v783
      %v794 = vadd.f32 %v578, %v788
      %v796 = vsel %vm160, %v158, 0
      %v799 = vsel %vm160, %v159, 0
      %801 = vmatprep.subr.mxu0 0.0
      %802 = vmatpush1.msra.mxu0 0.0
      %803 = vmatprep.subr.mxu0 0.0
      %804 = vmatpush1.msra.mxu0 0.0
      %805 = vmatprep.subr.mxu0 0.0
      %806 = vmatpush1.msra.mxu0 0.0
      %807 = vmatprep.subr.mxu0 0.0
      %808 = vmatpush1.msra.mxu0 0.0
      %809 = vmatprep.subr.mxu0 0.0
      %810 = vmatpush1.msra.mxu0 0.0
      %811 = vmatprep.subr.mxu0 0.0
      %812 = vmatpush1.msra.mxu0 0.0
      %813 = vmatprep.subr.mxu0 0.0
      %814 = vmatpush1.msra.mxu0 0.0
      %815 = vmatprep.subr.mxu0 0.0
      %816 = vmatpush1.msra.mxu0 0.0
      %817 = vmatprep.subr.mxu0 0.0
      %818 = vmatpush1.msra.mxu0 0.0
      %819 = vmatprep.subr.mxu0 0.0
      %820 = vmatpush1.msra.mxu0 0.0
      %821 = vmatprep.subr.mxu0 0.0
      %822 = vmatpush1.msra.mxu0 0.0
      %823 = vmatprep.subr.mxu0 0.0
      %824 = vmatpush1.msra.mxu0 0.0
      %825 = vmatprep.subr.mxu0 0.0
      %826 = vmatpush1.msra.mxu0 0.0
      %827 = vmatprep.subr.mxu0 0.0
      %828 = vmatpush1.msra.mxu0 0.0
      %829 = vmatprep.subr.mxu0 0.0
      %830 = vmatpush1.msra.mxu0 %v149
      %831 = vmatprep.subr.mxu0 0.0
      %832 = vmatpush1.msra.mxu0 %v148
      %833 = vmatprep.subr.mxu0 0.0
      %834 = vmatpush2.msra.mxu0 0.0
      %835 = vmatprep.subr.mxu0 0.0
      %836 = vmatpush2.msra.mxu0 0.0
      %837 = vmatprep.subr.mxu0 0.0
      %838 = vmatpush2.msra.mxu0 0.0
      %839 = vmatprep.subr.mxu0 0.0
      %840 = vmatpush2.msra.mxu0 0.0
      %841 = vmatprep.subr.mxu0 0.0
      %842 = vmatpush2.msra.mxu0 0.0
      %843 = vmatprep.subr.mxu0 0.0
      %844 = vmatpush2.msra.mxu0 0.0
      %845 = vmatprep.subr.mxu0 0.0
      %846 = vmatpush2.msra.mxu0 0.0
      %847 = vmatprep.subr.mxu0 0.0
      %848 = vmatpush2.msra.mxu0 0.0
      %849 = vmatprep.subr.mxu0 0.0
      %850 = vmatpush2.msra.mxu0 0.0
      %851 = vmatprep.subr.mxu0 0.0
      %852 = vmatpush2.msra.mxu0 0.0
      %853 = vmatprep.subr.mxu0 0.0
      %854 = vmatpush2.msra.mxu0 0.0
      %855 = vmatprep.subr.mxu0 0.0
      %856 = vmatpush2.msra.mxu0 0.0
      %857 = vmatprep.subr.mxu0 0.0
      %858 = vmatpush2.msra.mxu0 0.0
      %859 = vmatprep.subr.mxu0 0.0
      %860 = vmatpush2.msra.mxu0 0.0
      %861 = vmatprep.subr.mxu0 0.0
      %862 = vmatpush2.msra.mxu0 0.0
      %863 = vmatprep.subr.mxu0 0.0
      %864 = vmatpush2.msra.mxu0 0.0
      %865 = vmatprep.mubr.f32.mxu0 0.0
      %866 = vmatmul.mubr.f32.gmra.mxu0 %v796
      %v867 = vpop.f32.mrf.mxu0
      %v868 = vadd.f32 0.0, %v867
      %v869 = vpop.f32.mrf.mxu0
      %870 = vmatprep.mubr.f32.mxu0 0.0
      %871 = vmatmul.mubr.f32.gmra.mxu0 %v799
      %v872 = vpop.f32.mrf.mxu0
      %v873 = vadd.f32 0.0, %v872
      %v874 = vpop.f32.mrf.mxu0
      %875 = vdwg.mxu0
      %876 = vxpose.xlu0.b32.start [1/16] %v148, 128
      %877 = vxpose.xlu0.b32.cont [2/16] %v149, 128
      %878 = vxpose.xlu0.b32.cont [3/16] 0.0, 128
      %879 = vxpose.xlu0.b32.cont [4/16] 0.0, 128
      %880 = vxpose.xlu0.b32.cont [5/16] 0.0, 128
      %881 = vxpose.xlu0.b32.cont [6/16] 0.0, 128
      %882 = vxpose.xlu0.b32.cont [7/16] 0.0, 128
      %883 = vxpose.xlu0.b32.cont [8/16] 0.0, 128
      %884 = vxpose.xlu0.b32.cont [9/16] 0.0, 128
      %885 = vxpose.xlu0.b32.cont [10/16] 0.0, 128
      %886 = vxpose.xlu0.b32.cont [11/16] 0.0, 128
      %887 = vxpose.xlu0.b32.cont [12/16] 0.0, 128
      %888 = vxpose.xlu0.b32.cont [13/16] 0.0, 128
      %889 = vxpose.xlu0.b32.cont [14/16] 0.0, 128
      %890 = vxpose.xlu0.b32.cont [15/16] 0.0, 128
      %891 = vxpose.xlu0.b32.end [16/16] 0.0, 128
      %v892 = vpop.trf.xlu0
      %v893 = vpop.trf.xlu0
      %v894 = vpop.trf.xlu0
      %v895 = vpop.trf.xlu0
      %v896 = vpop.trf.xlu0
      %v897 = vpop.trf.xlu0
      %v898 = vpop.trf.xlu0
      %v899 = vpop.trf.xlu0
      %v900 = vpop.trf.xlu0
      %v901 = vpop.trf.xlu0
      %v902 = vpop.trf.xlu0
      %v903 = vpop.trf.xlu0
      %v904 = vpop.trf.xlu0
      %v905 = vpop.trf.xlu0
      %v906 = vpop.trf.xlu0
      %v907 = vpop.trf.xlu0
      %v909 = vsel %vm160, %v892, 0
      %v912 = vsel %vm160, %v893, 0
      %v915 = vsel %vm160, %v894, 0
      %v918 = vsel %vm160, %v895, 0
      %920 = vmatprep.subr.mxu0 0.0
      %921 = vmatpush1.msra.mxu0 0.0
      %922 = vmatprep.subr.mxu0 0.0
      %923 = vmatpush1.msra.mxu0 0.0
      %924 = vmatprep.subr.mxu0 0.0
      %925 = vmatpush1.msra.mxu0 0.0
      %926 = vmatprep.subr.mxu0 0.0
      %927 = vmatpush1.msra.mxu0 0.0
      %928 = vmatprep.subr.mxu0 0.0
      %929 = vmatpush1.msra.mxu0 0.0
      %930 = vmatprep.subr.mxu0 0.0
      %931 = vmatpush1.msra.mxu0 0.0
      %932 = vmatprep.subr.mxu0 0.0
      %933 = vmatpush1.msra.mxu0 0.0
      %934 = vmatprep.subr.mxu0 0.0
      %935 = vmatpush1.msra.mxu0 0.0
      %936 = vmatprep.subr.mxu0 0.0
      %937 = vmatpush1.msra.mxu0 0.0
      %938 = vmatprep.subr.mxu0 0.0
      %939 = vmatpush1.msra.mxu0 0.0
      %940 = vmatprep.subr.mxu0 0.0
      %941 = vmatpush1.msra.mxu0 0.0
      %942 = vmatprep.subr.mxu0 0.0
      %943 = vmatpush1.msra.mxu0 0.0
      %944 = vmatprep.subr.mxu0 0.0
      %945 = vmatpush1.msra.mxu0 0.0
      %946 = vmatprep.subr.mxu0 0.0
      %947 = vmatpush1.msra.mxu0 0.0
      %948 = vmatprep.subr.mxu0 0.0
      %949 = vmatpush1.msra.mxu0 %v873
      %950 = vmatprep.subr.mxu0 0.0
      %951 = vmatpush1.msra.mxu0 %v868
      %952 = vmatprep.subr.mxu0 0.0
      %953 = vmatpush2.msra.mxu0 0.0
      %954 = vmatprep.subr.mxu0 0.0
      %955 = vmatpush2.msra.mxu0 0.0
      %956 = vmatprep.subr.mxu0 0.0
      %957 = vmatpush2.msra.mxu0 0.0
      %958 = vmatprep.subr.mxu0 0.0
      %959 = vmatpush2.msra.mxu0 0.0
      %960 = vmatprep.subr.mxu0 0.0
      %961 = vmatpush2.msra.mxu0 0.0
      %962 = vmatprep.subr.mxu0 0.0
      %963 = vmatpush2.msra.mxu0 0.0
      %964 = vmatprep.subr.mxu0 0.0
      %965 = vmatpush2.msra.mxu0 0.0
      %966 = vmatprep.subr.mxu0 0.0
      %967 = vmatpush2.msra.mxu0 0.0
      %968 = vmatprep.subr.mxu0 0.0
      %969 = vmatpush2.msra.mxu0 0.0
      %970 = vmatprep.subr.mxu0 0.0
      %971 = vmatpush2.msra.mxu0 0.0
      %972 = vmatprep.subr.mxu0 0.0
      %973 = vmatpush2.msra.mxu0 0.0
      %974 = vmatprep.subr.mxu0 0.0
      %975 = vmatpush2.msra.mxu0 0.0
      %976 = vmatprep.subr.mxu0 0.0
      %977 = vmatpush2.msra.mxu0 0.0
      %978 = vmatprep.subr.mxu0 0.0
      %979 = vmatpush2.msra.mxu0 0.0
      %980 = vmatprep.subr.mxu0 0.0
      %981 = vmatpush2.msra.mxu0 0.0
      %982 = vmatprep.subr.mxu0 0.0
      %983 = vmatpush2.msra.mxu0 0.0
      %984 = vmatprep.mubr.f32.mxu0 0.0
      %985 = vmatmul.mubr.f32.gmra.mxu0 %v909
      %v986 = vpop.f32.mrf.mxu0
      %v987 = vadd.f32 0.0, %v986
      %v988 = vpop.f32.mrf.mxu0
      %989 = vmatprep.mubr.f32.mxu0 0.0
      %990 = vmatmul.mubr.f32.gmra.mxu0 %v912
      %v991 = vpop.f32.mrf.mxu0
      %v992 = vadd.f32 0.0, %v991
      %v993 = vpop.f32.mrf.mxu0
      %994 = vmatprep.mubr.f32.mxu0 0.0
      %995 = vmatmul.mubr.f32.gmra.mxu0 %v915
      %v996 = vpop.f32.mrf.mxu0
      %v997 = vadd.f32 0.0, %v996
      %v998 = vpop.f32.mrf.mxu0
      %999 = vmatprep.mubr.f32.mxu0 0.0
      %1000 = vmatmul.mubr.f32.gmra.mxu0 %v918
      %v1001 = vpop.f32.mrf.mxu0
      %v1002 = vadd.f32 0.0, %v1001
      %v1003 = vpop.f32.mrf.mxu0
      %1004 = vdwg.mxu0
      %v1005 = vadd.f32 %v791, %v987
      %v1006 = vadd.f32 %v792, %v992
      %v1007 = vadd.f32 %v793, %v997
      %v1008 = vadd.f32 %v794, %v1002
      %vm1009 = vcmp.ge.s32.totalorder %v151, 0
      %vm1010 = vcmp.lt.s32.totalorder %v151, 8
      %vm1011 = vmand %vm1009, %vm1010
      %v1012 = vsel %vm1011, %v1005, 0.0
      %vm1013 = vcmp.ge.s32.totalorder %v151, 8
      %vm1014 = vcmp.lt.s32.totalorder %v151, 16
      %vm1015 = vmand %vm1013, %vm1014
      %v1016 = vsel %vm1015, %v1006, %v1012
      %vm1017 = vcmp.ge.s32.totalorder %v151, 16
      %vm1018 = vcmp.lt.s32.totalorder %v151, 24
      %vm1019 = vmand %vm1017, %vm1018
      %v1020 = vsel %vm1019, %v1007, %v1016
      %vm1021 = vcmp.ge.s32.totalorder %v151, 24
      %vm1022 = vcmp.lt.s32.totalorder %v151, 32
      %vm1023 = vmand %vm1021, %vm1022
      %v1024 = vsel %vm1023, %v1008, %v1020
      %vm1025 = vcmask 261120
      %1026 = vst.msk [vmem:[%s141] sm:$0xff] %vm1025, %v1024
      %p1027 = scmp.lt.s32.totalorder %s13, 1
      %s1028 = scalar_select %p1027, %s13, 1
      %s1029 = smul.addr %s1028, 8
      %s1030 = scalar_lea.vmem %s2, %s1029
      // Predicated region
      $region29: #{bimap_2_reduced_forward.2} parent=27 // pred_check
        %p1031 = pneg %p78
      $region30: #{bimap_2_reduced_forward.2} parent=27 // pred_check_branch
        %1033 = sbr.rel (%p1031) target = $region32
      $region31: #{bimap_2_reduced_forward.2} parent=27 // pred_region
        _
      $region32: #{bimap_2_reduced_forward.2} parent=27 // pred_fallthru
        _
    $region28: #{bimap_2_reduced_forward.2} parent=5 // pred_fallthru
      _
    %p1034 = scmp.le.s32.totalorder 2, %s8
    // Predicated region
    $region33: #{bimap_2_reduced_forward.2} parent=5 // pred_check
      %p1035 = pneg %p1034
    $region34: #{bimap_2_reduced_forward.2} parent=5 // pred_check_branch
      %1037 = sbr.rel (%p1035) target = $region36
    $region35: #{bimap_2_reduced_forward.2} parent=5 // pred_region
      %s1038 = ssub.s32 %s8, 2
      // Predicated region
      $region37: #{bimap_2_reduced_forward.2} parent=35 // pred_check
        %p1039 = pneg %p84
      $region38: #{bimap_2_reduced_forward.2} parent=35 // pred_check_branch
        %1041 = sbr.rel (%p1039) target = $region40
      $region39: #{bimap_2_reduced_forward.2} parent=35 // pred_region
        %p1042 = scmp.lt.s32.totalorder %s14, 1
        %s1043 = scalar_select %p1042, %s14, 1
        %s1044 = smul.addr %s1043, 8
        %s1045 = scalar_lea.vmem %s2, %s1044
      $region40: #{bimap_2_reduced_forward.2} parent=35 // pred_fallthru
        _
    $region36: #{bimap_2_reduced_forward.2} parent=5 // pred_fallthru
      _
  $region6: #{bimap_2_reduced_forward.2} parent=0 // loop_footer
    %s12 = sadd.s32 1, %s8
  $region7: #{bimap_2_reduced_forward.2} parent=0 // loop_footer_branch
    %7 = sbr.rel target = $region3
  $region8: #{bimap_2_reduced_forward.2} parent=0 // loop_exit
    _

</llo_original>
